<compile_context>
chip_gen: v6e
topology: v6e:2x2x1
jax: 0.10.0
libtpu: 0.0.40
codegen_flags: <defaults>
</compile_context>

<pallas_src>
import jax
import jax.numpy as jnp
from jax.experimental import pallas as pl
from jax.experimental.pallas import tpu as pltpu

EPS = 1e-5  # PyTorch BatchNorm1d default eps


def _fused_linear_bn_relu_kernel(x_ref, w_ref, scale_ref, shift_ref, o_ref):
    """One (B, tn) output tile: accumulate x @ W over K, then fused BN(eval)+bias+ReLU.

    x_ref:     (K//tk, B, tk) f32  fully VMEM-resident (constant index map)
    w_ref:     (tk, tn)       bf16 streamed weight tile (the dominant HBM traffic)
    scale_ref: (1, tn)        f32  gamma * rsqrt(var + eps)
    shift_ref: (1, tn)        f32  beta + (bias - mean) * scale
    o_ref:     (B, tn)        f32  doubles as the accumulator (resident across K)
    """
    k = pl.program_id(1)

    @pl.when(k == 0)
    def _():
        o_ref[...] = jnp.zeros_like(o_ref)

    # bf16 x bf16 MXU matmul with f32 accumulation directly into the output tile.
    x_blk = x_ref[k].astype(jnp.bfloat16)
    o_ref[...] += jnp.dot(x_blk, w_ref[...], preferred_element_type=jnp.float32)

    @pl.when(k == pl.num_programs(1) - 1)
    def _():
        o_ref[...] = jnp.maximum(o_ref[...] * scale_ref[...] + shift_ref[...], 0.0)


def fused_linear_bn_relu(x, w, b, mean, var, gamma, beta, *, tn=1024, tk=1024):
    """x: (B, K) f32, w: (K, N); returns relu(batchnorm(x @ w + b)) as (B, N) f32.

    On v7x, tn=512 for the N=7168 layers gives an even megacore split (14 steps);
    tn=1024 is the best default for single-TC chips (v5e/v6e).
    """
    B, K = x.shape
    Kw, N = w.shape
    assert K == Kw and K % tk == 0 and N % tn == 0
    nk = K // tk

    # Fold BatchNorm1d(eval) + the Linear bias into one scale/shift pair (f32).
    scale = gamma * jax.lax.rsqrt(var + EPS)
    shift = beta + (b - mean) * scale
    scale2 = scale.reshape(1, N)
    shift2 = shift.reshape(1, N)

    # Stream weights in bf16 (no-op cast if already bf16); accumulate in f32.
    w_bf16 = w.astype(jnp.bfloat16)

    # Hold x fully resident in VMEM as (nk, B, tk): only W streams per grid step.
    x3 = x.reshape(B, nk, tk).transpose(1, 0, 2)

    vec_spec = pl.BlockSpec((1, tn), lambda n, k: (0, n))

    return pl.pallas_call(
        _fused_linear_bn_relu_kernel,
        out_shape=jax.ShapeDtypeStruct((B, N), jnp.float32),
        grid_spec=pltpu.PrefetchScalarGridSpec(
            num_scalar_prefetch=0,
            grid=(N // tn, nk),                 # reduction axis (K) last
            in_specs=[
                pl.BlockSpec((nk, B, tk), lambda n, k: (0, 0, 0)),  # x, resident
                pl.BlockSpec((tk, tn), lambda n, k: (k, n)),        # bf16 W stream
                vec_spec,   # folded BN scale
                vec_spec,   # folded BN shift (includes Linear bias)
            ],
            out_specs=pl.BlockSpec((B, tn), lambda n, k: (0, n)),   # accumulator
        ),
        compiler_params=pltpu.CompilerParams(
            dimension_semantics=("parallel", "arbitrary")),
    )(x3, w_bf16, scale2, shift2)


def init_params(key):
    """Deterministic parameter init for the three Linear+BN blocks (weights in bf16)."""
    dims = [(1024, 4096), (4096, 7168), (7168, 7168)]
    params = []
    for (din, dout) in dims:
        key, kw, kb, kg, kbe, km, kv = jax.random.split(key, 7)
        params.append(dict(
            w=(jax.random.normal(kw, (din, dout), jnp.float32) * 0.02
               ).astype(jnp.bfloat16),                                   # streamed dtype
            b=jax.random.normal(kb, (dout,), jnp.float32) * 0.01,
            gamma=1.0 + 0.1 * jax.random.normal(kg, (dout,), jnp.float32),
            beta=0.05 * jax.random.normal(kbe, (dout,), jnp.float32),
            mean=0.01 * jax.random.normal(km, (dout,), jnp.float32),
            var=jax.random.uniform(kv, (dout,), jnp.float32, 0.5, 1.5),
        ))
    return params


def encoder_forward(x, params):
    """x: (B, 2, 512) -> (B, 14, 512), mirroring Encoder(is_bezier=True).forward."""
    B = x.shape[0]
    h = x.reshape(B, 1024)                           # Reshape(1024)   (glue)
    for p in params:                                 # 3 x fused Linear+BN+ReLU (Pallas)
        h = fused_linear_bn_relu(h, p["w"], p["b"], p["mean"],
                                 p["var"], p["gamma"], p["beta"])
    return h.reshape(B, 14, 512)                     # Reshape(14, 512) (glue)


if __name__ == "__main__":
    key = jax.random.PRNGKey(0)
    key_x, key_p = jax.random.split(key)

    B = 8
    x = jax.random.normal(key_x, (B, 2, 512), jnp.float32)
    params = init_params(key_p)

    out = encoder_forward(x, params)
    out = jax.block_until_ready(out)

    assert out.shape == (B, 14, 512), out.shape
    assert bool(jnp.all(jnp.isfinite(out)))
    assert bool(jnp.all(out >= 0.0))  # final ReLU

    print("KERNEL_OK")
</pallas_src>

<mosaic_0001>
module attributes {stable_mosaic.version = 11 : i64} {
  func.func @_fused_linear_bn_relu_kernel(%arg0: i32, %arg1: i32, %arg2: memref<1x8x1024xf32, #tpu.memory_space<vmem>>, %arg3: memref<1024x1024xbf16, #tpu.memory_space<vmem>>, %arg4: memref<1x1024xf32, #tpu.memory_space<vmem>>, %arg5: memref<1x1024xf32, #tpu.memory_space<vmem>>, %arg6: memref<8x1024xf32, #tpu.memory_space<vmem>>) attributes {dimension_semantics = [#tpu.dimension_semantics<parallel>, #tpu.dimension_semantics<arbitrary>], iteration_bounds = array<i64: 4, 1>, scalar_prefetch = 0 : i64, scratch_operands = 0 : i64, tpu.core_type = #tpu.core_type<tc>, window_params = [{pipeline_mode = #tpu.pipeline_mode<synchronous>, transform_indices = @transform_0, window_bounds = array<i64: 1, 8, 1024>}, {transform_indices = @transform_1, window_bounds = array<i64: 1024, 1024>}, {transform_indices = @transform_2, window_bounds = array<i64: 1, 1024>}, {transform_indices = @transform_3, window_bounds = array<i64: 1, 1024>}, {transform_indices = @transform_4, window_bounds = array<i64: 8, 1024>}]} {
    %c0_i32 = arith.constant 0 : i32
    %0 = arith.cmpi eq, %arg1, %c0_i32 : i32
    %1 = arith.extui %0 : i1 to i32
    %c0_i32_0 = arith.constant 0 : i32
    %2 = arith.cmpi ne, %1, %c0_i32_0 : i32
    scf.if %2 {
      %cst_10 = arith.constant 0.000000e+00 : f32
      %15 = vector.broadcast %cst_10 : f32 to vector<8x1024xf32>
      %c0_11 = arith.constant 0 : index
      %c0_12 = arith.constant 0 : index
      %16 = vector.load %arg6[%c0_11, %c0_12] : memref<8x1024xf32, #tpu.memory_space<vmem>>, vector<8x1024xf32>
      tpu.vector_store %arg6[%c0_11, %c0_12], %15 {strides = array<i32>} : memref<8x1024xf32, #tpu.memory_space<vmem>>, vector<8x1024xf32>,
    } else {
    }
    %3 = arith.index_cast %arg1 : i32 to index
    %c0 = arith.constant 0 : index
    %c0_1 = arith.constant 0 : index
    %4 = vector.load %arg2[%3, %c0, %c0_1] : memref<1x8x1024xf32, #tpu.memory_space<vmem>>, vector<1x8x1024xf32>
    %5 = vector.shape_cast %4 : vector<1x8x1024xf32> to vector<8x1024xf32>
    %6 = arith.truncf %5 : vector<8x1024xf32> to vector<8x1024xbf16>
    %c0_2 = arith.constant 0 : index
    %c0_3 = arith.constant 0 : index
    %7 = vector.load %arg6[%c0_2, %c0_3] : memref<8x1024xf32, #tpu.memory_space<vmem>>, vector<8x1024xf32>
    %c0_4 = arith.constant 0 : index
    %c0_5 = arith.constant 0 : index
    %8 = vector.load %arg3[%c0_4, %c0_5] : memref<1024x1024xbf16, #tpu.memory_space<vmem>>, vector<1024x1024xbf16>
    %cst = arith.constant dense<0.000000e+00> : vector<8x1024xf32>
    %9 = tpu.matmul %6, %8, %cst {dimension_numbers = #tpu.dot_dimension_numbers<[1], [0], [0], [1], [0, 0, 1, 1], [], []>} : vector<8x1024xbf16>, vector<1024x1024xbf16>, vector<8x1024xf32> -> vector<8x1024xf32>
    %10 = arith.addf %7, %9 : vector<8x1024xf32>
    %c0_6 = arith.constant 0 : index
    %c0_7 = arith.constant 0 : index
    %11 = vector.load %arg6[%c0_6, %c0_7] : memref<8x1024xf32, #tpu.memory_space<vmem>>, vector<8x1024xf32>
    tpu.vector_store %arg6[%c0_6, %c0_7], %10 {strides = array<i32>} : memref<8x1024xf32, #tpu.memory_space<vmem>>, vector<8x1024xf32>,
    %c0_i32_8 = arith.constant 0 : i32
    %12 = arith.cmpi eq, %arg1, %c0_i32_8 : i32
    %13 = arith.extui %12 : i1 to i32
    %c0_i32_9 = arith.constant 0 : i32
    %14 = arith.cmpi ne, %13, %c0_i32_9 : i32
    scf.if %14 {
      %c0_10 = arith.constant 0 : index
      %c0_11 = arith.constant 0 : index
      %15 = vector.load %arg6[%c0_10, %c0_11] : memref<8x1024xf32, #tpu.memory_space<vmem>>, vector<8x1024xf32>
      %c0_12 = arith.constant 0 : index
      %c0_13 = arith.constant 0 : index
      %16 = vector.load %arg4[%c0_12, %c0_13] : memref<1x1024xf32, #tpu.memory_space<vmem>>, vector<1x1024xf32>
      %17 = vector.broadcast %16 : vector<1x1024xf32> to vector<8x1024xf32>
      %18 = arith.mulf %15, %17 : vector<8x1024xf32>
      %c0_14 = arith.constant 0 : index
      %c0_15 = arith.constant 0 : index
      %19 = vector.load %arg5[%c0_14, %c0_15] : memref<1x1024xf32, #tpu.memory_space<vmem>>, vector<1x1024xf32>
      %20 = vector.broadcast %19 : vector<1x1024xf32> to vector<8x1024xf32>
      %21 = arith.addf %18, %20 : vector<8x1024xf32>
      %cst_16 = arith.constant 0.000000e+00 : f32
      %22 = vector.broadcast %cst_16 : f32 to vector<8x1024xf32>
      %23 = arith.maximumf %21, %22 : vector<8x1024xf32>
      %c0_17 = arith.constant 0 : index
      %c0_18 = arith.constant 0 : index
      %24 = vector.load %arg6[%c0_17, %c0_18] : memref<8x1024xf32, #tpu.memory_space<vmem>>, vector<8x1024xf32>
      tpu.vector_store %arg6[%c0_17, %c0_18], %23 {strides = array<i32>} : memref<8x1024xf32, #tpu.memory_space<vmem>>, vector<8x1024xf32>,
    } else {
    }
    return
  }
  func.func @transform_0(%arg0: i32, %arg1: i32) -> (i32, i32, i32) {
    %c0_i32 = arith.constant 0 : i32
    %c0_i32_0 = arith.constant 0 : i32
    %c0_i32_1 = arith.constant 0 : i32
    %c0_i32_2 = arith.constant 0 : i32
    return %c0_i32, %c0_i32_0, %c0_i32_1 : i32, i32, i32
  }
  func.func @transform_1(%arg0: i32, %arg1: i32) -> (i32, i32) {
    %c0_i32 = arith.constant 0 : i32
    return %arg1, %arg0 : i32, i32
  }
  func.func @transform_2(%arg0: i32, %arg1: i32) -> (i32, i32) {
    %c0_i32 = arith.constant 0 : i32
    %c0_i32_0 = arith.constant 0 : i32
    return %c0_i32, %arg0 : i32, i32
  }
  func.func @transform_3(%arg0: i32, %arg1: i32) -> (i32, i32) {
    %c0_i32 = arith.constant 0 : i32
    %c0_i32_0 = arith.constant 0 : i32
    return %c0_i32, %arg0 : i32, i32
  }
  func.func @transform_4(%arg0: i32, %arg1: i32) -> (i32, i32) {
    %c0_i32 = arith.constant 0 : i32
    %c0_i32_0 = arith.constant 0 : i32
    return %c0_i32, %arg0 : i32, i32
  }
}

</mosaic_0001>

<llo_original>
// kernel: tpu_custom_call.1
$region0: #{tpu_custom_call.1}
  #allocation0 [shape = 'u32[]', space=smem, size = 0x4, offset = 0x4, fixed_abs, tag = 'smem constant byte address 0x4 - core index']
  #allocation1 [shape = 'u32[144,128]{1,0:T(1,128)}', space=vmem, size = 0x12000, scoped, tag = 'internal scratch']
  %s0 = inlined_call_operand.hbm [shape: f32[1,8,1024], index: 0, kind: input, shape index: {}]
  %s1 = inlined_call_operand.hbm [shape: bf16[1024,4096], index: 1, kind: input, shape index: {}]
  %s2 = inlined_call_operand.hbm [shape: f32[1,4096], index: 2, kind: input, shape index: {}]
  %s3 = inlined_call_operand.hbm [shape: f32[1,4096], index: 3, kind: input, shape index: {}]
  %s4 = inlined_call_operand.hbm [shape: f32[8,4096], index: 4, kind: output, shape index: {}]
  %s5 = sld [smem:[#allocation0]]
  $region73: #{tpu_custom_call.1} parent=0
    _
  %s7 = ssub.s32 1, %s5
  %s8 = scalar_select 0, %s7, %s5
  $region1: #{tpu_custom_call.1} parent=0
    #allocation2 [shape = 'u8[32768]{0}', space=vmem, size = 0x8000, scoped, tag = 'input window, operand 0, single buffered']
    #allocation3 [shape = 's32[2]{0}', space=sflag, size = 0x8, scoped, tag = 'scoped memory for tpu_custom_call.1']
    #allocation4 [shape = 's32[2]{0}', space=sflag, size = 0x8, scoped, tag = 'scoped memory for tpu_custom_call.1']
    #allocation5 [shape = 'u8[4194304]{0}', space=vmem, size = 0x400000, scoped, tag = 'input window, operand 1']
    #allocation6 [shape = 's32[2]{0}', space=sflag, size = 0x8, scoped, tag = 'scoped memory for tpu_custom_call.1']
    #allocation7 [shape = 'u8[8192]{0}', space=vmem, size = 0x2000, scoped, tag = 'input window, operand 2']
    #allocation8 [shape = 'u8[8192]{0}', space=vmem, size = 0x2000, scoped, tag = 'input window, operand 3']
    #allocation9 [shape = 's32[2]{0}', space=sflag, size = 0x8, scoped, tag = 'scoped memory for tpu_custom_call.1']
    #allocation10 [shape = 'u8[65536]{0}', space=vmem, size = 0x10000, scoped, tag = 'output window, operand 0']
    %9 = vsyncpa [#allocation3], 0
    %10 = vsyncpa [#allocation6], 0
    %s11 = scalar_lea.sflag [#allocation6], 1
    %12 = vsyncpa %s11, 0
    %13 = vsyncpa [#allocation9], 0
    %s14 = scalar_lea.sflag [#allocation9], 1
    %15 = vsyncpa %s14, 0
    %16 = vsyncpa [#allocation4], 0
    %s17 = scalar_lea.sflag [#allocation4], 1
    %18 = vsyncpa %s17, 0
    loop: start=0, step=1, limit=6
    $region2: #{tpu_custom_call.1} parent=1 // loop_pre_header
      _
    $region3: #{tpu_custom_call.1} parent=1 // loop_header
      %s20 = sphi 0, %s24
      %p21 = scmp.ge.s32.totalorder %s20, 6
      %s27 = sphi 0, %s39
      %s28 = sphi 0, %s35
      %s29 = sphi 0, %s27
      %s30 = sphi 0, %s28
      %s31 = sphi 0, %s29
      %s32 = sphi 0, %s30
      %s40 = sphi 0, %s40
      %s42 = sphi 0, %s40
      %s43 = sphi 0, %s42
      %s57 = sphi 0, %s43
      %s65 = sphi 0, %s67
      %s68 = sphi 0, %s65
      %s69 = sphi 0, %s68
      %s85 = sphi 0, %s69
      %s91 = sphi 0, %s93
      %s94 = sphi 0, %s91
      %s95 = sphi 0, %s94
      %s111 = sphi 0, %s95
      %s117 = sphi 0, %s119
      %s120 = sphi 0, %s117
      %s121 = sphi 0, %s120
      %s137 = sphi 0, %s121
      %s143 = sphi 0, %s145
      %s146 = sphi 0, %s143
      %s147 = sphi 0, %s146
      %s163 = sphi 0, %s147
    $region4: #{tpu_custom_call.1} parent=1 // loop_header_branch
      %23 = sbr.rel (%p21) target = $region8
    $region5: #{tpu_custom_call.1} parent=1 // loop_body
      %s25 = ssub.s32 %s20, 1
      %s26 = ssub.s32 %s20, 2
      %s33 = sadd.s32 1, %s28
      %p34 = scmp.ge.s32.totalorder %s33, 1
      %s35 = scalar_select %p34, 0, %s33
      %s36 = sadd.s32 1, %s27
      %s37 = scalar_select %p34, %s36, %s27
      %p38 = scmp.ge.s32.totalorder %s37, 4
      %s39 = scalar_select %p38, 0, %s37
      %s41 = sadd.s32 %s40, 1
      %p44 = scmp.eq.s32.totalorder %s20, 3
      %p45 = scmp.ne.s32.totalorder %s40, %s42
      %p46 = scmp.eq.s32.totalorder %s20, 0
      %p47 = por %p45, %p46
      %p48 = scmp.ne.s32.totalorder %s40, %s42
      %p49 = scmp.eq.s32.totalorder %s25, 3
      %p50 = por %p48, %p49
      %p51 = scmp.ne.s32.totalorder %s42, %s43
      %p52 = scmp.eq.s32.totalorder %s25, 0
      %p53 = por %p51, %p52
      %p54 = scmp.ne.s32.totalorder %s42, %s43
      %p55 = scmp.eq.s32.totalorder %s26, 3
      %p56 = por %p54, %p55
      %p58 = scmp.ne.s32.totalorder %s43, %s57
      %p59 = scmp.eq.s32.totalorder %s26, 0
      %p60 = por %p58, %p59
      %s61 = ssub.s32 %s28, %s35
      %s62 = ssub.s32 %s27, %s39
      %s63 = sor.u32 %s61, %s62
      %p64 = scmp.eq.s32.totalorder %s63, 0
      %s66 = sadd.s32 %s65, 1
      %s67 = scalar_select %p64, %s65, %s66
      %p70 = pneg %p64
      %p71 = scmp.eq.s32.totalorder %s20, 3
      %p72 = por %p70, %p71
      %p73 = scmp.ne.s32.totalorder %s65, %s68
      %p74 = scmp.eq.s32.totalorder %s20, 0
      %p75 = por %p73, %p74
      %p76 = scmp.ne.s32.totalorder %s65, %s68
      %p77 = scmp.eq.s32.totalorder %s25, 3
      %p78 = por %p76, %p77
      %p79 = scmp.ne.s32.totalorder %s68, %s69
      %p80 = scmp.eq.s32.totalorder %s25, 0
      %p81 = por %p79, %p80
      %p82 = scmp.ne.s32.totalorder %s68, %s69
      %p83 = scmp.eq.s32.totalorder %s26, 3
      %p84 = por %p82, %p83
      %p86 = scmp.ne.s32.totalorder %s69, %s85
      %p87 = scmp.eq.s32.totalorder %s26, 0
      %p88 = por %p86, %p87
      %s89 = ssub.s32 %s27, %s39
      %p90 = scmp.eq.s32.totalorder %s89, 0
      %s92 = sadd.s32 %s91, 1
      %s93 = scalar_select %p90, %s91, %s92
      %p96 = pneg %p90
      %p97 = scmp.eq.s32.totalorder %s20, 3
      %p98 = por %p96, %p97
      %p99 = scmp.ne.s32.totalorder %s91, %s94
      %p100 = scmp.eq.s32.totalorder %s20, 0
      %p101 = por %p99, %p100
      %p102 = scmp.ne.s32.totalorder %s91, %s94
      %p103 = scmp.eq.s32.totalorder %s25, 3
      %p104 = por %p102, %p103
      %p105 = scmp.ne.s32.totalorder %s94, %s95
      %p106 = scmp.eq.s32.totalorder %s25, 0
      %p107 = por %p105, %p106
      %p108 = scmp.ne.s32.totalorder %s94, %s95
      %p109 = scmp.eq.s32.totalorder %s26, 3
      %p110 = por %p108, %p109
      %p112 = scmp.ne.s32.totalorder %s95, %s111
      %p113 = scmp.eq.s32.totalorder %s26, 0
      %p114 = por %p112, %p113
      %s115 = ssub.s32 %s27, %s39
      %p116 = scmp.eq.s32.totalorder %s115, 0
      %s118 = sadd.s32 %s117, 1
      %s119 = scalar_select %p116, %s117, %s118
      %p122 = pneg %p116
      %p123 = scmp.eq.s32.totalorder %s20, 3
      %p124 = por %p122, %p123
      %p125 = scmp.ne.s32.totalorder %s117, %s120
      %p126 = scmp.eq.s32.totalorder %s20, 0
      %p127 = por %p125, %p126
      %p128 = scmp.ne.s32.totalorder %s117, %s120
      %p129 = scmp.eq.s32.totalorder %s25, 3
      %p130 = por %p128, %p129
      %p131 = scmp.ne.s32.totalorder %s120, %s121
      %p132 = scmp.eq.s32.totalorder %s25, 0
      %p133 = por %p131, %p132
      %p134 = scmp.ne.s32.totalorder %s120, %s121
      %p135 = scmp.eq.s32.totalorder %s26, 3
      %p136 = por %p134, %p135
      %p138 = scmp.ne.s32.totalorder %s121, %s137
      %p139 = scmp.eq.s32.totalorder %s26, 0
      %p140 = por %p138, %p139
      %s141 = ssub.s32 %s27, %s39
      %p142 = scmp.eq.s32.totalorder %s141, 0
      %s144 = sadd.s32 %s143, 1
      %s145 = scalar_select %p142, %s143, %s144
      %p148 = pneg %p142
      %p149 = scmp.eq.s32.totalorder %s20, 3
      %p150 = por %p148, %p149
      %p151 = scmp.ne.s32.totalorder %s143, %s146
      %p152 = scmp.eq.s32.totalorder %s20, 0
      %p153 = por %p151, %p152
      %p154 = scmp.ne.s32.totalorder %s143, %s146
      %p155 = scmp.eq.s32.totalorder %s25, 3
      %p156 = por %p154, %p155
      %p157 = scmp.ne.s32.totalorder %s146, %s147
      %p158 = scmp.eq.s32.totalorder %s25, 0
      %p159 = por %p157, %p158
      %p160 = scmp.ne.s32.totalorder %s146, %s147
      %p161 = scmp.eq.s32.totalorder %s26, 3
      %p162 = por %p160, %p161
      %p164 = scmp.ne.s32.totalorder %s147, %s163
      %p165 = scmp.eq.s32.totalorder %s26, 0
      %p166 = por %p164, %p165
      %p167 = scmp.le.s32.totalorder 1, %s20
      %p168 = scmp.lt.s32.totalorder %s20, 5
      %p169 = pnand %p167, %p168
      %p170 = pneg %p169
      // Predicated region
      $region9: #{tpu_custom_call.1} parent=5 // pred_check
        _
      $region10: #{tpu_custom_call.1} parent=5 // pred_check_branch
        %172 = sbr.rel (%p169) target = $region12
      $region11: #{tpu_custom_call.1} parent=5 // pred_region
        %s173 = ssub.s32 %s20, 1
        // Predicated region
        $region13: #{tpu_custom_call.1} parent=11 // pred_check
          %p174 = pneg %p53
        $region14: #{tpu_custom_call.1} parent=11 // pred_check_branch
          %176 = sbr.rel (%p174) target = $region16
        $region15: #{tpu_custom_call.1} parent=11 // pred_region
          %s178 = ssub.s32 1024, 1024
          %179 = vsyncadd [#allocation3], %s178
          %s181 = sshll.u32 [#allocation2], 4
          %s182 = int_to_ptr.vmem [resolvable:$true] %s181
          %184 = dma.hbm_to_vmem [thread:$0]  %s0, 1024, %s182, [#allocation3]
        $region16: #{tpu_custom_call.1} parent=11 // pred_fallthru
          _
      $region12: #{tpu_custom_call.1} parent=5 // pred_fallthru
        _
      %p185 = scmp.lt.s32.totalorder %s20, 4
      // Predicated region
      $region17: #{tpu_custom_call.1} parent=5 // pred_check
        %p186 = pneg %p185
      $region18: #{tpu_custom_call.1} parent=5 // pred_check_branch
        %188 = sbr.rel (%p186) target = $region20
      $region19: #{tpu_custom_call.1} parent=5 // pred_region
        // Predicated region
        $region21: #{tpu_custom_call.1} parent=19 // pred_check
          %p189 = pneg %p75
        $region22: #{tpu_custom_call.1} parent=19 // pred_check_branch
          %191 = sbr.rel (%p189) target = $region24
        $region23: #{tpu_custom_call.1} parent=19 // pred_region
          %s192 = sand.u32 %s20, 1
          %s193 = scalar_lea.sflag [#allocation6], %s192
          %s194 = sand.u32 %s65, 1
          %s195 = smul.addr %s194, 4096
          %s196 = scalar_lea.vmem [#allocation5], %s195
          %s197 = smul.u32 128, %s28
          %s198 = smul.u32 8, %s27
          %s200 = ssub.s32 65536, 65536
          %201 = vsyncadd %s193, %s200
          %s202 = smul.addr %s197, 32
          %s203 = sadd.s32 %s198, %s202
          %s204 = smul.addr %s203, 64
          %s205 = scalar_lea.hbm %s1, %s204
          %s206 = sshll.u32 %s196, 4
          %s207 = int_to_ptr.vmem [resolvable:$true] %s206
          %212 = dma.hbm_to_vmem [thread:$0]  %s205, 65536, %s207, %s193, 2048, 512, 32
        $region24: #{tpu_custom_call.1} parent=19 // pred_fallthru
          _
        // Predicated region
        $region25: #{tpu_custom_call.1} parent=19 // pred_check
          %p213 = pneg %p101
        $region26: #{tpu_custom_call.1} parent=19 // pred_check_branch
          %215 = sbr.rel (%p213) target = $region28
        $region27: #{tpu_custom_call.1} parent=19 // pred_region
          %s216 = sand.u32 %s20, 1
          %s217 = scalar_lea.sflag [#allocation6], %s216
          %s218 = sand.u32 %s91, 1
          %s219 = smul.addr %s218, 8
          %s220 = scalar_lea.vmem [#allocation7], %s219
          %s221 = smul.u32 8, %s27
          %s223 = ssub.s32 128, 128
          %224 = vsyncadd %s217, %s223
          %s225 = smul.addr %s221, 16
          %s226 = scalar_lea.hbm %s2, %s225
          %s228 = sshll.u32 %s220, 4
          %s229 = int_to_ptr.vmem [resolvable:$true] %s228
          %231 = dma.hbm_to_vmem [thread:$0]  %s226, 128, %s229, %s217
        $region28: #{tpu_custom_call.1} parent=19 // pred_fallthru
          _
        // Predicated region
        $region29: #{tpu_custom_call.1} parent=19 // pred_check
          %p232 = pneg %p127
        $region30: #{tpu_custom_call.1} parent=19 // pred_check_branch
          %234 = sbr.rel (%p232) target = $region32
        $region31: #{tpu_custom_call.1} parent=19 // pred_region
          %s235 = sand.u32 %s117, 1
          %s236 = scalar_lea.sflag [#allocation9], %s235
          %s237 = sand.u32 %s117, 1
          %s238 = smul.addr %s237, 8
          %s239 = scalar_lea.vmem [#allocation8], %s238
          %s240 = smul.u32 8, %s27
          %s242 = ssub.s32 128, 128
          %243 = vsyncadd %s236, %s242
          %s244 = smul.addr %s240, 16
          %s245 = scalar_lea.hbm %s3, %s244
          %s247 = sshll.u32 %s239, 4
          %s248 = int_to_ptr.vmem [resolvable:$true] %s247
          %250 = dma.hbm_to_vmem [thread:$0]  %s245, 128, %s248, %s236
        $region32: #{tpu_custom_call.1} parent=19 // pred_fallthru
          _
      $region20: #{tpu_custom_call.1} parent=5 // pred_fallthru
        _
      %p251 = scmp.le.s32.totalorder 1, %s20
      %p252 = scmp.lt.s32.totalorder %s20, 5
      %p253 = pnand %p251, %p252
      %p254 = pneg %p253
      // Predicated region
      $region33: #{tpu_custom_call.1} parent=5 // pred_check
        _
      $region34: #{tpu_custom_call.1} parent=5 // pred_check_branch
        %256 = sbr.rel (%p253) target = $region36
      $region35: #{tpu_custom_call.1} parent=5 // pred_region
        %s257 = ssub.s32 %s20, 1
        // Predicated region
        $region37: #{tpu_custom_call.1} parent=35 // pred_check
          %p258 = pneg %p53
        $region38: #{tpu_custom_call.1} parent=35 // pred_check_branch
          %260 = sbr.rel (%p258) target = $region40
        $region39: #{tpu_custom_call.1} parent=35 // pred_region
          %261 = dma.done [#allocation3], 1024
        $region40: #{tpu_custom_call.1} parent=35 // pred_fallthru
          _
        %s262 = sand.u32 %s25, 1
        %s263 = scalar_lea.sflag [#allocation6], %s262
        %s264 = sand.u32 %s68, 1
        %s265 = smul.addr %s264, 4096
        %s266 = scalar_lea.vmem [#allocation5], %s265
        // Predicated region
        $region41: #{tpu_custom_call.1} parent=35 // pred_check
          %p267 = pneg %p81
        $region42: #{tpu_custom_call.1} parent=35 // pred_check_branch
          %269 = sbr.rel (%p267) target = $region44
        $region43: #{tpu_custom_call.1} parent=35 // pred_region
          %270 = dma.done %s263, 65536
        $region44: #{tpu_custom_call.1} parent=35 // pred_fallthru
          _
        %s271 = sand.u32 %s25, 1
        %s272 = scalar_lea.sflag [#allocation6], %s271
        %s273 = sand.u32 %s94, 1
        %s274 = smul.addr %s273, 8
        %s275 = scalar_lea.vmem [#allocation7], %s274
        // Predicated region
        $region45: #{tpu_custom_call.1} parent=35 // pred_check
          %p276 = pneg %p107
        $region46: #{tpu_custom_call.1} parent=35 // pred_check_branch
          %278 = sbr.rel (%p276) target = $region48
        $region47: #{tpu_custom_call.1} parent=35 // pred_region
          %279 = dma.done %s272, 128
        $region48: #{tpu_custom_call.1} parent=35 // pred_fallthru
          _
        %s280 = sand.u32 %s120, 1
        %s281 = scalar_lea.sflag [#allocation9], %s280
        %s282 = sand.u32 %s120, 1
        %s283 = smul.addr %s282, 8
        %s284 = scalar_lea.vmem [#allocation8], %s283
        // Predicated region
        $region49: #{tpu_custom_call.1} parent=35 // pred_check
          %p285 = pneg %p133
        $region50: #{tpu_custom_call.1} parent=35 // pred_check_branch
          %287 = sbr.rel (%p285) target = $region52
        $region51: #{tpu_custom_call.1} parent=35 // pred_region
          %288 = dma.done %s281, 128
        $region52: #{tpu_custom_call.1} parent=35 // pred_fallthru
          _
        %p289 = pneg %p53
        %p290 = pneg %p50
        %s291 = sand.u32 %s25, 1
        %s292 = scalar_lea.sflag [#allocation6], %s291
        %s293 = sand.u32 %s68, 1
        %s294 = smul.addr %s293, 4096
        %s295 = scalar_lea.vmem [#allocation5], %s294
        %p296 = pneg %p81
        %p297 = pneg %p78
        %s298 = sand.u32 %s25, 1
        %s299 = scalar_lea.sflag [#allocation6], %s298
        %s300 = sand.u32 %s94, 1
        %s301 = smul.addr %s300, 8
        %s302 = scalar_lea.vmem [#allocation7], %s301
        %p303 = pneg %p107
        %p304 = pneg %p104
        %s305 = sand.u32 %s120, 1
        %s306 = scalar_lea.sflag [#allocation9], %s305
        %s307 = sand.u32 %s120, 1
        %s308 = smul.addr %s307, 8
        %s309 = scalar_lea.vmem [#allocation8], %s308
        %p310 = pneg %p133
        %p311 = pneg %p130
        %p312 = pneg %p159
        %p313 = pneg %p156
        %s314 = sand.u32 %s146, 1
        %s315 = scalar_lea.sflag [#allocation4], %s314
        %s316 = sand.u32 %s146, 1
        %s317 = smul.addr %s316, 64
        %s318 = scalar_lea.vmem [#allocation10], %s317
        %s319 = smul.u32 128, %s30
        %s320 = smul.u32 8, %s29
        %s321 = smul.u32 8, %s29
        %s322 = smul.u32 8, %s29
        %s323 = smul.u32 8, %s29
        %p324 = scmp.eq.s32.totalorder %s30, 0
        // Predicated region
        $region53: #{tpu_custom_call.1} parent=35 // pred_check
          %p325 = pneg %p324
        $region54: #{tpu_custom_call.1} parent=35 // pred_check_branch
          %327 = sbr.rel (%p325) target = $region56
        $region55: #{tpu_custom_call.1} parent=35 // pred_region
          %328 = vst [vmem:[%s318] sm:$0xff] 0.0
          %329 = vst [vmem:[%s318 + $0x8] sm:$0xff] 0.0
          %330 = vst [vmem:[%s318 + $0x10] sm:$0xff] 0.0
          %331 = vst [vmem:[%s318 + $0x18] sm:$0xff] 0.0
          %332 = vst [vmem:[%s318 + $0x20] sm:$0xff] 0.0
          %333 = vst [vmem:[%s318 + $0x28] sm:$0xff] 0.0
          %334 = vst [vmem:[%s318 + $0x30] sm:$0xff] 0.0
          %335 = vst [vmem:[%s318 + $0x38] sm:$0xff] 0.0
        $region56: #{tpu_custom_call.1} parent=35 // pred_fallthru
          _
        %s336 = smul.u32 %s30, 8
        %s337 = smul.addr %s336, 8
        %s338 = scalar_lea.vmem [#allocation2], %s337
        %v339 = vld [vmem:[%s338] sm:$0xff]
        %v340 = vld [vmem:[%s338 + $0x8] sm:$0xff]
        %v341 = vld [vmem:[%s338 + $0x10] sm:$0xff]
        %v342 = vld [vmem:[%s338 + $0x18] sm:$0xff]
        %v343 = vld [vmem:[%s338 + $0x20] sm:$0xff]
        %v344 = vld [vmem:[%s338 + $0x28] sm:$0xff]
        %v345 = vld [vmem:[%s338 + $0x30] sm:$0xff]
        %v346 = vld [vmem:[%s338 + $0x38] sm:$0xff]
        %v347 = vpack.c.bf16 %v339, %v339
        %v348 = vpack.c.bf16 %v340, %v340
        %v349 = vpack.c.bf16 %v341, %v341
        %v350 = vpack.c.bf16 %v342, %v342
        %v351 = vpack.c.bf16 %v343, %v343
        %v352 = vpack.c.bf16 %v344, %v344
        %v353 = vpack.c.bf16 %v345, %v345
        %v354 = vpack.c.bf16 %v346, %v346
        %v355 = vld [vmem:[%s318] sm:$0xff]
        %v356 = vld [vmem:[%s318 + $0x8] sm:$0xff]
        %v357 = vld [vmem:[%s318 + $0x10] sm:$0xff]
        %v358 = vld [vmem:[%s318 + $0x18] sm:$0xff]
        %v359 = vld [vmem:[%s318 + $0x20] sm:$0xff]
        %v360 = vld [vmem:[%s318 + $0x28] sm:$0xff]
        %v361 = vld [vmem:[%s318 + $0x30] sm:$0xff]
        %v362 = vld [vmem:[%s318 + $0x38] sm:$0xff]
        %v363 = vld [vmem:[%s266] sm:$0xff]
        %v364 = vld [vmem:[%s266 + $0x8] sm:$0xff]
        %v365 = vld [vmem:[%s266 + $0x10] sm:$0xff]
        %v366 = vld [vmem:[%s266 + $0x18] sm:$0xff]
        %v367 = vld [vmem:[%s266 + $0x20] sm:$0xff]
        %v368 = vld [vmem:[%s266 + $0x28] sm:$0xff]
        %v369 = vld [vmem:[%s266 + $0x30] sm:$0xff]
        %v370 = vld [vmem:[%s266 + $0x38] sm:$0xff]
        %v371 = vld [vmem:[%s266 + $0x40] sm:$0xff]
        %v372 = vld [vmem:[%s266 + $0x48] sm:$0xff]
        %v373 = vld [vmem:[%s266 + $0x50] sm:$0xff]
        %v374 = vld [vmem:[%s266 + $0x58] sm:$0xff]
        %v375 = vld [vmem:[%s266 + $0x60] sm:$0xff]
        %v376 = vld [vmem:[%s266 + $0x68] sm:$0xff]
        %v377 = vld [vmem:[%s266 + $0x70] sm:$0xff]
        %v378 = vld [vmem:[%s266 + $0x78] sm:$0xff]
        %v379 = vld [vmem:[%s266 + $0x80] sm:$0xff]
        %v380 = vld [vmem:[%s266 + $0x88] sm:$0xff]
        %v381 = vld [vmem:[%s266 + $0x90] sm:$0xff]
        %v382 = vld [vmem:[%s266 + $0x98] sm:$0xff]
        %v383 = vld [vmem:[%s266 + $0xa0] sm:$0xff]
        %v384 = vld [vmem:[%s266 + $0xa8] sm:$0xff]
        %v385 = vld [vmem:[%s266 + $0xb0] sm:$0xff]
        %v386 = vld [vmem:[%s266 + $0xb8] sm:$0xff]
        %v387 = vld [vmem:[%s266 + $0xc0] sm:$0xff]
        %v388 = vld [vmem:[%s266 + $0xc8] sm:$0xff]
        %v389 = vld [vmem:[%s266 + $0xd0] sm:$0xff]
        %v390 = vld [vmem:[%s266 + $0xd8] sm:$0xff]
        %v391 = vld [vmem:[%s266 + $0xe0] sm:$0xff]
        %v392 = vld [vmem:[%s266 + $0xe8] sm:$0xff]
        %v393 = vld [vmem:[%s266 + $0xf0] sm:$0xff]
        %v394 = vld [vmem:[%s266 + $0xf8] sm:$0xff]
        %v395 = vld [vmem:[%s266 + $0x100] sm:$0xff]
        %v396 = vld [vmem:[%s266 + $0x108] sm:$0xff]
        %v397 = vld [vmem:[%s266 + $0x110] sm:$0xff]
        %v398 = vld [vmem:[%s266 + $0x118] sm:$0xff]
        %v399 = vld [vmem:[%s266 + $0x120] sm:$0xff]
        %v400 = vld [vmem:[%s266 + $0x128] sm:$0xff]
        %v401 = vld [vmem:[%s266 + $0x130] sm:$0xff]
        %v402 = vld [vmem:[%s266 + $0x138] sm:$0xff]
        %v403 = vld [vmem:[%s266 + $0x140] sm:$0xff]
        %v404 = vld [vmem:[%s266 + $0x148] sm:$0xff]
        %v405 = vld [vmem:[%s266 + $0x150] sm:$0xff]
        %v406 = vld [vmem:[%s266 + $0x158] sm:$0xff]
        %v407 = vld [vmem:[%s266 + $0x160] sm:$0xff]
        %v408 = vld [vmem:[%s266 + $0x168] sm:$0xff]
        %v409 = vld [vmem:[%s266 + $0x170] sm:$0xff]
        %v410 = vld [vmem:[%s266 + $0x178] sm:$0xff]
        %v411 = vld [vmem:[%s266 + $0x180] sm:$0xff]
        %v412 = vld [vmem:[%s266 + $0x188] sm:$0xff]
        %v413 = vld [vmem:[%s266 + $0x190] sm:$0xff]
        %v414 = vld [vmem:[%s266 + $0x198] sm:$0xff]
        %v415 = vld [vmem:[%s266 + $0x1a0] sm:$0xff]
        %v416 = vld [vmem:[%s266 + $0x1a8] sm:$0xff]
        %v417 = vld [vmem:[%s266 + $0x1b0] sm:$0xff]
        %v418 = vld [vmem:[%s266 + $0x1b8] sm:$0xff]
        %v419 = vld [vmem:[%s266 + $0x1c0] sm:$0xff]
        %v420 = vld [vmem:[%s266 + $0x1c8] sm:$0xff]
        %v421 = vld [vmem:[%s266 + $0x1d0] sm:$0xff]
        %v422 = vld [vmem:[%s266 + $0x1d8] sm:$0xff]
        %v423 = vld [vmem:[%s266 + $0x1e0] sm:$0xff]
        %v424 = vld [vmem:[%s266 + $0x1e8] sm:$0xff]
        %v425 = vld [vmem:[%s266 + $0x1f0] sm:$0xff]
        %v426 = vld [vmem:[%s266 + $0x1f8] sm:$0xff]
        %v427 = vld [vmem:[%s266 + $0x200] sm:$0xff]
        %v428 = vld [vmem:[%s266 + $0x208] sm:$0xff]
        %v429 = vld [vmem:[%s266 + $0x210] sm:$0xff]
        %v430 = vld [vmem:[%s266 + $0x218] sm:$0xff]
        %v431 = vld [vmem:[%s266 + $0x220] sm:$0xff]
        %v432 = vld [vmem:[%s266 + $0x228] sm:$0xff]
        %v433 = vld [vmem:[%s266 + $0x230] sm:$0xff]
        %v434 = vld [vmem:[%s266 + $0x238] sm:$0xff]
        %v435 = vld [vmem:[%s266 + $0x240] sm:$0xff]
        %v436 = vld [vmem:[%s266 + $0x248] sm:$0xff]
        %v437 = vld [vmem:[%s266 + $0x250] sm:$0xff]
        %v438 = vld [vmem:[%s266 + $0x258] sm:$0xff]
        %v439 = vld [vmem:[%s266 + $0x260] sm:$0xff]
        %v440 = vld [vmem:[%s266 + $0x268] sm:$0xff]
        %v441 = vld [vmem:[%s266 + $0x270] sm:$0xff]
        %v442 = vld [vmem:[%s266 + $0x278] sm:$0xff]
        %v443 = vld [vmem:[%s266 + $0x280] sm:$0xff]
        %v444 = vld [vmem:[%s266 + $0x288] sm:$0xff]
        %v445 = vld [vmem:[%s266 + $0x290] sm:$0xff]
        %v446 = vld [vmem:[%s266 + $0x298] sm:$0xff]
        %v447 = vld [vmem:[%s266 + $0x2a0] sm:$0xff]
        %v448 = vld [vmem:[%s266 + $0x2a8] sm:$0xff]
        %v449 = vld [vmem:[%s266 + $0x2b0] sm:$0xff]
        %v450 = vld [vmem:[%s266 + $0x2b8] sm:$0xff]
        %v451 = vld [vmem:[%s266 + $0x2c0] sm:$0xff]
        %v452 = vld [vmem:[%s266 + $0x2c8] sm:$0xff]
        %v453 = vld [vmem:[%s266 + $0x2d0] sm:$0xff]
        %v454 = vld [vmem:[%s266 + $0x2d8] sm:$0xff]
        %v455 = vld [vmem:[%s266 + $0x2e0] sm:$0xff]
        %v456 = vld [vmem:[%s266 + $0x2e8] sm:$0xff]
        %v457 = vld [vmem:[%s266 + $0x2f0] sm:$0xff]
        %v458 = vld [vmem:[%s266 + $0x2f8] sm:$0xff]
        %v459 = vld [vmem:[%s266 + $0x300] sm:$0xff]
        %v460 = vld [vmem:[%s266 + $0x308] sm:$0xff]
        %v461 = vld [vmem:[%s266 + $0x310] sm:$0xff]
        %v462 = vld [vmem:[%s266 + $0x318] sm:$0xff]
        %v463 = vld [vmem:[%s266 + $0x320] sm:$0xff]
        %v464 = vld [vmem:[%s266 + $0x328] sm:$0xff]
        %v465 = vld [vmem:[%s266 + $0x330] sm:$0xff]
        %v466 = vld [vmem:[%s266 + $0x338] sm:$0xff]
        %v467 = vld [vmem:[%s266 + $0x340] sm:$0xff]
        %v468 = vld [vmem:[%s266 + $0x348] sm:$0xff]
        %v469 = vld [vmem:[%s266 + $0x350] sm:$0xff]
        %v470 = vld [vmem:[%s266 + $0x358] sm:$0xff]
        %v471 = vld [vmem:[%s266 + $0x360] sm:$0xff]
        %v472 = vld [vmem:[%s266 + $0x368] sm:$0xff]
        %v473 = vld [vmem:[%s266 + $0x370] sm:$0xff]
        %v474 = vld [vmem:[%s266 + $0x378] sm:$0xff]
        %v475 = vld [vmem:[%s266 + $0x380] sm:$0xff]
        %v476 = vld [vmem:[%s266 + $0x388] sm:$0xff]
        %v477 = vld [vmem:[%s266 + $0x390] sm:$0xff]
        %v478 = vld [vmem:[%s266 + $0x398] sm:$0xff]
        %v479 = vld [vmem:[%s266 + $0x3a0] sm:$0xff]
        %v480 = vld [vmem:[%s266 + $0x3a8] sm:$0xff]
        %v481 = vld [vmem:[%s266 + $0x3b0] sm:$0xff]
        %v482 = vld [vmem:[%s266 + $0x3b8] sm:$0xff]
        %v483 = vld [vmem:[%s266 + $0x3c0] sm:$0xff]
        %v484 = vld [vmem:[%s266 + $0x3c8] sm:$0xff]
        %v485 = vld [vmem:[%s266 + $0x3d0] sm:$0xff]
        %v486 = vld [vmem:[%s266 + $0x3d8] sm:$0xff]
        %v487 = vld [vmem:[%s266 + $0x3e0] sm:$0xff]
        %v488 = vld [vmem:[%s266 + $0x3e8] sm:$0xff]
        %v489 = vld [vmem:[%s266 + $0x3f0] sm:$0xff]
        %v490 = vld [vmem:[%s266 + $0x3f8] sm:$0xff]
        %v491 = vld [vmem:[%s266 + $0x400] sm:$0xff]
        %v492 = vld [vmem:[%s266 + $0x408] sm:$0xff]
        %v493 = vld [vmem:[%s266 + $0x410] sm:$0xff]
        %v494 = vld [vmem:[%s266 + $0x418] sm:$0xff]
        %v495 = vld [vmem:[%s266 + $0x420] sm:$0xff]
        %v496 = vld [vmem:[%s266 + $0x428] sm:$0xff]
        %v497 = vld [vmem:[%s266 + $0x430] sm:$0xff]
        %v498 = vld [vmem:[%s266 + $0x438] sm:$0xff]
        %v499 = vld [vmem:[%s266 + $0x440] sm:$0xff]
        %v500 = vld [vmem:[%s266 + $0x448] sm:$0xff]
        %v501 = vld [vmem:[%s266 + $0x450] sm:$0xff]
        %v502 = vld [vmem:[%s266 + $0x458] sm:$0xff]
        %v503 = vld [vmem:[%s266 + $0x460] sm:$0xff]
        %v504 = vld [vmem:[%s266 + $0x468] sm:$0xff]
        %v505 = vld [vmem:[%s266 + $0x470] sm:$0xff]
        %v506 = vld [vmem:[%s266 + $0x478] sm:$0xff]
        %v507 = vld [vmem:[%s266 + $0x480] sm:$0xff]
        %v508 = vld [vmem:[%s266 + $0x488] sm:$0xff]
        %v509 = vld [vmem:[%s266 + $0x490] sm:$0xff]
        %v510 = vld [vmem:[%s266 + $0x498] sm:$0xff]
        %v511 = vld [vmem:[%s266 + $0x4a0] sm:$0xff]
        %v512 = vld [vmem:[%s266 + $0x4a8] sm:$0xff]
        %v513 = vld [vmem:[%s266 + $0x4b0] sm:$0xff]
        %v514 = vld [vmem:[%s266 + $0x4b8] sm:$0xff]
        %v515 = vld [vmem:[%s266 + $0x4c0] sm:$0xff]
        %v516 = vld [vmem:[%s266 + $0x4c8] sm:$0xff]
        %v517 = vld [vmem:[%s266 + $0x4d0] sm:$0xff]
        %v518 = vld [vmem:[%s266 + $0x4d8] sm:$0xff]
        %v519 = vld [vmem:[%s266 + $0x4e0] sm:$0xff]
        %v520 = vld [vmem:[%s266 + $0x4e8] sm:$0xff]
        %v521 = vld [vmem:[%s266 + $0x4f0] sm:$0xff]
        %v522 = vld [vmem:[%s266 + $0x4f8] sm:$0xff]
        %v523 = vld [vmem:[%s266 + $0x500] sm:$0xff]
        %v524 = vld [vmem:[%s266 + $0x508] sm:$0xff]
        %v525 = vld [vmem:[%s266 + $0x510] sm:$0xff]
        %v526 = vld [vmem:[%s266 + $0x518] sm:$0xff]
        %v527 = vld [vmem:[%s266 + $0x520] sm:$0xff]
        %v528 = vld [vmem:[%s266 + $0x528] sm:$0xff]
        %v529 = vld [vmem:[%s266 + $0x530] sm:$0xff]
        %v530 = vld [vmem:[%s266 + $0x538] sm:$0xff]
        %v531 = vld [vmem:[%s266 + $0x540] sm:$0xff]
        %v532 = vld [vmem:[%s266 + $0x548] sm:$0xff]
        %v533 = vld [vmem:[%s266 + $0x550] sm:$0xff]
        %v534 = vld [vmem:[%s266 + $0x558] sm:$0xff]
        %v535 = vld [vmem:[%s266 + $0x560] sm:$0xff]
        %v536 = vld [vmem:[%s266 + $0x568] sm:$0xff]
        %v537 = vld [vmem:[%s266 + $0x570] sm:$0xff]
        %v538 = vld [vmem:[%s266 + $0x578] sm:$0xff]
        %v539 = vld [vmem:[%s266 + $0x580] sm:$0xff]
        %v540 = vld [vmem:[%s266 + $0x588] sm:$0xff]
        %v541 = vld [vmem:[%s266 + $0x590] sm:$0xff]
        %v542 = vld [vmem:[%s266 + $0x598] sm:$0xff]
        %v543 = vld [vmem:[%s266 + $0x5a0] sm:$0xff]
        %v544 = vld [vmem:[%s266 + $0x5a8] sm:$0xff]
        %v545 = vld [vmem:[%s266 + $0x5b0] sm:$0xff]
        %v546 = vld [vmem:[%s266 + $0x5b8] sm:$0xff]
        %v547 = vld [vmem:[%s266 + $0x5c0] sm:$0xff]
        %v548 = vld [vmem:[%s266 + $0x5c8] sm:$0xff]
        %v549 = vld [vmem:[%s266 + $0x5d0] sm:$0xff]
        %v550 = vld [vmem:[%s266 + $0x5d8] sm:$0xff]
        %v551 = vld [vmem:[%s266 + $0x5e0] sm:$0xff]
        %v552 = vld [vmem:[%s266 + $0x5e8] sm:$0xff]
        %v553 = vld [vmem:[%s266 + $0x5f0] sm:$0xff]
        %v554 = vld [vmem:[%s266 + $0x5f8] sm:$0xff]
        %v555 = vld [vmem:[%s266 + $0x600] sm:$0xff]
        %v556 = vld [vmem:[%s266 + $0x608] sm:$0xff]
        %v557 = vld [vmem:[%s266 + $0x610] sm:$0xff]
        %v558 = vld [vmem:[%s266 + $0x618] sm:$0xff]
        %v559 = vld [vmem:[%s266 + $0x620] sm:$0xff]
        %v560 = vld [vmem:[%s266 + $0x628] sm:$0xff]
        %v561 = vld [vmem:[%s266 + $0x630] sm:$0xff]
        %v562 = vld [vmem:[%s266 + $0x638] sm:$0xff]
        %v563 = vld [vmem:[%s266 + $0x640] sm:$0xff]
        %v564 = vld [vmem:[%s266 + $0x648] sm:$0xff]
        %v565 = vld [vmem:[%s266 + $0x650] sm:$0xff]
        %v566 = vld [vmem:[%s266 + $0x658] sm:$0xff]
        %v567 = vld [vmem:[%s266 + $0x660] sm:$0xff]
        %v568 = vld [vmem:[%s266 + $0x668] sm:$0xff]
        %v569 = vld [vmem:[%s266 + $0x670] sm:$0xff]
        %v570 = vld [vmem:[%s266 + $0x678] sm:$0xff]
        %v571 = vld [vmem:[%s266 + $0x680] sm:$0xff]
        %v572 = vld [vmem:[%s266 + $0x688] sm:$0xff]
        %v573 = vld [vmem:[%s266 + $0x690] sm:$0xff]
        %v574 = vld [vmem:[%s266 + $0x698] sm:$0xff]
        %v575 = vld [vmem:[%s266 + $0x6a0] sm:$0xff]
        %v576 = vld [vmem:[%s266 + $0x6a8] sm:$0xff]
        %v577 = vld [vmem:[%s266 + $0x6b0] sm:$0xff]
        %v578 = vld [vmem:[%s266 + $0x6b8] sm:$0xff]
        %v579 = vld [vmem:[%s266 + $0x6c0] sm:$0xff]
        %v580 = vld [vmem:[%s266 + $0x6c8] sm:$0xff]
        %v581 = vld [vmem:[%s266 + $0x6d0] sm:$0xff]
        %v582 = vld [vmem:[%s266 + $0x6d8] sm:$0xff]
        %v583 = vld [vmem:[%s266 + $0x6e0] sm:$0xff]
        %v584 = vld [vmem:[%s266 + $0x6e8] sm:$0xff]
        %v585 = vld [vmem:[%s266 + $0x6f0] sm:$0xff]
        %v586 = vld [vmem:[%s266 + $0x6f8] sm:$0xff]
        %v587 = vld [vmem:[%s266 + $0x700] sm:$0xff]
        %v588 = vld [vmem:[%s266 + $0x708] sm:$0xff]
        %v589 = vld [vmem:[%s266 + $0x710] sm:$0xff]
        %v590 = vld [vmem:[%s266 + $0x718] sm:$0xff]
        %v591 = vld [vmem:[%s266 + $0x720] sm:$0xff]
        %v592 = vld [vmem:[%s266 + $0x728] sm:$0xff]
        %v593 = vld [vmem:[%s266 + $0x730] sm:$0xff]
        %v594 = vld [vmem:[%s266 + $0x738] sm:$0xff]
        %v595 = vld [vmem:[%s266 + $0x740] sm:$0xff]
        %v596 = vld [vmem:[%s266 + $0x748] sm:$0xff]
        %v597 = vld [vmem:[%s266 + $0x750] sm:$0xff]
        %v598 = vld [vmem:[%s266 + $0x758] sm:$0xff]
        %v599 = vld [vmem:[%s266 + $0x760] sm:$0xff]
        %v600 = vld [vmem:[%s266 + $0x768] sm:$0xff]
        %v601 = vld [vmem:[%s266 + $0x770] sm:$0xff]
        %v602 = vld [vmem:[%s266 + $0x778] sm:$0xff]
        %v603 = vld [vmem:[%s266 + $0x780] sm:$0xff]
        %v604 = vld [vmem:[%s266 + $0x788] sm:$0xff]
        %v605 = vld [vmem:[%s266 + $0x790] sm:$0xff]
        %v606 = vld [vmem:[%s266 + $0x798] sm:$0xff]
        %v607 = vld [vmem:[%s266 + $0x7a0] sm:$0xff]
        %v608 = vld [vmem:[%s266 + $0x7a8] sm:$0xff]
        %v609 = vld [vmem:[%s266 + $0x7b0] sm:$0xff]
        %v610 = vld [vmem:[%s266 + $0x7b8] sm:$0xff]
        %v611 = vld [vmem:[%s266 + $0x7c0] sm:$0xff]
        %v612 = vld [vmem:[%s266 + $0x7c8] sm:$0xff]
        %v613 = vld [vmem:[%s266 + $0x7d0] sm:$0xff]
        %v614 = vld [vmem:[%s266 + $0x7d8] sm:$0xff]
        %v615 = vld [vmem:[%s266 + $0x7e0] sm:$0xff]
        %v616 = vld [vmem:[%s266 + $0x7e8] sm:$0xff]
        %v617 = vld [vmem:[%s266 + $0x7f0] sm:$0xff]
        %v618 = vld [vmem:[%s266 + $0x7f8] sm:$0xff]
        %v619 = vld [vmem:[%s266 + $0x800] sm:$0xff]
        %v620 = vld [vmem:[%s266 + $0x808] sm:$0xff]
        %v621 = vld [vmem:[%s266 + $0x810] sm:$0xff]
        %v622 = vld [vmem:[%s266 + $0x818] sm:$0xff]
        %v623 = vld [vmem:[%s266 + $0x820] sm:$0xff]
        %v624 = vld [vmem:[%s266 + $0x828] sm:$0xff]
        %v625 = vld [vmem:[%s266 + $0x830] sm:$0xff]
        %v626 = vld [vmem:[%s266 + $0x838] sm:$0xff]
        %v627 = vld [vmem:[%s266 + $0x840] sm:$0xff]
        %v628 = vld [vmem:[%s266 + $0x848] sm:$0xff]
        %v629 = vld [vmem:[%s266 + $0x850] sm:$0xff]
        %v630 = vld [vmem:[%s266 + $0x858] sm:$0xff]
        %v631 = vld [vmem:[%s266 + $0x860] sm:$0xff]
        %v632 = vld [vmem:[%s266 + $0x868] sm:$0xff]
        %v633 = vld [vmem:[%s266 + $0x870] sm:$0xff]
        %v634 = vld [vmem:[%s266 + $0x878] sm:$0xff]
        %v635 = vld [vmem:[%s266 + $0x880] sm:$0xff]
        %v636 = vld [vmem:[%s266 + $0x888] sm:$0xff]
        %v637 = vld [vmem:[%s266 + $0x890] sm:$0xff]
        %v638 = vld [vmem:[%s266 + $0x898] sm:$0xff]
        %v639 = vld [vmem:[%s266 + $0x8a0] sm:$0xff]
        %v640 = vld [vmem:[%s266 + $0x8a8] sm:$0xff]
        %v641 = vld [vmem:[%s266 + $0x8b0] sm:$0xff]
        %v642 = vld [vmem:[%s266 + $0x8b8] sm:$0xff]
        %v643 = vld [vmem:[%s266 + $0x8c0] sm:$0xff]
        %v644 = vld [vmem:[%s266 + $0x8c8] sm:$0xff]
        %v645 = vld [vmem:[%s266 + $0x8d0] sm:$0xff]
        %v646 = vld [vmem:[%s266 + $0x8d8] sm:$0xff]
        %v647 = vld [vmem:[%s266 + $0x8e0] sm:$0xff]
        %v648 = vld [vmem:[%s266 + $0x8e8] sm:$0xff]
        %v649 = vld [vmem:[%s266 + $0x8f0] sm:$0xff]
        %v650 = vld [vmem:[%s266 + $0x8f8] sm:$0xff]
        %v651 = vld [vmem:[%s266 + $0x900] sm:$0xff]
        %v652 = vld [vmem:[%s266 + $0x908] sm:$0xff]
        %v653 = vld [vmem:[%s266 + $0x910] sm:$0xff]
        %v654 = vld [vmem:[%s266 + $0x918] sm:$0xff]
        %v655 = vld [vmem:[%s266 + $0x920] sm:$0xff]
        %v656 = vld [vmem:[%s266 + $0x928] sm:$0xff]
        %v657 = vld [vmem:[%s266 + $0x930] sm:$0xff]
        %v658 = vld [vmem:[%s266 + $0x938] sm:$0xff]
        %v659 = vld [vmem:[%s266 + $0x940] sm:$0xff]
        %v660 = vld [vmem:[%s266 + $0x948] sm:$0xff]
        %v661 = vld [vmem:[%s266 + $0x950] sm:$0xff]
        %v662 = vld [vmem:[%s266 + $0x958] sm:$0xff]
        %v663 = vld [vmem:[%s266 + $0x960] sm:$0xff]
        %v664 = vld [vmem:[%s266 + $0x968] sm:$0xff]
        %v665 = vld [vmem:[%s266 + $0x970] sm:$0xff]
        %v666 = vld [vmem:[%s266 + $0x978] sm:$0xff]
        %v667 = vld [vmem:[%s266 + $0x980] sm:$0xff]
        %v668 = vld [vmem:[%s266 + $0x988] sm:$0xff]
        %v669 = vld [vmem:[%s266 + $0x990] sm:$0xff]
        %v670 = vld [vmem:[%s266 + $0x998] sm:$0xff]
        %v671 = vld [vmem:[%s266 + $0x9a0] sm:$0xff]
        %v672 = vld [vmem:[%s266 + $0x9a8] sm:$0xff]
        %v673 = vld [vmem:[%s266 + $0x9b0] sm:$0xff]
        %v674 = vld [vmem:[%s266 + $0x9b8] sm:$0xff]
        %v675 = vld [vmem:[%s266 + $0x9c0] sm:$0xff]
        %v676 = vld [vmem:[%s266 + $0x9c8] sm:$0xff]
        %v677 = vld [vmem:[%s266 + $0x9d0] sm:$0xff]
        %v678 = vld [vmem:[%s266 + $0x9d8] sm:$0xff]
        %v679 = vld [vmem:[%s266 + $0x9e0] sm:$0xff]
        %v680 = vld [vmem:[%s266 + $0x9e8] sm:$0xff]
        %v681 = vld [vmem:[%s266 + $0x9f0] sm:$0xff]
        %v682 = vld [vmem:[%s266 + $0x9f8] sm:$0xff]
        %v683 = vld [vmem:[%s266 + $0xa00] sm:$0xff]
        %v684 = vld [vmem:[%s266 + $0xa08] sm:$0xff]
        %v685 = vld [vmem:[%s266 + $0xa10] sm:$0xff]
        %v686 = vld [vmem:[%s266 + $0xa18] sm:$0xff]
        %v687 = vld [vmem:[%s266 + $0xa20] sm:$0xff]
        %v688 = vld [vmem:[%s266 + $0xa28] sm:$0xff]
        %v689 = vld [vmem:[%s266 + $0xa30] sm:$0xff]
        %v690 = vld [vmem:[%s266 + $0xa38] sm:$0xff]
        %v691 = vld [vmem:[%s266 + $0xa40] sm:$0xff]
        %v692 = vld [vmem:[%s266 + $0xa48] sm:$0xff]
        %v693 = vld [vmem:[%s266 + $0xa50] sm:$0xff]
        %v694 = vld [vmem:[%s266 + $0xa58] sm:$0xff]
        %v695 = vld [vmem:[%s266 + $0xa60] sm:$0xff]
        %v696 = vld [vmem:[%s266 + $0xa68] sm:$0xff]
        %v697 = vld [vmem:[%s266 + $0xa70] sm:$0xff]
        %v698 = vld [vmem:[%s266 + $0xa78] sm:$0xff]
        %v699 = vld [vmem:[%s266 + $0xa80] sm:$0xff]
        %v700 = vld [vmem:[%s266 + $0xa88] sm:$0xff]
        %v701 = vld [vmem:[%s266 + $0xa90] sm:$0xff]
        %v702 = vld [vmem:[%s266 + $0xa98] sm:$0xff]
        %v703 = vld [vmem:[%s266 + $0xaa0] sm:$0xff]
        %v704 = vld [vmem:[%s266 + $0xaa8] sm:$0xff]
        %v705 = vld [vmem:[%s266 + $0xab0] sm:$0xff]
        %v706 = vld [vmem:[%s266 + $0xab8] sm:$0xff]
        %v707 = vld [vmem:[%s266 + $0xac0] sm:$0xff]
        %v708 = vld [vmem:[%s266 + $0xac8] sm:$0xff]
        %v709 = vld [vmem:[%s266 + $0xad0] sm:$0xff]
        %v710 = vld [vmem:[%s266 + $0xad8] sm:$0xff]
        %v711 = vld [vmem:[%s266 + $0xae0] sm:$0xff]
        %v712 = vld [vmem:[%s266 + $0xae8] sm:$0xff]
        %v713 = vld [vmem:[%s266 + $0xaf0] sm:$0xff]
        %v714 = vld [vmem:[%s266 + $0xaf8] sm:$0xff]
        %v715 = vld [vmem:[%s266 + $0xb00] sm:$0xff]
        %v716 = vld [vmem:[%s266 + $0xb08] sm:$0xff]
        %v717 = vld [vmem:[%s266 + $0xb10] sm:$0xff]
        %v718 = vld [vmem:[%s266 + $0xb18] sm:$0xff]
        %v719 = vld [vmem:[%s266 + $0xb20] sm:$0xff]
        %v720 = vld [vmem:[%s266 + $0xb28] sm:$0xff]
        %v721 = vld [vmem:[%s266 + $0xb30] sm:$0xff]
        %v722 = vld [vmem:[%s266 + $0xb38] sm:$0xff]
        %v723 = vld [vmem:[%s266 + $0xb40] sm:$0xff]
        %v724 = vld [vmem:[%s266 + $0xb48] sm:$0xff]
        %v725 = vld [vmem:[%s266 + $0xb50] sm:$0xff]
        %v726 = vld [vmem:[%s266 + $0xb58] sm:$0xff]
        %v727 = vld [vmem:[%s266 + $0xb60] sm:$0xff]
        %v728 = vld [vmem:[%s266 + $0xb68] sm:$0xff]
        %v729 = vld [vmem:[%s266 + $0xb70] sm:$0xff]
        %v730 = vld [vmem:[%s266 + $0xb78] sm:$0xff]
        %v731 = vld [vmem:[%s266 + $0xb80] sm:$0xff]
        %v732 = vld [vmem:[%s266 + $0xb88] sm:$0xff]
        %v733 = vld [vmem:[%s266 + $0xb90] sm:$0xff]
        %v734 = vld [vmem:[%s266 + $0xb98] sm:$0xff]
        %v735 = vld [vmem:[%s266 + $0xba0] sm:$0xff]
        %v736 = vld [vmem:[%s266 + $0xba8] sm:$0xff]
        %v737 = vld [vmem:[%s266 + $0xbb0] sm:$0xff]
        %v738 = vld [vmem:[%s266 + $0xbb8] sm:$0xff]
        %v739 = vld [vmem:[%s266 + $0xbc0] sm:$0xff]
        %v740 = vld [vmem:[%s266 + $0xbc8] sm:$0xff]
        %v741 = vld [vmem:[%s266 + $0xbd0] sm:$0xff]
        %v742 = vld [vmem:[%s266 + $0xbd8] sm:$0xff]
        %v743 = vld [vmem:[%s266 + $0xbe0] sm:$0xff]
        %v744 = vld [vmem:[%s266 + $0xbe8] sm:$0xff]
        %v745 = vld [vmem:[%s266 + $0xbf0] sm:$0xff]
        %v746 = vld [vmem:[%s266 + $0xbf8] sm:$0xff]
        %v747 = vld [vmem:[%s266 + $0xc00] sm:$0xff]
        %v748 = vld [vmem:[%s266 + $0xc08] sm:$0xff]
        %v749 = vld [vmem:[%s266 + $0xc10] sm:$0xff]
        %v750 = vld [vmem:[%s266 + $0xc18] sm:$0xff]
        %v751 = vld [vmem:[%s266 + $0xc20] sm:$0xff]
        %v752 = vld [vmem:[%s266 + $0xc28] sm:$0xff]
        %v753 = vld [vmem:[%s266 + $0xc30] sm:$0xff]
        %v754 = vld [vmem:[%s266 + $0xc38] sm:$0xff]
        %v755 = vld [vmem:[%s266 + $0xc40] sm:$0xff]
        %v756 = vld [vmem:[%s266 + $0xc48] sm:$0xff]
        %v757 = vld [vmem:[%s266 + $0xc50] sm:$0xff]
        %v758 = vld [vmem:[%s266 + $0xc58] sm:$0xff]
        %v759 = vld [vmem:[%s266 + $0xc60] sm:$0xff]
        %v760 = vld [vmem:[%s266 + $0xc68] sm:$0xff]
        %v761 = vld [vmem:[%s266 + $0xc70] sm:$0xff]
        %v762 = vld [vmem:[%s266 + $0xc78] sm:$0xff]
        %v763 = vld [vmem:[%s266 + $0xc80] sm:$0xff]
        %v764 = vld [vmem:[%s266 + $0xc88] sm:$0xff]
        %v765 = vld [vmem:[%s266 + $0xc90] sm:$0xff]
        %v766 = vld [vmem:[%s266 + $0xc98] sm:$0xff]
        %v767 = vld [vmem:[%s266 + $0xca0] sm:$0xff]
        %v768 = vld [vmem:[%s266 + $0xca8] sm:$0xff]
        %v769 = vld [vmem:[%s266 + $0xcb0] sm:$0xff]
        %v770 = vld [vmem:[%s266 + $0xcb8] sm:$0xff]
        %v771 = vld [vmem:[%s266 + $0xcc0] sm:$0xff]
        %v772 = vld [vmem:[%s266 + $0xcc8] sm:$0xff]
        %v773 = vld [vmem:[%s266 + $0xcd0] sm:$0xff]
        %v774 = vld [vmem:[%s266 + $0xcd8] sm:$0xff]
        %v775 = vld [vmem:[%s266 + $0xce0] sm:$0xff]
        %v776 = vld [vmem:[%s266 + $0xce8] sm:$0xff]
        %v777 = vld [vmem:[%s266 + $0xcf0] sm:$0xff]
        %v778 = vld [vmem:[%s266 + $0xcf8] sm:$0xff]
        %v779 = vld [vmem:[%s266 + $0xd00] sm:$0xff]
        %v780 = vld [vmem:[%s266 + $0xd08] sm:$0xff]
        %v781 = vld [vmem:[%s266 + $0xd10] sm:$0xff]
        %v782 = vld [vmem:[%s266 + $0xd18] sm:$0xff]
        %v783 = vld [vmem:[%s266 + $0xd20] sm:$0xff]
        %v784 = vld [vmem:[%s266 + $0xd28] sm:$0xff]
        %v785 = vld [vmem:[%s266 + $0xd30] sm:$0xff]
        %v786 = vld [vmem:[%s266 + $0xd38] sm:$0xff]
        %v787 = vld [vmem:[%s266 + $0xd40] sm:$0xff]
        %v788 = vld [vmem:[%s266 + $0xd48] sm:$0xff]
        %v789 = vld [vmem:[%s266 + $0xd50] sm:$0xff]
        %v790 = vld [vmem:[%s266 + $0xd58] sm:$0xff]
        %v791 = vld [vmem:[%s266 + $0xd60] sm:$0xff]
        %v792 = vld [vmem:[%s266 + $0xd68] sm:$0xff]
        %v793 = vld [vmem:[%s266 + $0xd70] sm:$0xff]
        %v794 = vld [vmem:[%s266 + $0xd78] sm:$0xff]
        %v795 = vld [vmem:[%s266 + $0xd80] sm:$0xff]
        %v796 = vld [vmem:[%s266 + $0xd88] sm:$0xff]
        %v797 = vld [vmem:[%s266 + $0xd90] sm:$0xff]
        %v798 = vld [vmem:[%s266 + $0xd98] sm:$0xff]
        %v799 = vld [vmem:[%s266 + $0xda0] sm:$0xff]
        %v800 = vld [vmem:[%s266 + $0xda8] sm:$0xff]
        %v801 = vld [vmem:[%s266 + $0xdb0] sm:$0xff]
        %v802 = vld [vmem:[%s266 + $0xdb8] sm:$0xff]
        %v803 = vld [vmem:[%s266 + $0xdc0] sm:$0xff]
        %v804 = vld [vmem:[%s266 + $0xdc8] sm:$0xff]
        %v805 = vld [vmem:[%s266 + $0xdd0] sm:$0xff]
        %v806 = vld [vmem:[%s266 + $0xdd8] sm:$0xff]
        %v807 = vld [vmem:[%s266 + $0xde0] sm:$0xff]
        %v808 = vld [vmem:[%s266 + $0xde8] sm:$0xff]
        %v809 = vld [vmem:[%s266 + $0xdf0] sm:$0xff]
        %v810 = vld [vmem:[%s266 + $0xdf8] sm:$0xff]
        %v811 = vld [vmem:[%s266 + $0xe00] sm:$0xff]
        %v812 = vld [vmem:[%s266 + $0xe08] sm:$0xff]
        %v813 = vld [vmem:[%s266 + $0xe10] sm:$0xff]
        %v814 = vld [vmem:[%s266 + $0xe18] sm:$0xff]
        %v815 = vld [vmem:[%s266 + $0xe20] sm:$0xff]
        %v816 = vld [vmem:[%s266 + $0xe28] sm:$0xff]
        %v817 = vld [vmem:[%s266 + $0xe30] sm:$0xff]
        %v818 = vld [vmem:[%s266 + $0xe38] sm:$0xff]
        %v819 = vld [vmem:[%s266 + $0xe40] sm:$0xff]
        %v820 = vld [vmem:[%s266 + $0xe48] sm:$0xff]
        %v821 = vld [vmem:[%s266 + $0xe50] sm:$0xff]
        %v822 = vld [vmem:[%s266 + $0xe58] sm:$0xff]
        %v823 = vld [vmem:[%s266 + $0xe60] sm:$0xff]
        %v824 = vld [vmem:[%s266 + $0xe68] sm:$0xff]
        %v825 = vld [vmem:[%s266 + $0xe70] sm:$0xff]
        %v826 = vld [vmem:[%s266 + $0xe78] sm:$0xff]
        %v827 = vld [vmem:[%s266 + $0xe80] sm:$0xff]
        %v828 = vld [vmem:[%s266 + $0xe88] sm:$0xff]
        %v829 = vld [vmem:[%s266 + $0xe90] sm:$0xff]
        %v830 = vld [vmem:[%s266 + $0xe98] sm:$0xff]
        %v831 = vld [vmem:[%s266 + $0xea0] sm:$0xff]
        %v832 = vld [vmem:[%s266 + $0xea8] sm:$0xff]
        %v833 = vld [vmem:[%s266 + $0xeb0] sm:$0xff]
        %v834 = vld [vmem:[%s266 + $0xeb8] sm:$0xff]
        %v835 = vld [vmem:[%s266 + $0xec0] sm:$0xff]
        %v836 = vld [vmem:[%s266 + $0xec8] sm:$0xff]
        %v837 = vld [vmem:[%s266 + $0xed0] sm:$0xff]
        %v838 = vld [vmem:[%s266 + $0xed8] sm:$0xff]
        %v839 = vld [vmem:[%s266 + $0xee0] sm:$0xff]
        %v840 = vld [vmem:[%s266 + $0xee8] sm:$0xff]
        %v841 = vld [vmem:[%s266 + $0xef0] sm:$0xff]
        %v842 = vld [vmem:[%s266 + $0xef8] sm:$0xff]
        %v843 = vld [vmem:[%s266 + $0xf00] sm:$0xff]
        %v844 = vld [vmem:[%s266 + $0xf08] sm:$0xff]
        %v845 = vld [vmem:[%s266 + $0xf10] sm:$0xff]
        %v846 = vld [vmem:[%s266 + $0xf18] sm:$0xff]
        %v847 = vld [vmem:[%s266 + $0xf20] sm:$0xff]
        %v848 = vld [vmem:[%s266 + $0xf28] sm:$0xff]
        %v849 = vld [vmem:[%s266 + $0xf30] sm:$0xff]
        %v850 = vld [vmem:[%s266 + $0xf38] sm:$0xff]
        %v851 = vld [vmem:[%s266 + $0xf40] sm:$0xff]
        %v852 = vld [vmem:[%s266 + $0xf48] sm:$0xff]
        %v853 = vld [vmem:[%s266 + $0xf50] sm:$0xff]
        %v854 = vld [vmem:[%s266 + $0xf58] sm:$0xff]
        %v855 = vld [vmem:[%s266 + $0xf60] sm:$0xff]
        %v856 = vld [vmem:[%s266 + $0xf68] sm:$0xff]
        %v857 = vld [vmem:[%s266 + $0xf70] sm:$0xff]
        %v858 = vld [vmem:[%s266 + $0xf78] sm:$0xff]
        %v859 = vld [vmem:[%s266 + $0xf80] sm:$0xff]
        %v860 = vld [vmem:[%s266 + $0xf88] sm:$0xff]
        %v861 = vld [vmem:[%s266 + $0xf90] sm:$0xff]
        %v862 = vld [vmem:[%s266 + $0xf98] sm:$0xff]
        %v863 = vld [vmem:[%s266 + $0xfa0] sm:$0xff]
        %v864 = vld [vmem:[%s266 + $0xfa8] sm:$0xff]
        %v865 = vld [vmem:[%s266 + $0xfb0] sm:$0xff]
        %v866 = vld [vmem:[%s266 + $0xfb8] sm:$0xff]
        %v867 = vld [vmem:[%s266 + $0xfc0] sm:$0xff]
        %v868 = vld [vmem:[%s266 + $0xfc8] sm:$0xff]
        %v869 = vld [vmem:[%s266 + $0xfd0] sm:$0xff]
        %v870 = vld [vmem:[%s266 + $0xfd8] sm:$0xff]
        %v871 = vld [vmem:[%s266 + $0xfe0] sm:$0xff]
        %v872 = vld [vmem:[%s266 + $0xfe8] sm:$0xff]
        %v873 = vld [vmem:[%s266 + $0xff0] sm:$0xff]
        %v874 = vld [vmem:[%s266 + $0xff8] sm:$0xff]
        %v1387 = vunpack.c.l.b16 %v363
        %v1388 = vunpack.c.h.b16 %v363
        %v1389 = vunpack.c.l.b16 %v364
        %v1390 = vunpack.c.h.b16 %v364
        %v1391 = vunpack.c.l.b16 %v365
        %v1392 = vunpack.c.h.b16 %v365
        %v1393 = vunpack.c.l.b16 %v366
        %v1394 = vunpack.c.h.b16 %v366
        %v1395 = vunpack.c.l.b16 %v367
        %v1396 = vunpack.c.h.b16 %v367
        %v1397 = vunpack.c.l.b16 %v368
        %v1398 = vunpack.c.h.b16 %v368
        %v1399 = vunpack.c.l.b16 %v369
        %v1400 = vunpack.c.h.b16 %v369
        %v1401 = vunpack.c.l.b16 %v370
        %v1402 = vunpack.c.h.b16 %v370
        %v1403 = vunpack.c.l.b16 %v371
        %v1404 = vunpack.c.h.b16 %v371
        %v1405 = vunpack.c.l.b16 %v372
        %v1406 = vunpack.c.h.b16 %v372
        %v1407 = vunpack.c.l.b16 %v373
        %v1408 = vunpack.c.h.b16 %v373
        %v1409 = vunpack.c.l.b16 %v374
        %v1410 = vunpack.c.h.b16 %v374
        %v1411 = vunpack.c.l.b16 %v375
        %v1412 = vunpack.c.h.b16 %v375
        %v1413 = vunpack.c.l.b16 %v376
        %v1414 = vunpack.c.h.b16 %v376
        %v1415 = vunpack.c.l.b16 %v377
        %v1416 = vunpack.c.h.b16 %v377
        %v1417 = vunpack.c.l.b16 %v378
        %v1418 = vunpack.c.h.b16 %v378
        %v1419 = vunpack.c.l.b16 %v379
        %v1420 = vunpack.c.h.b16 %v379
        %v1421 = vunpack.c.l.b16 %v380
        %v1422 = vunpack.c.h.b16 %v380
        %v1423 = vunpack.c.l.b16 %v381
        %v1424 = vunpack.c.h.b16 %v381
        %v1425 = vunpack.c.l.b16 %v382
        %v1426 = vunpack.c.h.b16 %v382
        %v1427 = vunpack.c.l.b16 %v383
        %v1428 = vunpack.c.h.b16 %v383
        %v1429 = vunpack.c.l.b16 %v384
        %v1430 = vunpack.c.h.b16 %v384
        %v1431 = vunpack.c.l.b16 %v385
        %v1432 = vunpack.c.h.b16 %v385
        %v1433 = vunpack.c.l.b16 %v386
        %v1434 = vunpack.c.h.b16 %v386
        %v1435 = vunpack.c.l.b16 %v387
        %v1436 = vunpack.c.h.b16 %v387
        %v1437 = vunpack.c.l.b16 %v388
        %v1438 = vunpack.c.h.b16 %v388
        %v1439 = vunpack.c.l.b16 %v389
        %v1440 = vunpack.c.h.b16 %v389
        %v1441 = vunpack.c.l.b16 %v390
        %v1442 = vunpack.c.h.b16 %v390
        %v1443 = vunpack.c.l.b16 %v391
        %v1444 = vunpack.c.h.b16 %v391
        %v1445 = vunpack.c.l.b16 %v392
        %v1446 = vunpack.c.h.b16 %v392
        %v1447 = vunpack.c.l.b16 %v393
        %v1448 = vunpack.c.h.b16 %v393
        %v1449 = vunpack.c.l.b16 %v394
        %v1450 = vunpack.c.h.b16 %v394
        %v1451 = vunpack.c.l.b16 %v395
        %v1452 = vunpack.c.h.b16 %v395
        %v1453 = vunpack.c.l.b16 %v396
        %v1454 = vunpack.c.h.b16 %v396
        %v1455 = vunpack.c.l.b16 %v397
        %v1456 = vunpack.c.h.b16 %v397
        %v1457 = vunpack.c.l.b16 %v398
        %v1458 = vunpack.c.h.b16 %v398
        %v1459 = vunpack.c.l.b16 %v399
        %v1460 = vunpack.c.h.b16 %v399
        %v1461 = vunpack.c.l.b16 %v400
        %v1462 = vunpack.c.h.b16 %v400
        %v1463 = vunpack.c.l.b16 %v401
        %v1464 = vunpack.c.h.b16 %v401
        %v1465 = vunpack.c.l.b16 %v402
        %v1466 = vunpack.c.h.b16 %v402
        %v1467 = vunpack.c.l.b16 %v403
        %v1468 = vunpack.c.h.b16 %v403
        %v1469 = vunpack.c.l.b16 %v404
        %v1470 = vunpack.c.h.b16 %v404
        %v1471 = vunpack.c.l.b16 %v405
        %v1472 = vunpack.c.h.b16 %v405
        %v1473 = vunpack.c.l.b16 %v406
        %v1474 = vunpack.c.h.b16 %v406
        %v1475 = vunpack.c.l.b16 %v407
        %v1476 = vunpack.c.h.b16 %v407
        %v1477 = vunpack.c.l.b16 %v408
        %v1478 = vunpack.c.h.b16 %v408
        %v1479 = vunpack.c.l.b16 %v409
        %v1480 = vunpack.c.h.b16 %v409
        %v1481 = vunpack.c.l.b16 %v410
        %v1482 = vunpack.c.h.b16 %v410
        %v1483 = vunpack.c.l.b16 %v411
        %v1484 = vunpack.c.h.b16 %v411
        %v1485 = vunpack.c.l.b16 %v412
        %v1486 = vunpack.c.h.b16 %v412
        %v1487 = vunpack.c.l.b16 %v413
        %v1488 = vunpack.c.h.b16 %v413
        %v1489 = vunpack.c.l.b16 %v414
        %v1490 = vunpack.c.h.b16 %v414
        %v1491 = vunpack.c.l.b16 %v415
        %v1492 = vunpack.c.h.b16 %v415
        %v1493 = vunpack.c.l.b16 %v416
        %v1494 = vunpack.c.h.b16 %v416
        %v1495 = vunpack.c.l.b16 %v417
        %v1496 = vunpack.c.h.b16 %v417
        %v1497 = vunpack.c.l.b16 %v418
        %v1498 = vunpack.c.h.b16 %v418
        %v1499 = vunpack.c.l.b16 %v419
        %v1500 = vunpack.c.h.b16 %v419
        %v1501 = vunpack.c.l.b16 %v420
        %v1502 = vunpack.c.h.b16 %v420
        %v1503 = vunpack.c.l.b16 %v421
        %v1504 = vunpack.c.h.b16 %v421
        %v1505 = vunpack.c.l.b16 %v422
        %v1506 = vunpack.c.h.b16 %v422
        %v1507 = vunpack.c.l.b16 %v423
        %v1508 = vunpack.c.h.b16 %v423
        %v1509 = vunpack.c.l.b16 %v424
        %v1510 = vunpack.c.h.b16 %v424
        %v1511 = vunpack.c.l.b16 %v425
        %v1512 = vunpack.c.h.b16 %v425
        %v1513 = vunpack.c.l.b16 %v426
        %v1514 = vunpack.c.h.b16 %v426
        %v1515 = vunpack.c.l.b16 %v427
        %v1516 = vunpack.c.h.b16 %v427
        %v1517 = vunpack.c.l.b16 %v428
        %v1518 = vunpack.c.h.b16 %v428
        %v1519 = vunpack.c.l.b16 %v429
        %v1520 = vunpack.c.h.b16 %v429
        %v1521 = vunpack.c.l.b16 %v430
        %v1522 = vunpack.c.h.b16 %v430
        %v1523 = vunpack.c.l.b16 %v431
        %v1524 = vunpack.c.h.b16 %v431
        %v1525 = vunpack.c.l.b16 %v432
        %v1526 = vunpack.c.h.b16 %v432
        %v1527 = vunpack.c.l.b16 %v433
        %v1528 = vunpack.c.h.b16 %v433
        %v1529 = vunpack.c.l.b16 %v434
        %v1530 = vunpack.c.h.b16 %v434
        %v1531 = vunpack.c.l.b16 %v435
        %v1532 = vunpack.c.h.b16 %v435
        %v1533 = vunpack.c.l.b16 %v436
        %v1534 = vunpack.c.h.b16 %v436
        %v1535 = vunpack.c.l.b16 %v437
        %v1536 = vunpack.c.h.b16 %v437
        %v1537 = vunpack.c.l.b16 %v438
        %v1538 = vunpack.c.h.b16 %v438
        %v1539 = vunpack.c.l.b16 %v439
        %v1540 = vunpack.c.h.b16 %v439
        %v1541 = vunpack.c.l.b16 %v440
        %v1542 = vunpack.c.h.b16 %v440
        %v1543 = vunpack.c.l.b16 %v441
        %v1544 = vunpack.c.h.b16 %v441
        %v1545 = vunpack.c.l.b16 %v442
        %v1546 = vunpack.c.h.b16 %v442
        %v1547 = vunpack.c.l.b16 %v443
        %v1548 = vunpack.c.h.b16 %v443
        %v1549 = vunpack.c.l.b16 %v444
        %v1550 = vunpack.c.h.b16 %v444
        %v1551 = vunpack.c.l.b16 %v445
        %v1552 = vunpack.c.h.b16 %v445
        %v1553 = vunpack.c.l.b16 %v446
        %v1554 = vunpack.c.h.b16 %v446
        %v1555 = vunpack.c.l.b16 %v447
        %v1556 = vunpack.c.h.b16 %v447
        %v1557 = vunpack.c.l.b16 %v448
        %v1558 = vunpack.c.h.b16 %v448
        %v1559 = vunpack.c.l.b16 %v449
        %v1560 = vunpack.c.h.b16 %v449
        %v1561 = vunpack.c.l.b16 %v450
        %v1562 = vunpack.c.h.b16 %v450
        %v1563 = vunpack.c.l.b16 %v451
        %v1564 = vunpack.c.h.b16 %v451
        %v1565 = vunpack.c.l.b16 %v452
        %v1566 = vunpack.c.h.b16 %v452
        %v1567 = vunpack.c.l.b16 %v453
        %v1568 = vunpack.c.h.b16 %v453
        %v1569 = vunpack.c.l.b16 %v454
        %v1570 = vunpack.c.h.b16 %v454
        %v1571 = vunpack.c.l.b16 %v455
        %v1572 = vunpack.c.h.b16 %v455
        %v1573 = vunpack.c.l.b16 %v456
        %v1574 = vunpack.c.h.b16 %v456
        %v1575 = vunpack.c.l.b16 %v457
        %v1576 = vunpack.c.h.b16 %v457
        %v1577 = vunpack.c.l.b16 %v458
        %v1578 = vunpack.c.h.b16 %v458
        %v1579 = vunpack.c.l.b16 %v459
        %v1580 = vunpack.c.h.b16 %v459
        %v1581 = vunpack.c.l.b16 %v460
        %v1582 = vunpack.c.h.b16 %v460
        %v1583 = vunpack.c.l.b16 %v461
        %v1584 = vunpack.c.h.b16 %v461
        %v1585 = vunpack.c.l.b16 %v462
        %v1586 = vunpack.c.h.b16 %v462
        %v1587 = vunpack.c.l.b16 %v463
        %v1588 = vunpack.c.h.b16 %v463
        %v1589 = vunpack.c.l.b16 %v464
        %v1590 = vunpack.c.h.b16 %v464
        %v1591 = vunpack.c.l.b16 %v465
        %v1592 = vunpack.c.h.b16 %v465
        %v1593 = vunpack.c.l.b16 %v466
        %v1594 = vunpack.c.h.b16 %v466
        %v1595 = vunpack.c.l.b16 %v467
        %v1596 = vunpack.c.h.b16 %v467
        %v1597 = vunpack.c.l.b16 %v468
        %v1598 = vunpack.c.h.b16 %v468
        %v1599 = vunpack.c.l.b16 %v469
        %v1600 = vunpack.c.h.b16 %v469
        %v1601 = vunpack.c.l.b16 %v470
        %v1602 = vunpack.c.h.b16 %v470
        %v1603 = vunpack.c.l.b16 %v471
        %v1604 = vunpack.c.h.b16 %v471
        %v1605 = vunpack.c.l.b16 %v472
        %v1606 = vunpack.c.h.b16 %v472
        %v1607 = vunpack.c.l.b16 %v473
        %v1608 = vunpack.c.h.b16 %v473
        %v1609 = vunpack.c.l.b16 %v474
        %v1610 = vunpack.c.h.b16 %v474
        %v1611 = vunpack.c.l.b16 %v475
        %v1612 = vunpack.c.h.b16 %v475
        %v1613 = vunpack.c.l.b16 %v476
        %v1614 = vunpack.c.h.b16 %v476
        %v1615 = vunpack.c.l.b16 %v477
        %v1616 = vunpack.c.h.b16 %v477
        %v1617 = vunpack.c.l.b16 %v478
        %v1618 = vunpack.c.h.b16 %v478
        %v1619 = vunpack.c.l.b16 %v479
        %v1620 = vunpack.c.h.b16 %v479
        %v1621 = vunpack.c.l.b16 %v480
        %v1622 = vunpack.c.h.b16 %v480
        %v1623 = vunpack.c.l.b16 %v481
        %v1624 = vunpack.c.h.b16 %v481
        %v1625 = vunpack.c.l.b16 %v482
        %v1626 = vunpack.c.h.b16 %v482
        %v1627 = vunpack.c.l.b16 %v483
        %v1628 = vunpack.c.h.b16 %v483
        %v1629 = vunpack.c.l.b16 %v484
        %v1630 = vunpack.c.h.b16 %v484
        %v1631 = vunpack.c.l.b16 %v485
        %v1632 = vunpack.c.h.b16 %v485
        %v1633 = vunpack.c.l.b16 %v486
        %v1634 = vunpack.c.h.b16 %v486
        %v1635 = vunpack.c.l.b16 %v487
        %v1636 = vunpack.c.h.b16 %v487
        %v1637 = vunpack.c.l.b16 %v488
        %v1638 = vunpack.c.h.b16 %v488
        %v1639 = vunpack.c.l.b16 %v489
        %v1640 = vunpack.c.h.b16 %v489
        %v1641 = vunpack.c.l.b16 %v490
        %v1642 = vunpack.c.h.b16 %v490
        %v1643 = vunpack.c.l.b16 %v491
        %v1644 = vunpack.c.h.b16 %v491
        %v1645 = vunpack.c.l.b16 %v492
        %v1646 = vunpack.c.h.b16 %v492
        %v1647 = vunpack.c.l.b16 %v493
        %v1648 = vunpack.c.h.b16 %v493
        %v1649 = vunpack.c.l.b16 %v494
        %v1650 = vunpack.c.h.b16 %v494
        %v1651 = vunpack.c.l.b16 %v495
        %v1652 = vunpack.c.h.b16 %v495
        %v1653 = vunpack.c.l.b16 %v496
        %v1654 = vunpack.c.h.b16 %v496
        %v1655 = vunpack.c.l.b16 %v497
        %v1656 = vunpack.c.h.b16 %v497
        %v1657 = vunpack.c.l.b16 %v498
        %v1658 = vunpack.c.h.b16 %v498
        %v1659 = vunpack.c.l.b16 %v499
        %v1660 = vunpack.c.h.b16 %v499
        %v1661 = vunpack.c.l.b16 %v500
        %v1662 = vunpack.c.h.b16 %v500
        %v1663 = vunpack.c.l.b16 %v501
        %v1664 = vunpack.c.h.b16 %v501
        %v1665 = vunpack.c.l.b16 %v502
        %v1666 = vunpack.c.h.b16 %v502
        %v1667 = vunpack.c.l.b16 %v503
        %v1668 = vunpack.c.h.b16 %v503
        %v1669 = vunpack.c.l.b16 %v504
        %v1670 = vunpack.c.h.b16 %v504
        %v1671 = vunpack.c.l.b16 %v505
        %v1672 = vunpack.c.h.b16 %v505
        %v1673 = vunpack.c.l.b16 %v506
        %v1674 = vunpack.c.h.b16 %v506
        %v1675 = vunpack.c.l.b16 %v507
        %v1676 = vunpack.c.h.b16 %v507
        %v1677 = vunpack.c.l.b16 %v508
        %v1678 = vunpack.c.h.b16 %v508
        %v1679 = vunpack.c.l.b16 %v509
        %v1680 = vunpack.c.h.b16 %v509
        %v1681 = vunpack.c.l.b16 %v510
        %v1682 = vunpack.c.h.b16 %v510
        %v1683 = vunpack.c.l.b16 %v511
        %v1684 = vunpack.c.h.b16 %v511
        %v1685 = vunpack.c.l.b16 %v512
        %v1686 = vunpack.c.h.b16 %v512
        %v1687 = vunpack.c.l.b16 %v513
        %v1688 = vunpack.c.h.b16 %v513
        %v1689 = vunpack.c.l.b16 %v514
        %v1690 = vunpack.c.h.b16 %v514
        %v1691 = vunpack.c.l.b16 %v515
        %v1692 = vunpack.c.h.b16 %v515
        %v1693 = vunpack.c.l.b16 %v516
        %v1694 = vunpack.c.h.b16 %v516
        %v1695 = vunpack.c.l.b16 %v517
        %v1696 = vunpack.c.h.b16 %v517
        %v1697 = vunpack.c.l.b16 %v518
        %v1698 = vunpack.c.h.b16 %v518
        %v1699 = vunpack.c.l.b16 %v519
        %v1700 = vunpack.c.h.b16 %v519
        %v1701 = vunpack.c.l.b16 %v520
        %v1702 = vunpack.c.h.b16 %v520
        %v1703 = vunpack.c.l.b16 %v521
        %v1704 = vunpack.c.h.b16 %v521
        %v1705 = vunpack.c.l.b16 %v522
        %v1706 = vunpack.c.h.b16 %v522
        %v1707 = vunpack.c.l.b16 %v523
        %v1708 = vunpack.c.h.b16 %v523
        %v1709 = vunpack.c.l.b16 %v524
        %v1710 = vunpack.c.h.b16 %v524
        %v1711 = vunpack.c.l.b16 %v525
        %v1712 = vunpack.c.h.b16 %v525
        %v1713 = vunpack.c.l.b16 %v526
        %v1714 = vunpack.c.h.b16 %v526
        %v1715 = vunpack.c.l.b16 %v527
        %v1716 = vunpack.c.h.b16 %v527
        %v1717 = vunpack.c.l.b16 %v528
        %v1718 = vunpack.c.h.b16 %v528
        %v1719 = vunpack.c.l.b16 %v529
        %v1720 = vunpack.c.h.b16 %v529
        %v1721 = vunpack.c.l.b16 %v530
        %v1722 = vunpack.c.h.b16 %v530
        %v1723 = vunpack.c.l.b16 %v531
        %v1724 = vunpack.c.h.b16 %v531
        %v1725 = vunpack.c.l.b16 %v532
        %v1726 = vunpack.c.h.b16 %v532
        %v1727 = vunpack.c.l.b16 %v533
        %v1728 = vunpack.c.h.b16 %v533
        %v1729 = vunpack.c.l.b16 %v534
        %v1730 = vunpack.c.h.b16 %v534
        %v1731 = vunpack.c.l.b16 %v535
        %v1732 = vunpack.c.h.b16 %v535
        %v1733 = vunpack.c.l.b16 %v536
        %v1734 = vunpack.c.h.b16 %v536
        %v1735 = vunpack.c.l.b16 %v537
        %v1736 = vunpack.c.h.b16 %v537
        %v1737 = vunpack.c.l.b16 %v538
        %v1738 = vunpack.c.h.b16 %v538
        %v1739 = vunpack.c.l.b16 %v539
        %v1740 = vunpack.c.h.b16 %v539
        %v1741 = vunpack.c.l.b16 %v540
        %v1742 = vunpack.c.h.b16 %v540
        %v1743 = vunpack.c.l.b16 %v541
        %v1744 = vunpack.c.h.b16 %v541
        %v1745 = vunpack.c.l.b16 %v542
        %v1746 = vunpack.c.h.b16 %v542
        %v1747 = vunpack.c.l.b16 %v543
        %v1748 = vunpack.c.h.b16 %v543
        %v1749 = vunpack.c.l.b16 %v544
        %v1750 = vunpack.c.h.b16 %v544
        %v1751 = vunpack.c.l.b16 %v545
        %v1752 = vunpack.c.h.b16 %v545
        %v1753 = vunpack.c.l.b16 %v546
        %v1754 = vunpack.c.h.b16 %v546
        %v1755 = vunpack.c.l.b16 %v547
        %v1756 = vunpack.c.h.b16 %v547
        %v1757 = vunpack.c.l.b16 %v548
        %v1758 = vunpack.c.h.b16 %v548
        %v1759 = vunpack.c.l.b16 %v549
        %v1760 = vunpack.c.h.b16 %v549
        %v1761 = vunpack.c.l.b16 %v550
        %v1762 = vunpack.c.h.b16 %v550
        %v1763 = vunpack.c.l.b16 %v551
        %v1764 = vunpack.c.h.b16 %v551
        %v1765 = vunpack.c.l.b16 %v552
        %v1766 = vunpack.c.h.b16 %v552
        %v1767 = vunpack.c.l.b16 %v553
        %v1768 = vunpack.c.h.b16 %v553
        %v1769 = vunpack.c.l.b16 %v554
        %v1770 = vunpack.c.h.b16 %v554
        %v1771 = vunpack.c.l.b16 %v555
        %v1772 = vunpack.c.h.b16 %v555
        %v1773 = vunpack.c.l.b16 %v556
        %v1774 = vunpack.c.h.b16 %v556
        %v1775 = vunpack.c.l.b16 %v557
        %v1776 = vunpack.c.h.b16 %v557
        %v1777 = vunpack.c.l.b16 %v558
        %v1778 = vunpack.c.h.b16 %v558
        %v1779 = vunpack.c.l.b16 %v559
        %v1780 = vunpack.c.h.b16 %v559
        %v1781 = vunpack.c.l.b16 %v560
        %v1782 = vunpack.c.h.b16 %v560
        %v1783 = vunpack.c.l.b16 %v561
        %v1784 = vunpack.c.h.b16 %v561
        %v1785 = vunpack.c.l.b16 %v562
        %v1786 = vunpack.c.h.b16 %v562
        %v1787 = vunpack.c.l.b16 %v563
        %v1788 = vunpack.c.h.b16 %v563
        %v1789 = vunpack.c.l.b16 %v564
        %v1790 = vunpack.c.h.b16 %v564
        %v1791 = vunpack.c.l.b16 %v565
        %v1792 = vunpack.c.h.b16 %v565
        %v1793 = vunpack.c.l.b16 %v566
        %v1794 = vunpack.c.h.b16 %v566
        %v1795 = vunpack.c.l.b16 %v567
        %v1796 = vunpack.c.h.b16 %v567
        %v1797 = vunpack.c.l.b16 %v568
        %v1798 = vunpack.c.h.b16 %v568
        %v1799 = vunpack.c.l.b16 %v569
        %v1800 = vunpack.c.h.b16 %v569
        %v1801 = vunpack.c.l.b16 %v570
        %v1802 = vunpack.c.h.b16 %v570
        %v1803 = vunpack.c.l.b16 %v571
        %v1804 = vunpack.c.h.b16 %v571
        %v1805 = vunpack.c.l.b16 %v572
        %v1806 = vunpack.c.h.b16 %v572
        %v1807 = vunpack.c.l.b16 %v573
        %v1808 = vunpack.c.h.b16 %v573
        %v1809 = vunpack.c.l.b16 %v574
        %v1810 = vunpack.c.h.b16 %v574
        %v1811 = vunpack.c.l.b16 %v575
        %v1812 = vunpack.c.h.b16 %v575
        %v1813 = vunpack.c.l.b16 %v576
        %v1814 = vunpack.c.h.b16 %v576
        %v1815 = vunpack.c.l.b16 %v577
        %v1816 = vunpack.c.h.b16 %v577
        %v1817 = vunpack.c.l.b16 %v578
        %v1818 = vunpack.c.h.b16 %v578
        %v1819 = vunpack.c.l.b16 %v579
        %v1820 = vunpack.c.h.b16 %v579
        %v1821 = vunpack.c.l.b16 %v580
        %v1822 = vunpack.c.h.b16 %v580
        %v1823 = vunpack.c.l.b16 %v581
        %v1824 = vunpack.c.h.b16 %v581
        %v1825 = vunpack.c.l.b16 %v582
        %v1826 = vunpack.c.h.b16 %v582
        %v1827 = vunpack.c.l.b16 %v583
        %v1828 = vunpack.c.h.b16 %v583
        %v1829 = vunpack.c.l.b16 %v584
        %v1830 = vunpack.c.h.b16 %v584
        %v1831 = vunpack.c.l.b16 %v585
        %v1832 = vunpack.c.h.b16 %v585
        %v1833 = vunpack.c.l.b16 %v586
        %v1834 = vunpack.c.h.b16 %v586
        %v1835 = vunpack.c.l.b16 %v587
        %v1836 = vunpack.c.h.b16 %v587
        %v1837 = vunpack.c.l.b16 %v588
        %v1838 = vunpack.c.h.b16 %v588
        %v1839 = vunpack.c.l.b16 %v589
        %v1840 = vunpack.c.h.b16 %v589
        %v1841 = vunpack.c.l.b16 %v590
        %v1842 = vunpack.c.h.b16 %v590
        %v1843 = vunpack.c.l.b16 %v591
        %v1844 = vunpack.c.h.b16 %v591
        %v1845 = vunpack.c.l.b16 %v592
        %v1846 = vunpack.c.h.b16 %v592
        %v1847 = vunpack.c.l.b16 %v593
        %v1848 = vunpack.c.h.b16 %v593
        %v1849 = vunpack.c.l.b16 %v594
        %v1850 = vunpack.c.h.b16 %v594
        %v1851 = vunpack.c.l.b16 %v595
        %v1852 = vunpack.c.h.b16 %v595
        %v1853 = vunpack.c.l.b16 %v596
        %v1854 = vunpack.c.h.b16 %v596
        %v1855 = vunpack.c.l.b16 %v597
        %v1856 = vunpack.c.h.b16 %v597
        %v1857 = vunpack.c.l.b16 %v598
        %v1858 = vunpack.c.h.b16 %v598
        %v1859 = vunpack.c.l.b16 %v599
        %v1860 = vunpack.c.h.b16 %v599
        %v1861 = vunpack.c.l.b16 %v600
        %v1862 = vunpack.c.h.b16 %v600
        %v1863 = vunpack.c.l.b16 %v601
        %v1864 = vunpack.c.h.b16 %v601
        %v1865 = vunpack.c.l.b16 %v602
        %v1866 = vunpack.c.h.b16 %v602
        %v1867 = vunpack.c.l.b16 %v603
        %v1868 = vunpack.c.h.b16 %v603
        %v1869 = vunpack.c.l.b16 %v604
        %v1870 = vunpack.c.h.b16 %v604
        %v1871 = vunpack.c.l.b16 %v605
        %v1872 = vunpack.c.h.b16 %v605
        %v1873 = vunpack.c.l.b16 %v606
        %v1874 = vunpack.c.h.b16 %v606
        %v1875 = vunpack.c.l.b16 %v607
        %v1876 = vunpack.c.h.b16 %v607
        %v1877 = vunpack.c.l.b16 %v608
        %v1878 = vunpack.c.h.b16 %v608
        %v1879 = vunpack.c.l.b16 %v609
        %v1880 = vunpack.c.h.b16 %v609
        %v1881 = vunpack.c.l.b16 %v610
        %v1882 = vunpack.c.h.b16 %v610
        %v1883 = vunpack.c.l.b16 %v611
        %v1884 = vunpack.c.h.b16 %v611
        %v1885 = vunpack.c.l.b16 %v612
        %v1886 = vunpack.c.h.b16 %v612
        %v1887 = vunpack.c.l.b16 %v613
        %v1888 = vunpack.c.h.b16 %v613
        %v1889 = vunpack.c.l.b16 %v614
        %v1890 = vunpack.c.h.b16 %v614
        %v1891 = vunpack.c.l.b16 %v615
        %v1892 = vunpack.c.h.b16 %v615
        %v1893 = vunpack.c.l.b16 %v616
        %v1894 = vunpack.c.h.b16 %v616
        %v1895 = vunpack.c.l.b16 %v617
        %v1896 = vunpack.c.h.b16 %v617
        %v1897 = vunpack.c.l.b16 %v618
        %v1898 = vunpack.c.h.b16 %v618
        %v1899 = vunpack.c.l.b16 %v619
        %v1900 = vunpack.c.h.b16 %v619
        %v1901 = vunpack.c.l.b16 %v620
        %v1902 = vunpack.c.h.b16 %v620
        %v1903 = vunpack.c.l.b16 %v621
        %v1904 = vunpack.c.h.b16 %v621
        %v1905 = vunpack.c.l.b16 %v622
        %v1906 = vunpack.c.h.b16 %v622
        %v1907 = vunpack.c.l.b16 %v623
        %v1908 = vunpack.c.h.b16 %v623
        %v1909 = vunpack.c.l.b16 %v624
        %v1910 = vunpack.c.h.b16 %v624
        %v1911 = vunpack.c.l.b16 %v625
        %v1912 = vunpack.c.h.b16 %v625
        %v1913 = vunpack.c.l.b16 %v626
        %v1914 = vunpack.c.h.b16 %v626
        %v1915 = vunpack.c.l.b16 %v627
        %v1916 = vunpack.c.h.b16 %v627
        %v1917 = vunpack.c.l.b16 %v628
        %v1918 = vunpack.c.h.b16 %v628
        %v1919 = vunpack.c.l.b16 %v629
        %v1920 = vunpack.c.h.b16 %v629
        %v1921 = vunpack.c.l.b16 %v630
        %v1922 = vunpack.c.h.b16 %v630
        %v1923 = vunpack.c.l.b16 %v631
        %v1924 = vunpack.c.h.b16 %v631
        %v1925 = vunpack.c.l.b16 %v632
        %v1926 = vunpack.c.h.b16 %v632
        %v1927 = vunpack.c.l.b16 %v633
        %v1928 = vunpack.c.h.b16 %v633
        %v1929 = vunpack.c.l.b16 %v634
        %v1930 = vunpack.c.h.b16 %v634
        %v1931 = vunpack.c.l.b16 %v635
        %v1932 = vunpack.c.h.b16 %v635
        %v1933 = vunpack.c.l.b16 %v636
        %v1934 = vunpack.c.h.b16 %v636
        %v1935 = vunpack.c.l.b16 %v637
        %v1936 = vunpack.c.h.b16 %v637
        %v1937 = vunpack.c.l.b16 %v638
        %v1938 = vunpack.c.h.b16 %v638
        %v1939 = vunpack.c.l.b16 %v639
        %v1940 = vunpack.c.h.b16 %v639
        %v1941 = vunpack.c.l.b16 %v640
        %v1942 = vunpack.c.h.b16 %v640
        %v1943 = vunpack.c.l.b16 %v641
        %v1944 = vunpack.c.h.b16 %v641
        %v1945 = vunpack.c.l.b16 %v642
        %v1946 = vunpack.c.h.b16 %v642
        %v1947 = vunpack.c.l.b16 %v643
        %v1948 = vunpack.c.h.b16 %v643
        %v1949 = vunpack.c.l.b16 %v644
        %v1950 = vunpack.c.h.b16 %v644
        %v1951 = vunpack.c.l.b16 %v645
        %v1952 = vunpack.c.h.b16 %v645
        %v1953 = vunpack.c.l.b16 %v646
        %v1954 = vunpack.c.h.b16 %v646
        %v1955 = vunpack.c.l.b16 %v647
        %v1956 = vunpack.c.h.b16 %v647
        %v1957 = vunpack.c.l.b16 %v648
        %v1958 = vunpack.c.h.b16 %v648
        %v1959 = vunpack.c.l.b16 %v649
        %v1960 = vunpack.c.h.b16 %v649
        %v1961 = vunpack.c.l.b16 %v650
        %v1962 = vunpack.c.h.b16 %v650
        %v1963 = vunpack.c.l.b16 %v651
        %v1964 = vunpack.c.h.b16 %v651
        %v1965 = vunpack.c.l.b16 %v652
        %v1966 = vunpack.c.h.b16 %v652
        %v1967 = vunpack.c.l.b16 %v653
        %v1968 = vunpack.c.h.b16 %v653
        %v1969 = vunpack.c.l.b16 %v654
        %v1970 = vunpack.c.h.b16 %v654
        %v1971 = vunpack.c.l.b16 %v655
        %v1972 = vunpack.c.h.b16 %v655
        %v1973 = vunpack.c.l.b16 %v656
        %v1974 = vunpack.c.h.b16 %v656
        %v1975 = vunpack.c.l.b16 %v657
        %v1976 = vunpack.c.h.b16 %v657
        %v1977 = vunpack.c.l.b16 %v658
        %v1978 = vunpack.c.h.b16 %v658
        %v1979 = vunpack.c.l.b16 %v659
        %v1980 = vunpack.c.h.b16 %v659
        %v1981 = vunpack.c.l.b16 %v660
        %v1982 = vunpack.c.h.b16 %v660
        %v1983 = vunpack.c.l.b16 %v661
        %v1984 = vunpack.c.h.b16 %v661
        %v1985 = vunpack.c.l.b16 %v662
        %v1986 = vunpack.c.h.b16 %v662
        %v1987 = vunpack.c.l.b16 %v663
        %v1988 = vunpack.c.h.b16 %v663
        %v1989 = vunpack.c.l.b16 %v664
        %v1990 = vunpack.c.h.b16 %v664
        %v1991 = vunpack.c.l.b16 %v665
        %v1992 = vunpack.c.h.b16 %v665
        %v1993 = vunpack.c.l.b16 %v666
        %v1994 = vunpack.c.h.b16 %v666
        %v1995 = vunpack.c.l.b16 %v667
        %v1996 = vunpack.c.h.b16 %v667
        %v1997 = vunpack.c.l.b16 %v668
        %v1998 = vunpack.c.h.b16 %v668
        %v1999 = vunpack.c.l.b16 %v669
        %v2000 = vunpack.c.h.b16 %v669
        %v2001 = vunpack.c.l.b16 %v670
        %v2002 = vunpack.c.h.b16 %v670
        %v2003 = vunpack.c.l.b16 %v671
        %v2004 = vunpack.c.h.b16 %v671
        %v2005 = vunpack.c.l.b16 %v672
        %v2006 = vunpack.c.h.b16 %v672
        %v2007 = vunpack.c.l.b16 %v673
        %v2008 = vunpack.c.h.b16 %v673
        %v2009 = vunpack.c.l.b16 %v674
        %v2010 = vunpack.c.h.b16 %v674
        %v2011 = vunpack.c.l.b16 %v675
        %v2012 = vunpack.c.h.b16 %v675
        %v2013 = vunpack.c.l.b16 %v676
        %v2014 = vunpack.c.h.b16 %v676
        %v2015 = vunpack.c.l.b16 %v677
        %v2016 = vunpack.c.h.b16 %v677
        %v2017 = vunpack.c.l.b16 %v678
        %v2018 = vunpack.c.h.b16 %v678
        %v2019 = vunpack.c.l.b16 %v679
        %v2020 = vunpack.c.h.b16 %v679
        %v2021 = vunpack.c.l.b16 %v680
        %v2022 = vunpack.c.h.b16 %v680
        %v2023 = vunpack.c.l.b16 %v681
        %v2024 = vunpack.c.h.b16 %v681
        %v2025 = vunpack.c.l.b16 %v682
        %v2026 = vunpack.c.h.b16 %v682
        %v2027 = vunpack.c.l.b16 %v683
        %v2028 = vunpack.c.h.b16 %v683
        %v2029 = vunpack.c.l.b16 %v684
        %v2030 = vunpack.c.h.b16 %v684
        %v2031 = vunpack.c.l.b16 %v685
        %v2032 = vunpack.c.h.b16 %v685
        %v2033 = vunpack.c.l.b16 %v686
        %v2034 = vunpack.c.h.b16 %v686
        %v2035 = vunpack.c.l.b16 %v687
        %v2036 = vunpack.c.h.b16 %v687
        %v2037 = vunpack.c.l.b16 %v688
        %v2038 = vunpack.c.h.b16 %v688
        %v2039 = vunpack.c.l.b16 %v689
        %v2040 = vunpack.c.h.b16 %v689
        %v2041 = vunpack.c.l.b16 %v690
        %v2042 = vunpack.c.h.b16 %v690
        %v2043 = vunpack.c.l.b16 %v691
        %v2044 = vunpack.c.h.b16 %v691
        %v2045 = vunpack.c.l.b16 %v692
        %v2046 = vunpack.c.h.b16 %v692
        %v2047 = vunpack.c.l.b16 %v693
        %v2048 = vunpack.c.h.b16 %v693
        %v2049 = vunpack.c.l.b16 %v694
        %v2050 = vunpack.c.h.b16 %v694
        %v2051 = vunpack.c.l.b16 %v695
        %v2052 = vunpack.c.h.b16 %v695
        %v2053 = vunpack.c.l.b16 %v696
        %v2054 = vunpack.c.h.b16 %v696
        %v2055 = vunpack.c.l.b16 %v697
        %v2056 = vunpack.c.h.b16 %v697
        %v2057 = vunpack.c.l.b16 %v698
        %v2058 = vunpack.c.h.b16 %v698
        %v2059 = vunpack.c.l.b16 %v699
        %v2060 = vunpack.c.h.b16 %v699
        %v2061 = vunpack.c.l.b16 %v700
        %v2062 = vunpack.c.h.b16 %v700
        %v2063 = vunpack.c.l.b16 %v701
        %v2064 = vunpack.c.h.b16 %v701
        %v2065 = vunpack.c.l.b16 %v702
        %v2066 = vunpack.c.h.b16 %v702
        %v2067 = vunpack.c.l.b16 %v703
        %v2068 = vunpack.c.h.b16 %v703
        %v2069 = vunpack.c.l.b16 %v704
        %v2070 = vunpack.c.h.b16 %v704
        %v2071 = vunpack.c.l.b16 %v705
        %v2072 = vunpack.c.h.b16 %v705
        %v2073 = vunpack.c.l.b16 %v706
        %v2074 = vunpack.c.h.b16 %v706
        %v2075 = vunpack.c.l.b16 %v707
        %v2076 = vunpack.c.h.b16 %v707
        %v2077 = vunpack.c.l.b16 %v708
        %v2078 = vunpack.c.h.b16 %v708
        %v2079 = vunpack.c.l.b16 %v709
        %v2080 = vunpack.c.h.b16 %v709
        %v2081 = vunpack.c.l.b16 %v710
        %v2082 = vunpack.c.h.b16 %v710
        %v2083 = vunpack.c.l.b16 %v711
        %v2084 = vunpack.c.h.b16 %v711
        %v2085 = vunpack.c.l.b16 %v712
        %v2086 = vunpack.c.h.b16 %v712
        %v2087 = vunpack.c.l.b16 %v713
        %v2088 = vunpack.c.h.b16 %v713
        %v2089 = vunpack.c.l.b16 %v714
        %v2090 = vunpack.c.h.b16 %v714
        %v2091 = vunpack.c.l.b16 %v715
        %v2092 = vunpack.c.h.b16 %v715
        %v2093 = vunpack.c.l.b16 %v716
        %v2094 = vunpack.c.h.b16 %v716
        %v2095 = vunpack.c.l.b16 %v717
        %v2096 = vunpack.c.h.b16 %v717
        %v2097 = vunpack.c.l.b16 %v718
        %v2098 = vunpack.c.h.b16 %v718
        %v2099 = vunpack.c.l.b16 %v719
        %v2100 = vunpack.c.h.b16 %v719
        %v2101 = vunpack.c.l.b16 %v720
        %v2102 = vunpack.c.h.b16 %v720
        %v2103 = vunpack.c.l.b16 %v721
        %v2104 = vunpack.c.h.b16 %v721
        %v2105 = vunpack.c.l.b16 %v722
        %v2106 = vunpack.c.h.b16 %v722
        %v2107 = vunpack.c.l.b16 %v723
        %v2108 = vunpack.c.h.b16 %v723
        %v2109 = vunpack.c.l.b16 %v724
        %v2110 = vunpack.c.h.b16 %v724
        %v2111 = vunpack.c.l.b16 %v725
        %v2112 = vunpack.c.h.b16 %v725
        %v2113 = vunpack.c.l.b16 %v726
        %v2114 = vunpack.c.h.b16 %v726
        %v2115 = vunpack.c.l.b16 %v727
        %v2116 = vunpack.c.h.b16 %v727
        %v2117 = vunpack.c.l.b16 %v728
        %v2118 = vunpack.c.h.b16 %v728
        %v2119 = vunpack.c.l.b16 %v729
        %v2120 = vunpack.c.h.b16 %v729
        %v2121 = vunpack.c.l.b16 %v730
        %v2122 = vunpack.c.h.b16 %v730
        %v2123 = vunpack.c.l.b16 %v731
        %v2124 = vunpack.c.h.b16 %v731
        %v2125 = vunpack.c.l.b16 %v732
        %v2126 = vunpack.c.h.b16 %v732
        %v2127 = vunpack.c.l.b16 %v733
        %v2128 = vunpack.c.h.b16 %v733
        %v2129 = vunpack.c.l.b16 %v734
        %v2130 = vunpack.c.h.b16 %v734
        %v2131 = vunpack.c.l.b16 %v735
        %v2132 = vunpack.c.h.b16 %v735
        %v2133 = vunpack.c.l.b16 %v736
        %v2134 = vunpack.c.h.b16 %v736
        %v2135 = vunpack.c.l.b16 %v737
        %v2136 = vunpack.c.h.b16 %v737
        %v2137 = vunpack.c.l.b16 %v738
        %v2138 = vunpack.c.h.b16 %v738
        %v2139 = vunpack.c.l.b16 %v739
        %v2140 = vunpack.c.h.b16 %v739
        %v2141 = vunpack.c.l.b16 %v740
        %v2142 = vunpack.c.h.b16 %v740
        %v2143 = vunpack.c.l.b16 %v741
        %v2144 = vunpack.c.h.b16 %v741
        %v2145 = vunpack.c.l.b16 %v742
        %v2146 = vunpack.c.h.b16 %v742
        %v2147 = vunpack.c.l.b16 %v743
        %v2148 = vunpack.c.h.b16 %v743
        %v2149 = vunpack.c.l.b16 %v744
        %v2150 = vunpack.c.h.b16 %v744
        %v2151 = vunpack.c.l.b16 %v745
        %v2152 = vunpack.c.h.b16 %v745
        %v2153 = vunpack.c.l.b16 %v746
        %v2154 = vunpack.c.h.b16 %v746
        %v2155 = vunpack.c.l.b16 %v747
        %v2156 = vunpack.c.h.b16 %v747
        %v2157 = vunpack.c.l.b16 %v748
        %v2158 = vunpack.c.h.b16 %v748
        %v2159 = vunpack.c.l.b16 %v749
        %v2160 = vunpack.c.h.b16 %v749
        %v2161 = vunpack.c.l.b16 %v750
        %v2162 = vunpack.c.h.b16 %v750
        %v2163 = vunpack.c.l.b16 %v751
        %v2164 = vunpack.c.h.b16 %v751
        %v2165 = vunpack.c.l.b16 %v752
        %v2166 = vunpack.c.h.b16 %v752
        %v2167 = vunpack.c.l.b16 %v753
        %v2168 = vunpack.c.h.b16 %v753
        %v2169 = vunpack.c.l.b16 %v754
        %v2170 = vunpack.c.h.b16 %v754
        %v2171 = vunpack.c.l.b16 %v755
        %v2172 = vunpack.c.h.b16 %v755
        %v2173 = vunpack.c.l.b16 %v756
        %v2174 = vunpack.c.h.b16 %v756
        %v2175 = vunpack.c.l.b16 %v757
        %v2176 = vunpack.c.h.b16 %v757
        %v2177 = vunpack.c.l.b16 %v758
        %v2178 = vunpack.c.h.b16 %v758
        %v2179 = vunpack.c.l.b16 %v759
        %v2180 = vunpack.c.h.b16 %v759
        %v2181 = vunpack.c.l.b16 %v760
        %v2182 = vunpack.c.h.b16 %v760
        %v2183 = vunpack.c.l.b16 %v761
        %v2184 = vunpack.c.h.b16 %v761
        %v2185 = vunpack.c.l.b16 %v762
        %v2186 = vunpack.c.h.b16 %v762
        %v2187 = vunpack.c.l.b16 %v763
        %v2188 = vunpack.c.h.b16 %v763
        %v2189 = vunpack.c.l.b16 %v764
        %v2190 = vunpack.c.h.b16 %v764
        %v2191 = vunpack.c.l.b16 %v765
        %v2192 = vunpack.c.h.b16 %v765
        %v2193 = vunpack.c.l.b16 %v766
        %v2194 = vunpack.c.h.b16 %v766
        %v2195 = vunpack.c.l.b16 %v767
        %v2196 = vunpack.c.h.b16 %v767
        %v2197 = vunpack.c.l.b16 %v768
        %v2198 = vunpack.c.h.b16 %v768
        %v2199 = vunpack.c.l.b16 %v769
        %v2200 = vunpack.c.h.b16 %v769
        %v2201 = vunpack.c.l.b16 %v770
        %v2202 = vunpack.c.h.b16 %v770
        %v2203 = vunpack.c.l.b16 %v771
        %v2204 = vunpack.c.h.b16 %v771
        %v2205 = vunpack.c.l.b16 %v772
        %v2206 = vunpack.c.h.b16 %v772
        %v2207 = vunpack.c.l.b16 %v773
        %v2208 = vunpack.c.h.b16 %v773
        %v2209 = vunpack.c.l.b16 %v774
        %v2210 = vunpack.c.h.b16 %v774
        %v2211 = vunpack.c.l.b16 %v775
        %v2212 = vunpack.c.h.b16 %v775
        %v2213 = vunpack.c.l.b16 %v776
        %v2214 = vunpack.c.h.b16 %v776
        %v2215 = vunpack.c.l.b16 %v777
        %v2216 = vunpack.c.h.b16 %v777
        %v2217 = vunpack.c.l.b16 %v778
        %v2218 = vunpack.c.h.b16 %v778
        %v2219 = vunpack.c.l.b16 %v779
        %v2220 = vunpack.c.h.b16 %v779
        %v2221 = vunpack.c.l.b16 %v780
        %v2222 = vunpack.c.h.b16 %v780
        %v2223 = vunpack.c.l.b16 %v781
        %v2224 = vunpack.c.h.b16 %v781
        %v2225 = vunpack.c.l.b16 %v782
        %v2226 = vunpack.c.h.b16 %v782
        %v2227 = vunpack.c.l.b16 %v783
        %v2228 = vunpack.c.h.b16 %v783
        %v2229 = vunpack.c.l.b16 %v784
        %v2230 = vunpack.c.h.b16 %v784
        %v2231 = vunpack.c.l.b16 %v785
        %v2232 = vunpack.c.h.b16 %v785
        %v2233 = vunpack.c.l.b16 %v786
        %v2234 = vunpack.c.h.b16 %v786
        %v2235 = vunpack.c.l.b16 %v787
        %v2236 = vunpack.c.h.b16 %v787
        %v2237 = vunpack.c.l.b16 %v788
        %v2238 = vunpack.c.h.b16 %v788
        %v2239 = vunpack.c.l.b16 %v789
        %v2240 = vunpack.c.h.b16 %v789
        %v2241 = vunpack.c.l.b16 %v790
        %v2242 = vunpack.c.h.b16 %v790
        %v2243 = vunpack.c.l.b16 %v791
        %v2244 = vunpack.c.h.b16 %v791
        %v2245 = vunpack.c.l.b16 %v792
        %v2246 = vunpack.c.h.b16 %v792
        %v2247 = vunpack.c.l.b16 %v793
        %v2248 = vunpack.c.h.b16 %v793
        %v2249 = vunpack.c.l.b16 %v794
        %v2250 = vunpack.c.h.b16 %v794
        %v2251 = vunpack.c.l.b16 %v795
        %v2252 = vunpack.c.h.b16 %v795
        %v2253 = vunpack.c.l.b16 %v796
        %v2254 = vunpack.c.h.b16 %v796
        %v2255 = vunpack.c.l.b16 %v797
        %v2256 = vunpack.c.h.b16 %v797
        %v2257 = vunpack.c.l.b16 %v798
        %v2258 = vunpack.c.h.b16 %v798
        %v2259 = vunpack.c.l.b16 %v799
        %v2260 = vunpack.c.h.b16 %v799
        %v2261 = vunpack.c.l.b16 %v800
        %v2262 = vunpack.c.h.b16 %v800
        %v2263 = vunpack.c.l.b16 %v801
        %v2264 = vunpack.c.h.b16 %v801
        %v2265 = vunpack.c.l.b16 %v802
        %v2266 = vunpack.c.h.b16 %v802
        %v2267 = vunpack.c.l.b16 %v803
        %v2268 = vunpack.c.h.b16 %v803
        %v2269 = vunpack.c.l.b16 %v804
        %v2270 = vunpack.c.h.b16 %v804
        %v2271 = vunpack.c.l.b16 %v805
        %v2272 = vunpack.c.h.b16 %v805
        %v2273 = vunpack.c.l.b16 %v806
        %v2274 = vunpack.c.h.b16 %v806
        %v2275 = vunpack.c.l.b16 %v807
        %v2276 = vunpack.c.h.b16 %v807
        %v2277 = vunpack.c.l.b16 %v808
        %v2278 = vunpack.c.h.b16 %v808
        %v2279 = vunpack.c.l.b16 %v809
        %v2280 = vunpack.c.h.b16 %v809
        %v2281 = vunpack.c.l.b16 %v810
        %v2282 = vunpack.c.h.b16 %v810
        %v2283 = vunpack.c.l.b16 %v811
        %v2284 = vunpack.c.h.b16 %v811
        %v2285 = vunpack.c.l.b16 %v812
        %v2286 = vunpack.c.h.b16 %v812
        %v2287 = vunpack.c.l.b16 %v813
        %v2288 = vunpack.c.h.b16 %v813
        %v2289 = vunpack.c.l.b16 %v814
        %v2290 = vunpack.c.h.b16 %v814
        %v2291 = vunpack.c.l.b16 %v815
        %v2292 = vunpack.c.h.b16 %v815
        %v2293 = vunpack.c.l.b16 %v816
        %v2294 = vunpack.c.h.b16 %v816
        %v2295 = vunpack.c.l.b16 %v817
        %v2296 = vunpack.c.h.b16 %v817
        %v2297 = vunpack.c.l.b16 %v818
        %v2298 = vunpack.c.h.b16 %v818
        %v2299 = vunpack.c.l.b16 %v819
        %v2300 = vunpack.c.h.b16 %v819
        %v2301 = vunpack.c.l.b16 %v820
        %v2302 = vunpack.c.h.b16 %v820
        %v2303 = vunpack.c.l.b16 %v821
        %v2304 = vunpack.c.h.b16 %v821
        %v2305 = vunpack.c.l.b16 %v822
        %v2306 = vunpack.c.h.b16 %v822
        %v2307 = vunpack.c.l.b16 %v823
        %v2308 = vunpack.c.h.b16 %v823
        %v2309 = vunpack.c.l.b16 %v824
        %v2310 = vunpack.c.h.b16 %v824
        %v2311 = vunpack.c.l.b16 %v825
        %v2312 = vunpack.c.h.b16 %v825
        %v2313 = vunpack.c.l.b16 %v826
        %v2314 = vunpack.c.h.b16 %v826
        %v2315 = vunpack.c.l.b16 %v827
        %v2316 = vunpack.c.h.b16 %v827
        %v2317 = vunpack.c.l.b16 %v828
        %v2318 = vunpack.c.h.b16 %v828
        %v2319 = vunpack.c.l.b16 %v829
        %v2320 = vunpack.c.h.b16 %v829
        %v2321 = vunpack.c.l.b16 %v830
        %v2322 = vunpack.c.h.b16 %v830
        %v2323 = vunpack.c.l.b16 %v831
        %v2324 = vunpack.c.h.b16 %v831
        %v2325 = vunpack.c.l.b16 %v832
        %v2326 = vunpack.c.h.b16 %v832
        %v2327 = vunpack.c.l.b16 %v833
        %v2328 = vunpack.c.h.b16 %v833
        %v2329 = vunpack.c.l.b16 %v834
        %v2330 = vunpack.c.h.b16 %v834
        %v2331 = vunpack.c.l.b16 %v835
        %v2332 = vunpack.c.h.b16 %v835
        %v2333 = vunpack.c.l.b16 %v836
        %v2334 = vunpack.c.h.b16 %v836
        %v2335 = vunpack.c.l.b16 %v837
        %v2336 = vunpack.c.h.b16 %v837
        %v2337 = vunpack.c.l.b16 %v838
        %v2338 = vunpack.c.h.b16 %v838
        %v2339 = vunpack.c.l.b16 %v839
        %v2340 = vunpack.c.h.b16 %v839
        %v2341 = vunpack.c.l.b16 %v840
        %v2342 = vunpack.c.h.b16 %v840
        %v2343 = vunpack.c.l.b16 %v841
        %v2344 = vunpack.c.h.b16 %v841
        %v2345 = vunpack.c.l.b16 %v842
        %v2346 = vunpack.c.h.b16 %v842
        %v2347 = vunpack.c.l.b16 %v843
        %v2348 = vunpack.c.h.b16 %v843
        %v2349 = vunpack.c.l.b16 %v844
        %v2350 = vunpack.c.h.b16 %v844
        %v2351 = vunpack.c.l.b16 %v845
        %v2352 = vunpack.c.h.b16 %v845
        %v2353 = vunpack.c.l.b16 %v846
        %v2354 = vunpack.c.h.b16 %v846
        %v2355 = vunpack.c.l.b16 %v847
        %v2356 = vunpack.c.h.b16 %v847
        %v2357 = vunpack.c.l.b16 %v848
        %v2358 = vunpack.c.h.b16 %v848
        %v2359 = vunpack.c.l.b16 %v849
        %v2360 = vunpack.c.h.b16 %v849
        %v2361 = vunpack.c.l.b16 %v850
        %v2362 = vunpack.c.h.b16 %v850
        %v2363 = vunpack.c.l.b16 %v851
        %v2364 = vunpack.c.h.b16 %v851
        %v2365 = vunpack.c.l.b16 %v852
        %v2366 = vunpack.c.h.b16 %v852
        %v2367 = vunpack.c.l.b16 %v853
        %v2368 = vunpack.c.h.b16 %v853
        %v2369 = vunpack.c.l.b16 %v854
        %v2370 = vunpack.c.h.b16 %v854
        %v2371 = vunpack.c.l.b16 %v855
        %v2372 = vunpack.c.h.b16 %v855
        %v2373 = vunpack.c.l.b16 %v856
        %v2374 = vunpack.c.h.b16 %v856
        %v2375 = vunpack.c.l.b16 %v857
        %v2376 = vunpack.c.h.b16 %v857
        %v2377 = vunpack.c.l.b16 %v858
        %v2378 = vunpack.c.h.b16 %v858
        %v2379 = vunpack.c.l.b16 %v859
        %v2380 = vunpack.c.h.b16 %v859
        %v2381 = vunpack.c.l.b16 %v860
        %v2382 = vunpack.c.h.b16 %v860
        %v2383 = vunpack.c.l.b16 %v861
        %v2384 = vunpack.c.h.b16 %v861
        %v2385 = vunpack.c.l.b16 %v862
        %v2386 = vunpack.c.h.b16 %v862
        %v2387 = vunpack.c.l.b16 %v863
        %v2388 = vunpack.c.h.b16 %v863
        %v2389 = vunpack.c.l.b16 %v864
        %v2390 = vunpack.c.h.b16 %v864
        %v2391 = vunpack.c.l.b16 %v865
        %v2392 = vunpack.c.h.b16 %v865
        %v2393 = vunpack.c.l.b16 %v866
        %v2394 = vunpack.c.h.b16 %v866
        %v2395 = vunpack.c.l.b16 %v867
        %v2396 = vunpack.c.h.b16 %v867
        %v2397 = vunpack.c.l.b16 %v868
        %v2398 = vunpack.c.h.b16 %v868
        %v2399 = vunpack.c.l.b16 %v869
        %v2400 = vunpack.c.h.b16 %v869
        %v2401 = vunpack.c.l.b16 %v870
        %v2402 = vunpack.c.h.b16 %v870
        %v2403 = vunpack.c.l.b16 %v871
        %v2404 = vunpack.c.h.b16 %v871
        %v2405 = vunpack.c.l.b16 %v872
        %v2406 = vunpack.c.h.b16 %v872
        %v2407 = vunpack.c.l.b16 %v873
        %v2408 = vunpack.c.h.b16 %v873
        %v2409 = vunpack.c.l.b16 %v874
        %v2410 = vunpack.c.h.b16 %v874
        %v2411 = vpack.c.b16 %v1395, %v1387
        %v2412 = vpack.c.b16 %v1396, %v1388
        %v2413 = vpack.c.b16 %v1397, %v1389
        %v2414 = vpack.c.b16 %v1398, %v1390
        %v2415 = vpack.c.b16 %v1399, %v1391
        %v2416 = vpack.c.b16 %v1400, %v1392
        %v2417 = vpack.c.b16 %v1401, %v1393
        %v2418 = vpack.c.b16 %v1402, %v1394
        %v2419 = vpack.c.b16 %v1411, %v1403
        %v2420 = vpack.c.b16 %v1412, %v1404
        %v2421 = vpack.c.b16 %v1413, %v1405
        %v2422 = vpack.c.b16 %v1414, %v1406
        %v2423 = vpack.c.b16 %v1415, %v1407
        %v2424 = vpack.c.b16 %v1416, %v1408
        %v2425 = vpack.c.b16 %v1417, %v1409
        %v2426 = vpack.c.b16 %v1418, %v1410
        %v2427 = vpack.c.b16 %v1427, %v1419
        %v2428 = vpack.c.b16 %v1428, %v1420
        %v2429 = vpack.c.b16 %v1429, %v1421
        %v2430 = vpack.c.b16 %v1430, %v1422
        %v2431 = vpack.c.b16 %v1431, %v1423
        %v2432 = vpack.c.b16 %v1432, %v1424
        %v2433 = vpack.c.b16 %v1433, %v1425
        %v2434 = vpack.c.b16 %v1434, %v1426
        %v2435 = vpack.c.b16 %v1443, %v1435
        %v2436 = vpack.c.b16 %v1444, %v1436
        %v2437 = vpack.c.b16 %v1445, %v1437
        %v2438 = vpack.c.b16 %v1446, %v1438
        %v2439 = vpack.c.b16 %v1447, %v1439
        %v2440 = vpack.c.b16 %v1448, %v1440
        %v2441 = vpack.c.b16 %v1449, %v1441
        %v2442 = vpack.c.b16 %v1450, %v1442
        %v2443 = vpack.c.b16 %v1459, %v1451
        %v2444 = vpack.c.b16 %v1460, %v1452
        %v2445 = vpack.c.b16 %v1461, %v1453
        %v2446 = vpack.c.b16 %v1462, %v1454
        %v2447 = vpack.c.b16 %v1463, %v1455
        %v2448 = vpack.c.b16 %v1464, %v1456
        %v2449 = vpack.c.b16 %v1465, %v1457
        %v2450 = vpack.c.b16 %v1466, %v1458
        %v2451 = vpack.c.b16 %v1475, %v1467
        %v2452 = vpack.c.b16 %v1476, %v1468
        %v2453 = vpack.c.b16 %v1477, %v1469
        %v2454 = vpack.c.b16 %v1478, %v1470
        %v2455 = vpack.c.b16 %v1479, %v1471
        %v2456 = vpack.c.b16 %v1480, %v1472
        %v2457 = vpack.c.b16 %v1481, %v1473
        %v2458 = vpack.c.b16 %v1482, %v1474
        %v2459 = vpack.c.b16 %v1491, %v1483
        %v2460 = vpack.c.b16 %v1492, %v1484
        %v2461 = vpack.c.b16 %v1493, %v1485
        %v2462 = vpack.c.b16 %v1494, %v1486
        %v2463 = vpack.c.b16 %v1495, %v1487
        %v2464 = vpack.c.b16 %v1496, %v1488
        %v2465 = vpack.c.b16 %v1497, %v1489
        %v2466 = vpack.c.b16 %v1498, %v1490
        %v2467 = vpack.c.b16 %v1507, %v1499
        %v2468 = vpack.c.b16 %v1508, %v1500
        %v2469 = vpack.c.b16 %v1509, %v1501
        %v2470 = vpack.c.b16 %v1510, %v1502
        %v2471 = vpack.c.b16 %v1511, %v1503
        %v2472 = vpack.c.b16 %v1512, %v1504
        %v2473 = vpack.c.b16 %v1513, %v1505
        %v2474 = vpack.c.b16 %v1514, %v1506
        %v2475 = vpack.c.b16 %v1523, %v1515
        %v2476 = vpack.c.b16 %v1524, %v1516
        %v2477 = vpack.c.b16 %v1525, %v1517
        %v2478 = vpack.c.b16 %v1526, %v1518
        %v2479 = vpack.c.b16 %v1527, %v1519
        %v2480 = vpack.c.b16 %v1528, %v1520
        %v2481 = vpack.c.b16 %v1529, %v1521
        %v2482 = vpack.c.b16 %v1530, %v1522
        %v2483 = vpack.c.b16 %v1539, %v1531
        %v2484 = vpack.c.b16 %v1540, %v1532
        %v2485 = vpack.c.b16 %v1541, %v1533
        %v2486 = vpack.c.b16 %v1542, %v1534
        %v2487 = vpack.c.b16 %v1543, %v1535
        %v2488 = vpack.c.b16 %v1544, %v1536
        %v2489 = vpack.c.b16 %v1545, %v1537
        %v2490 = vpack.c.b16 %v1546, %v1538
        %v2491 = vpack.c.b16 %v1555, %v1547
        %v2492 = vpack.c.b16 %v1556, %v1548
        %v2493 = vpack.c.b16 %v1557, %v1549
        %v2494 = vpack.c.b16 %v1558, %v1550
        %v2495 = vpack.c.b16 %v1559, %v1551
        %v2496 = vpack.c.b16 %v1560, %v1552
        %v2497 = vpack.c.b16 %v1561, %v1553
        %v2498 = vpack.c.b16 %v1562, %v1554
        %v2499 = vpack.c.b16 %v1571, %v1563
        %v2500 = vpack.c.b16 %v1572, %v1564
        %v2501 = vpack.c.b16 %v1573, %v1565
        %v2502 = vpack.c.b16 %v1574, %v1566
        %v2503 = vpack.c.b16 %v1575, %v1567
        %v2504 = vpack.c.b16 %v1576, %v1568
        %v2505 = vpack.c.b16 %v1577, %v1569
        %v2506 = vpack.c.b16 %v1578, %v1570
        %v2507 = vpack.c.b16 %v1587, %v1579
        %v2508 = vpack.c.b16 %v1588, %v1580
        %v2509 = vpack.c.b16 %v1589, %v1581
        %v2510 = vpack.c.b16 %v1590, %v1582
        %v2511 = vpack.c.b16 %v1591, %v1583
        %v2512 = vpack.c.b16 %v1592, %v1584
        %v2513 = vpack.c.b16 %v1593, %v1585
        %v2514 = vpack.c.b16 %v1594, %v1586
        %v2515 = vpack.c.b16 %v1603, %v1595
        %v2516 = vpack.c.b16 %v1604, %v1596
        %v2517 = vpack.c.b16 %v1605, %v1597
        %v2518 = vpack.c.b16 %v1606, %v1598
        %v2519 = vpack.c.b16 %v1607, %v1599
        %v2520 = vpack.c.b16 %v1608, %v1600
        %v2521 = vpack.c.b16 %v1609, %v1601
        %v2522 = vpack.c.b16 %v1610, %v1602
        %v2523 = vpack.c.b16 %v1619, %v1611
        %v2524 = vpack.c.b16 %v1620, %v1612
        %v2525 = vpack.c.b16 %v1621, %v1613
        %v2526 = vpack.c.b16 %v1622, %v1614
        %v2527 = vpack.c.b16 %v1623, %v1615
        %v2528 = vpack.c.b16 %v1624, %v1616
        %v2529 = vpack.c.b16 %v1625, %v1617
        %v2530 = vpack.c.b16 %v1626, %v1618
        %v2531 = vpack.c.b16 %v1635, %v1627
        %v2532 = vpack.c.b16 %v1636, %v1628
        %v2533 = vpack.c.b16 %v1637, %v1629
        %v2534 = vpack.c.b16 %v1638, %v1630
        %v2535 = vpack.c.b16 %v1639, %v1631
        %v2536 = vpack.c.b16 %v1640, %v1632
        %v2537 = vpack.c.b16 %v1641, %v1633
        %v2538 = vpack.c.b16 %v1642, %v1634
        %v2539 = vpack.c.b16 %v1651, %v1643
        %v2540 = vpack.c.b16 %v1652, %v1644
        %v2541 = vpack.c.b16 %v1653, %v1645
        %v2542 = vpack.c.b16 %v1654, %v1646
        %v2543 = vpack.c.b16 %v1655, %v1647
        %v2544 = vpack.c.b16 %v1656, %v1648
        %v2545 = vpack.c.b16 %v1657, %v1649
        %v2546 = vpack.c.b16 %v1658, %v1650
        %v2547 = vpack.c.b16 %v1667, %v1659
        %v2548 = vpack.c.b16 %v1668, %v1660
        %v2549 = vpack.c.b16 %v1669, %v1661
        %v2550 = vpack.c.b16 %v1670, %v1662
        %v2551 = vpack.c.b16 %v1671, %v1663
        %v2552 = vpack.c.b16 %v1672, %v1664
        %v2553 = vpack.c.b16 %v1673, %v1665
        %v2554 = vpack.c.b16 %v1674, %v1666
        %v2555 = vpack.c.b16 %v1683, %v1675
        %v2556 = vpack.c.b16 %v1684, %v1676
        %v2557 = vpack.c.b16 %v1685, %v1677
        %v2558 = vpack.c.b16 %v1686, %v1678
        %v2559 = vpack.c.b16 %v1687, %v1679
        %v2560 = vpack.c.b16 %v1688, %v1680
        %v2561 = vpack.c.b16 %v1689, %v1681
        %v2562 = vpack.c.b16 %v1690, %v1682
        %v2563 = vpack.c.b16 %v1699, %v1691
        %v2564 = vpack.c.b16 %v1700, %v1692
        %v2565 = vpack.c.b16 %v1701, %v1693
        %v2566 = vpack.c.b16 %v1702, %v1694
        %v2567 = vpack.c.b16 %v1703, %v1695
        %v2568 = vpack.c.b16 %v1704, %v1696
        %v2569 = vpack.c.b16 %v1705, %v1697
        %v2570 = vpack.c.b16 %v1706, %v1698
        %v2571 = vpack.c.b16 %v1715, %v1707
        %v2572 = vpack.c.b16 %v1716, %v1708
        %v2573 = vpack.c.b16 %v1717, %v1709
        %v2574 = vpack.c.b16 %v1718, %v1710
        %v2575 = vpack.c.b16 %v1719, %v1711
        %v2576 = vpack.c.b16 %v1720, %v1712
        %v2577 = vpack.c.b16 %v1721, %v1713
        %v2578 = vpack.c.b16 %v1722, %v1714
        %v2579 = vpack.c.b16 %v1731, %v1723
        %v2580 = vpack.c.b16 %v1732, %v1724
        %v2581 = vpack.c.b16 %v1733, %v1725
        %v2582 = vpack.c.b16 %v1734, %v1726
        %v2583 = vpack.c.b16 %v1735, %v1727
        %v2584 = vpack.c.b16 %v1736, %v1728
        %v2585 = vpack.c.b16 %v1737, %v1729
        %v2586 = vpack.c.b16 %v1738, %v1730
        %v2587 = vpack.c.b16 %v1747, %v1739
        %v2588 = vpack.c.b16 %v1748, %v1740
        %v2589 = vpack.c.b16 %v1749, %v1741
        %v2590 = vpack.c.b16 %v1750, %v1742
        %v2591 = vpack.c.b16 %v1751, %v1743
        %v2592 = vpack.c.b16 %v1752, %v1744
        %v2593 = vpack.c.b16 %v1753, %v1745
        %v2594 = vpack.c.b16 %v1754, %v1746
        %v2595 = vpack.c.b16 %v1763, %v1755
        %v2596 = vpack.c.b16 %v1764, %v1756
        %v2597 = vpack.c.b16 %v1765, %v1757
        %v2598 = vpack.c.b16 %v1766, %v1758
        %v2599 = vpack.c.b16 %v1767, %v1759
        %v2600 = vpack.c.b16 %v1768, %v1760
        %v2601 = vpack.c.b16 %v1769, %v1761
        %v2602 = vpack.c.b16 %v1770, %v1762
        %v2603 = vpack.c.b16 %v1779, %v1771
        %v2604 = vpack.c.b16 %v1780, %v1772
        %v2605 = vpack.c.b16 %v1781, %v1773
        %v2606 = vpack.c.b16 %v1782, %v1774
        %v2607 = vpack.c.b16 %v1783, %v1775
        %v2608 = vpack.c.b16 %v1784, %v1776
        %v2609 = vpack.c.b16 %v1785, %v1777
        %v2610 = vpack.c.b16 %v1786, %v1778
        %v2611 = vpack.c.b16 %v1795, %v1787
        %v2612 = vpack.c.b16 %v1796, %v1788
        %v2613 = vpack.c.b16 %v1797, %v1789
        %v2614 = vpack.c.b16 %v1798, %v1790
        %v2615 = vpack.c.b16 %v1799, %v1791
        %v2616 = vpack.c.b16 %v1800, %v1792
        %v2617 = vpack.c.b16 %v1801, %v1793
        %v2618 = vpack.c.b16 %v1802, %v1794
        %v2619 = vpack.c.b16 %v1811, %v1803
        %v2620 = vpack.c.b16 %v1812, %v1804
        %v2621 = vpack.c.b16 %v1813, %v1805
        %v2622 = vpack.c.b16 %v1814, %v1806
        %v2623 = vpack.c.b16 %v1815, %v1807
        %v2624 = vpack.c.b16 %v1816, %v1808
        %v2625 = vpack.c.b16 %v1817, %v1809
        %v2626 = vpack.c.b16 %v1818, %v1810
        %v2627 = vpack.c.b16 %v1827, %v1819
        %v2628 = vpack.c.b16 %v1828, %v1820
        %v2629 = vpack.c.b16 %v1829, %v1821
        %v2630 = vpack.c.b16 %v1830, %v1822
        %v2631 = vpack.c.b16 %v1831, %v1823
        %v2632 = vpack.c.b16 %v1832, %v1824
        %v2633 = vpack.c.b16 %v1833, %v1825
        %v2634 = vpack.c.b16 %v1834, %v1826
        %v2635 = vpack.c.b16 %v1843, %v1835
        %v2636 = vpack.c.b16 %v1844, %v1836
        %v2637 = vpack.c.b16 %v1845, %v1837
        %v2638 = vpack.c.b16 %v1846, %v1838
        %v2639 = vpack.c.b16 %v1847, %v1839
        %v2640 = vpack.c.b16 %v1848, %v1840
        %v2641 = vpack.c.b16 %v1849, %v1841
        %v2642 = vpack.c.b16 %v1850, %v1842
        %v2643 = vpack.c.b16 %v1859, %v1851
        %v2644 = vpack.c.b16 %v1860, %v1852
        %v2645 = vpack.c.b16 %v1861, %v1853
        %v2646 = vpack.c.b16 %v1862, %v1854
        %v2647 = vpack.c.b16 %v1863, %v1855
        %v2648 = vpack.c.b16 %v1864, %v1856
        %v2649 = vpack.c.b16 %v1865, %v1857
        %v2650 = vpack.c.b16 %v1866, %v1858
        %v2651 = vpack.c.b16 %v1875, %v1867
        %v2652 = vpack.c.b16 %v1876, %v1868
        %v2653 = vpack.c.b16 %v1877, %v1869
        %v2654 = vpack.c.b16 %v1878, %v1870
        %v2655 = vpack.c.b16 %v1879, %v1871
        %v2656 = vpack.c.b16 %v1880, %v1872
        %v2657 = vpack.c.b16 %v1881, %v1873
        %v2658 = vpack.c.b16 %v1882, %v1874
        %v2659 = vpack.c.b16 %v1891, %v1883
        %v2660 = vpack.c.b16 %v1892, %v1884
        %v2661 = vpack.c.b16 %v1893, %v1885
        %v2662 = vpack.c.b16 %v1894, %v1886
        %v2663 = vpack.c.b16 %v1895, %v1887
        %v2664 = vpack.c.b16 %v1896, %v1888
        %v2665 = vpack.c.b16 %v1897, %v1889
        %v2666 = vpack.c.b16 %v1898, %v1890
        %v2667 = vpack.c.b16 %v1907, %v1899
        %v2668 = vpack.c.b16 %v1908, %v1900
        %v2669 = vpack.c.b16 %v1909, %v1901
        %v2670 = vpack.c.b16 %v1910, %v1902
        %v2671 = vpack.c.b16 %v1911, %v1903
        %v2672 = vpack.c.b16 %v1912, %v1904
        %v2673 = vpack.c.b16 %v1913, %v1905
        %v2674 = vpack.c.b16 %v1914, %v1906
        %v2675 = vpack.c.b16 %v1923, %v1915
        %v2676 = vpack.c.b16 %v1924, %v1916
        %v2677 = vpack.c.b16 %v1925, %v1917
        %v2678 = vpack.c.b16 %v1926, %v1918
        %v2679 = vpack.c.b16 %v1927, %v1919
        %v2680 = vpack.c.b16 %v1928, %v1920
        %v2681 = vpack.c.b16 %v1929, %v1921
        %v2682 = vpack.c.b16 %v1930, %v1922
        %v2683 = vpack.c.b16 %v1939, %v1931
        %v2684 = vpack.c.b16 %v1940, %v1932
        %v2685 = vpack.c.b16 %v1941, %v1933
        %v2686 = vpack.c.b16 %v1942, %v1934
        %v2687 = vpack.c.b16 %v1943, %v1935
        %v2688 = vpack.c.b16 %v1944, %v1936
        %v2689 = vpack.c.b16 %v1945, %v1937
        %v2690 = vpack.c.b16 %v1946, %v1938
        %v2691 = vpack.c.b16 %v1955, %v1947
        %v2692 = vpack.c.b16 %v1956, %v1948
        %v2693 = vpack.c.b16 %v1957, %v1949
        %v2694 = vpack.c.b16 %v1958, %v1950
        %v2695 = vpack.c.b16 %v1959, %v1951
        %v2696 = vpack.c.b16 %v1960, %v1952
        %v2697 = vpack.c.b16 %v1961, %v1953
        %v2698 = vpack.c.b16 %v1962, %v1954
        %v2699 = vpack.c.b16 %v1971, %v1963
        %v2700 = vpack.c.b16 %v1972, %v1964
        %v2701 = vpack.c.b16 %v1973, %v1965
        %v2702 = vpack.c.b16 %v1974, %v1966
        %v2703 = vpack.c.b16 %v1975, %v1967
        %v2704 = vpack.c.b16 %v1976, %v1968
        %v2705 = vpack.c.b16 %v1977, %v1969
        %v2706 = vpack.c.b16 %v1978, %v1970
        %v2707 = vpack.c.b16 %v1987, %v1979
        %v2708 = vpack.c.b16 %v1988, %v1980
        %v2709 = vpack.c.b16 %v1989, %v1981
        %v2710 = vpack.c.b16 %v1990, %v1982
        %v2711 = vpack.c.b16 %v1991, %v1983
        %v2712 = vpack.c.b16 %v1992, %v1984
        %v2713 = vpack.c.b16 %v1993, %v1985
        %v2714 = vpack.c.b16 %v1994, %v1986
        %v2715 = vpack.c.b16 %v2003, %v1995
        %v2716 = vpack.c.b16 %v2004, %v1996
        %v2717 = vpack.c.b16 %v2005, %v1997
        %v2718 = vpack.c.b16 %v2006, %v1998
        %v2719 = vpack.c.b16 %v2007, %v1999
        %v2720 = vpack.c.b16 %v2008, %v2000
        %v2721 = vpack.c.b16 %v2009, %v2001
        %v2722 = vpack.c.b16 %v2010, %v2002
        %v2723 = vpack.c.b16 %v2019, %v2011
        %v2724 = vpack.c.b16 %v2020, %v2012
        %v2725 = vpack.c.b16 %v2021, %v2013
        %v2726 = vpack.c.b16 %v2022, %v2014
        %v2727 = vpack.c.b16 %v2023, %v2015
        %v2728 = vpack.c.b16 %v2024, %v2016
        %v2729 = vpack.c.b16 %v2025, %v2017
        %v2730 = vpack.c.b16 %v2026, %v2018
        %v2731 = vpack.c.b16 %v2035, %v2027
        %v2732 = vpack.c.b16 %v2036, %v2028
        %v2733 = vpack.c.b16 %v2037, %v2029
        %v2734 = vpack.c.b16 %v2038, %v2030
        %v2735 = vpack.c.b16 %v2039, %v2031
        %v2736 = vpack.c.b16 %v2040, %v2032
        %v2737 = vpack.c.b16 %v2041, %v2033
        %v2738 = vpack.c.b16 %v2042, %v2034
        %v2739 = vpack.c.b16 %v2051, %v2043
        %v2740 = vpack.c.b16 %v2052, %v2044
        %v2741 = vpack.c.b16 %v2053, %v2045
        %v2742 = vpack.c.b16 %v2054, %v2046
        %v2743 = vpack.c.b16 %v2055, %v2047
        %v2744 = vpack.c.b16 %v2056, %v2048
        %v2745 = vpack.c.b16 %v2057, %v2049
        %v2746 = vpack.c.b16 %v2058, %v2050
        %v2747 = vpack.c.b16 %v2067, %v2059
        %v2748 = vpack.c.b16 %v2068, %v2060
        %v2749 = vpack.c.b16 %v2069, %v2061
        %v2750 = vpack.c.b16 %v2070, %v2062
        %v2751 = vpack.c.b16 %v2071, %v2063
        %v2752 = vpack.c.b16 %v2072, %v2064
        %v2753 = vpack.c.b16 %v2073, %v2065
        %v2754 = vpack.c.b16 %v2074, %v2066
        %v2755 = vpack.c.b16 %v2083, %v2075
        %v2756 = vpack.c.b16 %v2084, %v2076
        %v2757 = vpack.c.b16 %v2085, %v2077
        %v2758 = vpack.c.b16 %v2086, %v2078
        %v2759 = vpack.c.b16 %v2087, %v2079
        %v2760 = vpack.c.b16 %v2088, %v2080
        %v2761 = vpack.c.b16 %v2089, %v2081
        %v2762 = vpack.c.b16 %v2090, %v2082
        %v2763 = vpack.c.b16 %v2099, %v2091
        %v2764 = vpack.c.b16 %v2100, %v2092
        %v2765 = vpack.c.b16 %v2101, %v2093
        %v2766 = vpack.c.b16 %v2102, %v2094
        %v2767 = vpack.c.b16 %v2103, %v2095
        %v2768 = vpack.c.b16 %v2104, %v2096
        %v2769 = vpack.c.b16 %v2105, %v2097
        %v2770 = vpack.c.b16 %v2106, %v2098
        %v2771 = vpack.c.b16 %v2115, %v2107
        %v2772 = vpack.c.b16 %v2116, %v2108
        %v2773 = vpack.c.b16 %v2117, %v2109
        %v2774 = vpack.c.b16 %v2118, %v2110
        %v2775 = vpack.c.b16 %v2119, %v2111
        %v2776 = vpack.c.b16 %v2120, %v2112
        %v2777 = vpack.c.b16 %v2121, %v2113
        %v2778 = vpack.c.b16 %v2122, %v2114
        %v2779 = vpack.c.b16 %v2131, %v2123
        %v2780 = vpack.c.b16 %v2132, %v2124
        %v2781 = vpack.c.b16 %v2133, %v2125
        %v2782 = vpack.c.b16 %v2134, %v2126
        %v2783 = vpack.c.b16 %v2135, %v2127
        %v2784 = vpack.c.b16 %v2136, %v2128
        %v2785 = vpack.c.b16 %v2137, %v2129
        %v2786 = vpack.c.b16 %v2138, %v2130
        %v2787 = vpack.c.b16 %v2147, %v2139
        %v2788 = vpack.c.b16 %v2148, %v2140
        %v2789 = vpack.c.b16 %v2149, %v2141
        %v2790 = vpack.c.b16 %v2150, %v2142
        %v2791 = vpack.c.b16 %v2151, %v2143
        %v2792 = vpack.c.b16 %v2152, %v2144
        %v2793 = vpack.c.b16 %v2153, %v2145
        %v2794 = vpack.c.b16 %v2154, %v2146
        %v2795 = vpack.c.b16 %v2163, %v2155
        %v2796 = vpack.c.b16 %v2164, %v2156
        %v2797 = vpack.c.b16 %v2165, %v2157
        %v2798 = vpack.c.b16 %v2166, %v2158
        %v2799 = vpack.c.b16 %v2167, %v2159
        %v2800 = vpack.c.b16 %v2168, %v2160
        %v2801 = vpack.c.b16 %v2169, %v2161
        %v2802 = vpack.c.b16 %v2170, %v2162
        %v2803 = vpack.c.b16 %v2179, %v2171
        %v2804 = vpack.c.b16 %v2180, %v2172
        %v2805 = vpack.c.b16 %v2181, %v2173
        %v2806 = vpack.c.b16 %v2182, %v2174
        %v2807 = vpack.c.b16 %v2183, %v2175
        %v2808 = vpack.c.b16 %v2184, %v2176
        %v2809 = vpack.c.b16 %v2185, %v2177
        %v2810 = vpack.c.b16 %v2186, %v2178
        %v2811 = vpack.c.b16 %v2195, %v2187
        %v2812 = vpack.c.b16 %v2196, %v2188
        %v2813 = vpack.c.b16 %v2197, %v2189
        %v2814 = vpack.c.b16 %v2198, %v2190
        %v2815 = vpack.c.b16 %v2199, %v2191
        %v2816 = vpack.c.b16 %v2200, %v2192
        %v2817 = vpack.c.b16 %v2201, %v2193
        %v2818 = vpack.c.b16 %v2202, %v2194
        %v2819 = vpack.c.b16 %v2211, %v2203
        %v2820 = vpack.c.b16 %v2212, %v2204
        %v2821 = vpack.c.b16 %v2213, %v2205
        %v2822 = vpack.c.b16 %v2214, %v2206
        %v2823 = vpack.c.b16 %v2215, %v2207
        %v2824 = vpack.c.b16 %v2216, %v2208
        %v2825 = vpack.c.b16 %v2217, %v2209
        %v2826 = vpack.c.b16 %v2218, %v2210
        %v2827 = vpack.c.b16 %v2227, %v2219
        %v2828 = vpack.c.b16 %v2228, %v2220
        %v2829 = vpack.c.b16 %v2229, %v2221
        %v2830 = vpack.c.b16 %v2230, %v2222
        %v2831 = vpack.c.b16 %v2231, %v2223
        %v2832 = vpack.c.b16 %v2232, %v2224
        %v2833 = vpack.c.b16 %v2233, %v2225
        %v2834 = vpack.c.b16 %v2234, %v2226
        %v2835 = vpack.c.b16 %v2243, %v2235
        %v2836 = vpack.c.b16 %v2244, %v2236
        %v2837 = vpack.c.b16 %v2245, %v2237
        %v2838 = vpack.c.b16 %v2246, %v2238
        %v2839 = vpack.c.b16 %v2247, %v2239
        %v2840 = vpack.c.b16 %v2248, %v2240
        %v2841 = vpack.c.b16 %v2249, %v2241
        %v2842 = vpack.c.b16 %v2250, %v2242
        %v2843 = vpack.c.b16 %v2259, %v2251
        %v2844 = vpack.c.b16 %v2260, %v2252
        %v2845 = vpack.c.b16 %v2261, %v2253
        %v2846 = vpack.c.b16 %v2262, %v2254
        %v2847 = vpack.c.b16 %v2263, %v2255
        %v2848 = vpack.c.b16 %v2264, %v2256
        %v2849 = vpack.c.b16 %v2265, %v2257
        %v2850 = vpack.c.b16 %v2266, %v2258
        %v2851 = vpack.c.b16 %v2275, %v2267
        %v2852 = vpack.c.b16 %v2276, %v2268
        %v2853 = vpack.c.b16 %v2277, %v2269
        %v2854 = vpack.c.b16 %v2278, %v2270
        %v2855 = vpack.c.b16 %v2279, %v2271
        %v2856 = vpack.c.b16 %v2280, %v2272
        %v2857 = vpack.c.b16 %v2281, %v2273
        %v2858 = vpack.c.b16 %v2282, %v2274
        %v2859 = vpack.c.b16 %v2291, %v2283
        %v2860 = vpack.c.b16 %v2292, %v2284
        %v2861 = vpack.c.b16 %v2293, %v2285
        %v2862 = vpack.c.b16 %v2294, %v2286
        %v2863 = vpack.c.b16 %v2295, %v2287
        %v2864 = vpack.c.b16 %v2296, %v2288
        %v2865 = vpack.c.b16 %v2297, %v2289
        %v2866 = vpack.c.b16 %v2298, %v2290
        %v2867 = vpack.c.b16 %v2307, %v2299
        %v2868 = vpack.c.b16 %v2308, %v2300
        %v2869 = vpack.c.b16 %v2309, %v2301
        %v2870 = vpack.c.b16 %v2310, %v2302
        %v2871 = vpack.c.b16 %v2311, %v2303
        %v2872 = vpack.c.b16 %v2312, %v2304
        %v2873 = vpack.c.b16 %v2313, %v2305
        %v2874 = vpack.c.b16 %v2314, %v2306
        %v2875 = vpack.c.b16 %v2323, %v2315
        %v2876 = vpack.c.b16 %v2324, %v2316
        %v2877 = vpack.c.b16 %v2325, %v2317
        %v2878 = vpack.c.b16 %v2326, %v2318
        %v2879 = vpack.c.b16 %v2327, %v2319
        %v2880 = vpack.c.b16 %v2328, %v2320
        %v2881 = vpack.c.b16 %v2329, %v2321
        %v2882 = vpack.c.b16 %v2330, %v2322
        %v2883 = vpack.c.b16 %v2339, %v2331
        %v2884 = vpack.c.b16 %v2340, %v2332
        %v2885 = vpack.c.b16 %v2341, %v2333
        %v2886 = vpack.c.b16 %v2342, %v2334
        %v2887 = vpack.c.b16 %v2343, %v2335
        %v2888 = vpack.c.b16 %v2344, %v2336
        %v2889 = vpack.c.b16 %v2345, %v2337
        %v2890 = vpack.c.b16 %v2346, %v2338
        %v2891 = vpack.c.b16 %v2355, %v2347
        %v2892 = vpack.c.b16 %v2356, %v2348
        %v2893 = vpack.c.b16 %v2357, %v2349
        %v2894 = vpack.c.b16 %v2358, %v2350
        %v2895 = vpack.c.b16 %v2359, %v2351
        %v2896 = vpack.c.b16 %v2360, %v2352
        %v2897 = vpack.c.b16 %v2361, %v2353
        %v2898 = vpack.c.b16 %v2362, %v2354
        %v2899 = vpack.c.b16 %v2371, %v2363
        %v2900 = vpack.c.b16 %v2372, %v2364
        %v2901 = vpack.c.b16 %v2373, %v2365
        %v2902 = vpack.c.b16 %v2374, %v2366
        %v2903 = vpack.c.b16 %v2375, %v2367
        %v2904 = vpack.c.b16 %v2376, %v2368
        %v2905 = vpack.c.b16 %v2377, %v2369
        %v2906 = vpack.c.b16 %v2378, %v2370
        %v2907 = vpack.c.b16 %v2387, %v2379
        %v2908 = vpack.c.b16 %v2388, %v2380
        %v2909 = vpack.c.b16 %v2389, %v2381
        %v2910 = vpack.c.b16 %v2390, %v2382
        %v2911 = vpack.c.b16 %v2391, %v2383
        %v2912 = vpack.c.b16 %v2392, %v2384
        %v2913 = vpack.c.b16 %v2393, %v2385
        %v2914 = vpack.c.b16 %v2394, %v2386
        %v2915 = vpack.c.b16 %v2403, %v2395
        %v2916 = vpack.c.b16 %v2404, %v2396
        %v2917 = vpack.c.b16 %v2405, %v2397
        %v2918 = vpack.c.b16 %v2406, %v2398
        %v2919 = vpack.c.b16 %v2407, %v2399
        %v2920 = vpack.c.b16 %v2408, %v2400
        %v2921 = vpack.c.b16 %v2409, %v2401
        %v2922 = vpack.c.b16 %v2410, %v2402
        %3435 = vmatprep.subr.bf16.mxu0 %v2468
        %3436 = vmatpush1.bf16.msra.mxu0 %v2467
        %3437 = vmatprep.subr.bf16.mxu0 %v2460
        %3438 = vmatpush1.bf16.msra.mxu0 %v2459
        %3439 = vmatprep.subr.bf16.mxu0 %v2452
        %3440 = vmatpush1.bf16.msra.mxu0 %v2451
        %3441 = vmatprep.subr.bf16.mxu0 %v2444
        %3442 = vmatpush1.bf16.msra.mxu0 %v2443
        %3443 = vmatprep.subr.bf16.mxu0 %v2436
        %3444 = vmatpush1.bf16.msra.mxu0 %v2435
        %3445 = vmatprep.subr.bf16.mxu0 %v2428
        %3446 = vmatpush1.bf16.msra.mxu0 %v2427
        %3447 = vmatprep.subr.bf16.mxu0 %v2420
        %3448 = vmatpush1.bf16.msra.mxu0 %v2419
        %3449 = vmatprep.subr.bf16.mxu0 %v2412
        %3450 = vmatpush1.bf16.msra.mxu0 %v2411
        %3451 = vmatprep.subr.bf16.mxu0 %v2532
        %3452 = vmatpush2.bf16.msra.mxu0 %v2531
        %3453 = vmatprep.subr.bf16.mxu0 %v2524
        %3454 = vmatpush2.bf16.msra.mxu0 %v2523
        %3455 = vmatprep.subr.bf16.mxu0 %v2516
        %3456 = vmatpush2.bf16.msra.mxu0 %v2515
        %3457 = vmatprep.subr.bf16.mxu0 %v2508
        %3458 = vmatpush2.bf16.msra.mxu0 %v2507
        %3459 = vmatprep.subr.bf16.mxu0 %v2500
        %3460 = vmatpush2.bf16.msra.mxu0 %v2499
        %3461 = vmatprep.subr.bf16.mxu0 %v2492
        %3462 = vmatpush2.bf16.msra.mxu0 %v2491
        %3463 = vmatprep.subr.bf16.mxu0 %v2484
        %3464 = vmatpush2.bf16.msra.mxu0 %v2483
        %3465 = vmatprep.subr.bf16.mxu0 %v2476
        %3466 = vmatpush2.bf16.msra.mxu0 %v2475
        %3467 = vmatprep.mubr.bf16.mxu0 %v348
        %3468 = vmatmul.mubr.bf16.gmra.mxu0 %v347
        %v3469 = vpop.f32.mrf.mxu0
        %v3470 = vadd.f32 0.0, %v3469
        %v3471 = vpop.f32.mrf.mxu0
        %v3472 = vadd.f32 0.0, %v3471
        %v3473 = vpop.f32.mrf.mxu0
        %v3474 = vpop.f32.mrf.mxu0
        %3475 = vdwg.mxu0
        %3476 = vmatprep.subr.bf16.mxu0 %v2596
        %3477 = vmatpush1.bf16.msra.mxu0 %v2595
        %3478 = vmatprep.subr.bf16.mxu0 %v2588
        %3479 = vmatpush1.bf16.msra.mxu0 %v2587
        %3480 = vmatprep.subr.bf16.mxu0 %v2580
        %3481 = vmatpush1.bf16.msra.mxu0 %v2579
        %3482 = vmatprep.subr.bf16.mxu0 %v2572
        %3483 = vmatpush1.bf16.msra.mxu0 %v2571
        %3484 = vmatprep.subr.bf16.mxu0 %v2564
        %3485 = vmatpush1.bf16.msra.mxu0 %v2563
        %3486 = vmatprep.subr.bf16.mxu0 %v2556
        %3487 = vmatpush1.bf16.msra.mxu0 %v2555
        %3488 = vmatprep.subr.bf16.mxu0 %v2548
        %3489 = vmatpush1.bf16.msra.mxu0 %v2547
        %3490 = vmatprep.subr.bf16.mxu0 %v2540
        %3491 = vmatpush1.bf16.msra.mxu0 %v2539
        %3492 = vmatprep.subr.bf16.mxu0 %v2660
        %3493 = vmatpush2.bf16.msra.mxu0 %v2659
        %3494 = vmatprep.subr.bf16.mxu0 %v2652
        %3495 = vmatpush2.bf16.msra.mxu0 %v2651
        %3496 = vmatprep.subr.bf16.mxu0 %v2644
        %3497 = vmatpush2.bf16.msra.mxu0 %v2643
        %3498 = vmatprep.subr.bf16.mxu0 %v2636
        %3499 = vmatpush2.bf16.msra.mxu0 %v2635
        %3500 = vmatprep.subr.bf16.mxu0 %v2628
        %3501 = vmatpush2.bf16.msra.mxu0 %v2627
        %3502 = vmatprep.subr.bf16.mxu0 %v2620
        %3503 = vmatpush2.bf16.msra.mxu0 %v2619
        %3504 = vmatprep.subr.bf16.mxu0 %v2612
        %3505 = vmatpush2.bf16.msra.mxu0 %v2611
        %3506 = vmatprep.subr.bf16.mxu0 %v2604
        %3507 = vmatpush2.bf16.msra.mxu0 %v2603
        %3508 = vmatprep.mubr.bf16.mxu0 %v350
        %3509 = vmatmul.mubr.bf16.gmra.mxu0 %v349
        %v3510 = vpop.f32.mrf.mxu0
        %v3511 = vadd.f32 %v3470, %v3510
        %v3512 = vpop.f32.mrf.mxu0
        %v3513 = vadd.f32 %v3472, %v3512
        %v3514 = vpop.f32.mrf.mxu0
        %v3515 = vpop.f32.mrf.mxu0
        %3516 = vdwg.mxu0
        %3517 = vmatprep.subr.bf16.mxu0 %v2724
        %3518 = vmatpush1.bf16.msra.mxu0 %v2723
        %3519 = vmatprep.subr.bf16.mxu0 %v2716
        %3520 = vmatpush1.bf16.msra.mxu0 %v2715
        %3521 = vmatprep.subr.bf16.mxu0 %v2708
        %3522 = vmatpush1.bf16.msra.mxu0 %v2707
        %3523 = vmatprep.subr.bf16.mxu0 %v2700
        %3524 = vmatpush1.bf16.msra.mxu0 %v2699
        %3525 = vmatprep.subr.bf16.mxu0 %v2692
        %3526 = vmatpush1.bf16.msra.mxu0 %v2691
        %3527 = vmatprep.subr.bf16.mxu0 %v2684
        %3528 = vmatpush1.bf16.msra.mxu0 %v2683
        %3529 = vmatprep.subr.bf16.mxu0 %v2676
        %3530 = vmatpush1.bf16.msra.mxu0 %v2675
        %3531 = vmatprep.subr.bf16.mxu0 %v2668
        %3532 = vmatpush1.bf16.msra.mxu0 %v2667
        %3533 = vmatprep.subr.bf16.mxu0 %v2788
        %3534 = vmatpush2.bf16.msra.mxu0 %v2787
        %3535 = vmatprep.subr.bf16.mxu0 %v2780
        %3536 = vmatpush2.bf16.msra.mxu0 %v2779
        %3537 = vmatprep.subr.bf16.mxu0 %v2772
        %3538 = vmatpush2.bf16.msra.mxu0 %v2771
        %3539 = vmatprep.subr.bf16.mxu0 %v2764
        %3540 = vmatpush2.bf16.msra.mxu0 %v2763
        %3541 = vmatprep.subr.bf16.mxu0 %v2756
        %3542 = vmatpush2.bf16.msra.mxu0 %v2755
        %3543 = vmatprep.subr.bf16.mxu0 %v2748
        %3544 = vmatpush2.bf16.msra.mxu0 %v2747
        %3545 = vmatprep.subr.bf16.mxu0 %v2740
        %3546 = vmatpush2.bf16.msra.mxu0 %v2739
        %3547 = vmatprep.subr.bf16.mxu0 %v2732
        %3548 = vmatpush2.bf16.msra.mxu0 %v2731
        %3549 = vmatprep.mubr.bf16.mxu0 %v352
        %3550 = vmatmul.mubr.bf16.gmra.mxu0 %v351
        %v3551 = vpop.f32.mrf.mxu0
        %v3552 = vadd.f32 %v3511, %v3551
        %v3553 = vpop.f32.mrf.mxu0
        %v3554 = vadd.f32 %v3513, %v3553
        %v3555 = vpop.f32.mrf.mxu0
        %v3556 = vpop.f32.mrf.mxu0
        %3557 = vdwg.mxu0
        %3558 = vmatprep.subr.bf16.mxu0 %v2852
        %3559 = vmatpush1.bf16.msra.mxu0 %v2851
        %3560 = vmatprep.subr.bf16.mxu0 %v2844
        %3561 = vmatpush1.bf16.msra.mxu0 %v2843
        %3562 = vmatprep.subr.bf16.mxu0 %v2836
        %3563 = vmatpush1.bf16.msra.mxu0 %v2835
        %3564 = vmatprep.subr.bf16.mxu0 %v2828
        %3565 = vmatpush1.bf16.msra.mxu0 %v2827
        %3566 = vmatprep.subr.bf16.mxu0 %v2820
        %3567 = vmatpush1.bf16.msra.mxu0 %v2819
        %3568 = vmatprep.subr.bf16.mxu0 %v2812
        %3569 = vmatpush1.bf16.msra.mxu0 %v2811
        %3570 = vmatprep.subr.bf16.mxu0 %v2804
        %3571 = vmatpush1.bf16.msra.mxu0 %v2803
        %3572 = vmatprep.subr.bf16.mxu0 %v2796
        %3573 = vmatpush1.bf16.msra.mxu0 %v2795
        %3574 = vmatprep.subr.bf16.mxu0 %v2916
        %3575 = vmatpush2.bf16.msra.mxu0 %v2915
        %3576 = vmatprep.subr.bf16.mxu0 %v2908
        %3577 = vmatpush2.bf16.msra.mxu0 %v2907
        %3578 = vmatprep.subr.bf16.mxu0 %v2900
        %3579 = vmatpush2.bf16.msra.mxu0 %v2899
        %3580 = vmatprep.subr.bf16.mxu0 %v2892
        %3581 = vmatpush2.bf16.msra.mxu0 %v2891
        %3582 = vmatprep.subr.bf16.mxu0 %v2884
        %3583 = vmatpush2.bf16.msra.mxu0 %v2883
        %3584 = vmatprep.subr.bf16.mxu0 %v2876
        %3585 = vmatpush2.bf16.msra.mxu0 %v2875
        %3586 = vmatprep.subr.bf16.mxu0 %v2868
        %3587 = vmatpush2.bf16.msra.mxu0 %v2867
        %3588 = vmatprep.subr.bf16.mxu0 %v2860
        %3589 = vmatpush2.bf16.msra.mxu0 %v2859
        %3590 = vmatprep.mubr.bf16.mxu0 %v354
        %3591 = vmatmul.mubr.bf16.gmra.mxu0 %v353
        %v3592 = vpop.f32.mrf.mxu0
        %v3593 = vadd.f32 %v3552, %v3592
        %v3594 = vpop.f32.mrf.mxu0
        %v3595 = vadd.f32 %v3554, %v3594
        %v3596 = vpop.f32.mrf.mxu0
        %v3597 = vpop.f32.mrf.mxu0
        %3598 = vdwg.mxu0
        %3599 = vmatprep.subr.bf16.mxu0 %v2470
        %3600 = vmatpush1.bf16.msra.mxu0 %v2469
        %3601 = vmatprep.subr.bf16.mxu0 %v2462
        %3602 = vmatpush1.bf16.msra.mxu0 %v2461
        %3603 = vmatprep.subr.bf16.mxu0 %v2454
        %3604 = vmatpush1.bf16.msra.mxu0 %v2453
        %3605 = vmatprep.subr.bf16.mxu0 %v2446
        %3606 = vmatpush1.bf16.msra.mxu0 %v2445
        %3607 = vmatprep.subr.bf16.mxu0 %v2438
        %3608 = vmatpush1.bf16.msra.mxu0 %v2437
        %3609 = vmatprep.subr.bf16.mxu0 %v2430
        %3610 = vmatpush1.bf16.msra.mxu0 %v2429
        %3611 = vmatprep.subr.bf16.mxu0 %v2422
        %3612 = vmatpush1.bf16.msra.mxu0 %v2421
        %3613 = vmatprep.subr.bf16.mxu0 %v2414
        %3614 = vmatpush1.bf16.msra.mxu0 %v2413
        %3615 = vmatprep.subr.bf16.mxu0 %v2534
        %3616 = vmatpush2.bf16.msra.mxu0 %v2533
        %3617 = vmatprep.subr.bf16.mxu0 %v2526
        %3618 = vmatpush2.bf16.msra.mxu0 %v2525
        %3619 = vmatprep.subr.bf16.mxu0 %v2518
        %3620 = vmatpush2.bf16.msra.mxu0 %v2517
        %3621 = vmatprep.subr.bf16.mxu0 %v2510
        %3622 = vmatpush2.bf16.msra.mxu0 %v2509
        %3623 = vmatprep.subr.bf16.mxu0 %v2502
        %3624 = vmatpush2.bf16.msra.mxu0 %v2501
        %3625 = vmatprep.subr.bf16.mxu0 %v2494
        %3626 = vmatpush2.bf16.msra.mxu0 %v2493
        %3627 = vmatprep.subr.bf16.mxu0 %v2486
        %3628 = vmatpush2.bf16.msra.mxu0 %v2485
        %3629 = vmatprep.subr.bf16.mxu0 %v2478
        %3630 = vmatpush2.bf16.msra.mxu0 %v2477
        %3631 = vmatprep.mubr.bf16.mxu0 %v348
        %3632 = vmatmul.mubr.bf16.gmra.mxu0 %v347
        %v3633 = vpop.f32.mrf.mxu0
        %v3634 = vadd.f32 0.0, %v3633
        %v3635 = vpop.f32.mrf.mxu0
        %v3636 = vadd.f32 0.0, %v3635
        %v3637 = vpop.f32.mrf.mxu0
        %v3638 = vpop.f32.mrf.mxu0
        %3639 = vdwg.mxu0
        %3640 = vmatprep.subr.bf16.mxu0 %v2598
        %3641 = vmatpush1.bf16.msra.mxu0 %v2597
        %3642 = vmatprep.subr.bf16.mxu0 %v2590
        %3643 = vmatpush1.bf16.msra.mxu0 %v2589
        %3644 = vmatprep.subr.bf16.mxu0 %v2582
        %3645 = vmatpush1.bf16.msra.mxu0 %v2581
        %3646 = vmatprep.subr.bf16.mxu0 %v2574
        %3647 = vmatpush1.bf16.msra.mxu0 %v2573
        %3648 = vmatprep.subr.bf16.mxu0 %v2566
        %3649 = vmatpush1.bf16.msra.mxu0 %v2565
        %3650 = vmatprep.subr.bf16.mxu0 %v2558
        %3651 = vmatpush1.bf16.msra.mxu0 %v2557
        %3652 = vmatprep.subr.bf16.mxu0 %v2550
        %3653 = vmatpush1.bf16.msra.mxu0 %v2549
        %3654 = vmatprep.subr.bf16.mxu0 %v2542
        %3655 = vmatpush1.bf16.msra.mxu0 %v2541
        %3656 = vmatprep.subr.bf16.mxu0 %v2662
        %3657 = vmatpush2.bf16.msra.mxu0 %v2661
        %3658 = vmatprep.subr.bf16.mxu0 %v2654
        %3659 = vmatpush2.bf16.msra.mxu0 %v2653
        %3660 = vmatprep.subr.bf16.mxu0 %v2646
        %3661 = vmatpush2.bf16.msra.mxu0 %v2645
        %3662 = vmatprep.subr.bf16.mxu0 %v2638
        %3663 = vmatpush2.bf16.msra.mxu0 %v2637
        %3664 = vmatprep.subr.bf16.mxu0 %v2630
        %3665 = vmatpush2.bf16.msra.mxu0 %v2629
        %3666 = vmatprep.subr.bf16.mxu0 %v2622
        %3667 = vmatpush2.bf16.msra.mxu0 %v2621
        %3668 = vmatprep.subr.bf16.mxu0 %v2614
        %3669 = vmatpush2.bf16.msra.mxu0 %v2613
        %3670 = vmatprep.subr.bf16.mxu0 %v2606
        %3671 = vmatpush2.bf16.msra.mxu0 %v2605
        %3672 = vmatprep.mubr.bf16.mxu0 %v350
        %3673 = vmatmul.mubr.bf16.gmra.mxu0 %v349
        %v3674 = vpop.f32.mrf.mxu0
        %v3675 = vadd.f32 %v3634, %v3674
        %v3676 = vpop.f32.mrf.mxu0
        %v3677 = vadd.f32 %v3636, %v3676
        %v3678 = vpop.f32.mrf.mxu0
        %v3679 = vpop.f32.mrf.mxu0
        %3680 = vdwg.mxu0
        %3681 = vmatprep.subr.bf16.mxu0 %v2726
        %3682 = vmatpush1.bf16.msra.mxu0 %v2725
        %3683 = vmatprep.subr.bf16.mxu0 %v2718
        %3684 = vmatpush1.bf16.msra.mxu0 %v2717
        %3685 = vmatprep.subr.bf16.mxu0 %v2710
        %3686 = vmatpush1.bf16.msra.mxu0 %v2709
        %3687 = vmatprep.subr.bf16.mxu0 %v2702
        %3688 = vmatpush1.bf16.msra.mxu0 %v2701
        %3689 = vmatprep.subr.bf16.mxu0 %v2694
        %3690 = vmatpush1.bf16.msra.mxu0 %v2693
        %3691 = vmatprep.subr.bf16.mxu0 %v2686
        %3692 = vmatpush1.bf16.msra.mxu0 %v2685
        %3693 = vmatprep.subr.bf16.mxu0 %v2678
        %3694 = vmatpush1.bf16.msra.mxu0 %v2677
        %3695 = vmatprep.subr.bf16.mxu0 %v2670
        %3696 = vmatpush1.bf16.msra.mxu0 %v2669
        %3697 = vmatprep.subr.bf16.mxu0 %v2790
        %3698 = vmatpush2.bf16.msra.mxu0 %v2789
        %3699 = vmatprep.subr.bf16.mxu0 %v2782
        %3700 = vmatpush2.bf16.msra.mxu0 %v2781
        %3701 = vmatprep.subr.bf16.mxu0 %v2774
        %3702 = vmatpush2.bf16.msra.mxu0 %v2773
        %3703 = vmatprep.subr.bf16.mxu0 %v2766
        %3704 = vmatpush2.bf16.msra.mxu0 %v2765
        %3705 = vmatprep.subr.bf16.mxu0 %v2758
        %3706 = vmatpush2.bf16.msra.mxu0 %v2757
        %3707 = vmatprep.subr.bf16.mxu0 %v2750
        %3708 = vmatpush2.bf16.msra.mxu0 %v2749
        %3709 = vmatprep.subr.bf16.mxu0 %v2742
        %3710 = vmatpush2.bf16.msra.mxu0 %v2741
        %3711 = vmatprep.subr.bf16.mxu0 %v2734
        %3712 = vmatpush2.bf16.msra.mxu0 %v2733
        %3713 = vmatprep.mubr.bf16.mxu0 %v352
        %3714 = vmatmul.mubr.bf16.gmra.mxu0 %v351
        %v3715 = vpop.f32.mrf.mxu0
        %v3716 = vadd.f32 %v3675, %v3715
        %v3717 = vpop.f32.mrf.mxu0
        %v3718 = vadd.f32 %v3677, %v3717
        %v3719 = vpop.f32.mrf.mxu0
        %v3720 = vpop.f32.mrf.mxu0
        %3721 = vdwg.mxu0
        %3722 = vmatprep.subr.bf16.mxu0 %v2854
        %3723 = vmatpush1.bf16.msra.mxu0 %v2853
        %3724 = vmatprep.subr.bf16.mxu0 %v2846
        %3725 = vmatpush1.bf16.msra.mxu0 %v2845
        %3726 = vmatprep.subr.bf16.mxu0 %v2838
        %3727 = vmatpush1.bf16.msra.mxu0 %v2837
        %3728 = vmatprep.subr.bf16.mxu0 %v2830
        %3729 = vmatpush1.bf16.msra.mxu0 %v2829
        %3730 = vmatprep.subr.bf16.mxu0 %v2822
        %3731 = vmatpush1.bf16.msra.mxu0 %v2821
        %3732 = vmatprep.subr.bf16.mxu0 %v2814
        %3733 = vmatpush1.bf16.msra.mxu0 %v2813
        %3734 = vmatprep.subr.bf16.mxu0 %v2806
        %3735 = vmatpush1.bf16.msra.mxu0 %v2805
        %3736 = vmatprep.subr.bf16.mxu0 %v2798
        %3737 = vmatpush1.bf16.msra.mxu0 %v2797
        %3738 = vmatprep.subr.bf16.mxu0 %v2918
        %3739 = vmatpush2.bf16.msra.mxu0 %v2917
        %3740 = vmatprep.subr.bf16.mxu0 %v2910
        %3741 = vmatpush2.bf16.msra.mxu0 %v2909
        %3742 = vmatprep.subr.bf16.mxu0 %v2902
        %3743 = vmatpush2.bf16.msra.mxu0 %v2901
        %3744 = vmatprep.subr.bf16.mxu0 %v2894
        %3745 = vmatpush2.bf16.msra.mxu0 %v2893
        %3746 = vmatprep.subr.bf16.mxu0 %v2886
        %3747 = vmatpush2.bf16.msra.mxu0 %v2885
        %3748 = vmatprep.subr.bf16.mxu0 %v2878
        %3749 = vmatpush2.bf16.msra.mxu0 %v2877
        %3750 = vmatprep.subr.bf16.mxu0 %v2870
        %3751 = vmatpush2.bf16.msra.mxu0 %v2869
        %3752 = vmatprep.subr.bf16.mxu0 %v2862
        %3753 = vmatpush2.bf16.msra.mxu0 %v2861
        %3754 = vmatprep.mubr.bf16.mxu0 %v354
        %3755 = vmatmul.mubr.bf16.gmra.mxu0 %v353
        %v3756 = vpop.f32.mrf.mxu0
        %v3757 = vadd.f32 %v3716, %v3756
        %v3758 = vpop.f32.mrf.mxu0
        %v3759 = vadd.f32 %v3718, %v3758
        %v3760 = vpop.f32.mrf.mxu0
        %v3761 = vpop.f32.mrf.mxu0
        %3762 = vdwg.mxu0
        %3763 = vmatprep.subr.bf16.mxu0 %v2472
        %3764 = vmatpush1.bf16.msra.mxu0 %v2471
        %3765 = vmatprep.subr.bf16.mxu0 %v2464
        %3766 = vmatpush1.bf16.msra.mxu0 %v2463
        %3767 = vmatprep.subr.bf16.mxu0 %v2456
        %3768 = vmatpush1.bf16.msra.mxu0 %v2455
        %3769 = vmatprep.subr.bf16.mxu0 %v2448
        %3770 = vmatpush1.bf16.msra.mxu0 %v2447
        %3771 = vmatprep.subr.bf16.mxu0 %v2440
        %3772 = vmatpush1.bf16.msra.mxu0 %v2439
        %3773 = vmatprep.subr.bf16.mxu0 %v2432
        %3774 = vmatpush1.bf16.msra.mxu0 %v2431
        %3775 = vmatprep.subr.bf16.mxu0 %v2424
        %3776 = vmatpush1.bf16.msra.mxu0 %v2423
        %3777 = vmatprep.subr.bf16.mxu0 %v2416
        %3778 = vmatpush1.bf16.msra.mxu0 %v2415
        %3779 = vmatprep.subr.bf16.mxu0 %v2536
        %3780 = vmatpush2.bf16.msra.mxu0 %v2535
        %3781 = vmatprep.subr.bf16.mxu0 %v2528
        %3782 = vmatpush2.bf16.msra.mxu0 %v2527
        %3783 = vmatprep.subr.bf16.mxu0 %v2520
        %3784 = vmatpush2.bf16.msra.mxu0 %v2519
        %3785 = vmatprep.subr.bf16.mxu0 %v2512
        %3786 = vmatpush2.bf16.msra.mxu0 %v2511
        %3787 = vmatprep.subr.bf16.mxu0 %v2504
        %3788 = vmatpush2.bf16.msra.mxu0 %v2503
        %3789 = vmatprep.subr.bf16.mxu0 %v2496
        %3790 = vmatpush2.bf16.msra.mxu0 %v2495
        %3791 = vmatprep.subr.bf16.mxu0 %v2488
        %3792 = vmatpush2.bf16.msra.mxu0 %v2487
        %3793 = vmatprep.subr.bf16.mxu0 %v2480
        %3794 = vmatpush2.bf16.msra.mxu0 %v2479
        %3795 = vmatprep.mubr.bf16.mxu0 %v348
        %3796 = vmatmul.mubr.bf16.gmra.mxu0 %v347
        %v3797 = vpop.f32.mrf.mxu0
        %v3798 = vadd.f32 0.0, %v3797
        %v3799 = vpop.f32.mrf.mxu0
        %v3800 = vadd.f32 0.0, %v3799
        %v3801 = vpop.f32.mrf.mxu0
        %v3802 = vpop.f32.mrf.mxu0
        %3803 = vdwg.mxu0
        %3804 = vmatprep.subr.bf16.mxu0 %v2600
        %3805 = vmatpush1.bf16.msra.mxu0 %v2599
        %3806 = vmatprep.subr.bf16.mxu0 %v2592
        %3807 = vmatpush1.bf16.msra.mxu0 %v2591
        %3808 = vmatprep.subr.bf16.mxu0 %v2584
        %3809 = vmatpush1.bf16.msra.mxu0 %v2583
        %3810 = vmatprep.subr.bf16.mxu0 %v2576
        %3811 = vmatpush1.bf16.msra.mxu0 %v2575
        %3812 = vmatprep.subr.bf16.mxu0 %v2568
        %3813 = vmatpush1.bf16.msra.mxu0 %v2567
        %3814 = vmatprep.subr.bf16.mxu0 %v2560
        %3815 = vmatpush1.bf16.msra.mxu0 %v2559
        %3816 = vmatprep.subr.bf16.mxu0 %v2552
        %3817 = vmatpush1.bf16.msra.mxu0 %v2551
        %3818 = vmatprep.subr.bf16.mxu0 %v2544
        %3819 = vmatpush1.bf16.msra.mxu0 %v2543
        %3820 = vmatprep.subr.bf16.mxu0 %v2664
        %3821 = vmatpush2.bf16.msra.mxu0 %v2663
        %3822 = vmatprep.subr.bf16.mxu0 %v2656
        %3823 = vmatpush2.bf16.msra.mxu0 %v2655
        %3824 = vmatprep.subr.bf16.mxu0 %v2648
        %3825 = vmatpush2.bf16.msra.mxu0 %v2647
        %3826 = vmatprep.subr.bf16.mxu0 %v2640
        %3827 = vmatpush2.bf16.msra.mxu0 %v2639
        %3828 = vmatprep.subr.bf16.mxu0 %v2632
        %3829 = vmatpush2.bf16.msra.mxu0 %v2631
        %3830 = vmatprep.subr.bf16.mxu0 %v2624
        %3831 = vmatpush2.bf16.msra.mxu0 %v2623
        %3832 = vmatprep.subr.bf16.mxu0 %v2616
        %3833 = vmatpush2.bf16.msra.mxu0 %v2615
        %3834 = vmatprep.subr.bf16.mxu0 %v2608
        %3835 = vmatpush2.bf16.msra.mxu0 %v2607
        %3836 = vmatprep.mubr.bf16.mxu0 %v350
        %3837 = vmatmul.mubr.bf16.gmra.mxu0 %v349
        %v3838 = vpop.f32.mrf.mxu0
        %v3839 = vadd.f32 %v3798, %v3838
        %v3840 = vpop.f32.mrf.mxu0
        %v3841 = vadd.f32 %v3800, %v3840
        %v3842 = vpop.f32.mrf.mxu0
        %v3843 = vpop.f32.mrf.mxu0
        %3844 = vdwg.mxu0
        %3845 = vmatprep.subr.bf16.mxu0 %v2728
        %3846 = vmatpush1.bf16.msra.mxu0 %v2727
        %3847 = vmatprep.subr.bf16.mxu0 %v2720
        %3848 = vmatpush1.bf16.msra.mxu0 %v2719
        %3849 = vmatprep.subr.bf16.mxu0 %v2712
        %3850 = vmatpush1.bf16.msra.mxu0 %v2711
        %3851 = vmatprep.subr.bf16.mxu0 %v2704
        %3852 = vmatpush1.bf16.msra.mxu0 %v2703
        %3853 = vmatprep.subr.bf16.mxu0 %v2696
        %3854 = vmatpush1.bf16.msra.mxu0 %v2695
        %3855 = vmatprep.subr.bf16.mxu0 %v2688
        %3856 = vmatpush1.bf16.msra.mxu0 %v2687
        %3857 = vmatprep.subr.bf16.mxu0 %v2680
        %3858 = vmatpush1.bf16.msra.mxu0 %v2679
        %3859 = vmatprep.subr.bf16.mxu0 %v2672
        %3860 = vmatpush1.bf16.msra.mxu0 %v2671
        %3861 = vmatprep.subr.bf16.mxu0 %v2792
        %3862 = vmatpush2.bf16.msra.mxu0 %v2791
        %3863 = vmatprep.subr.bf16.mxu0 %v2784
        %3864 = vmatpush2.bf16.msra.mxu0 %v2783
        %3865 = vmatprep.subr.bf16.mxu0 %v2776
        %3866 = vmatpush2.bf16.msra.mxu0 %v2775
        %3867 = vmatprep.subr.bf16.mxu0 %v2768
        %3868 = vmatpush2.bf16.msra.mxu0 %v2767
        %3869 = vmatprep.subr.bf16.mxu0 %v2760
        %3870 = vmatpush2.bf16.msra.mxu0 %v2759
        %3871 = vmatprep.subr.bf16.mxu0 %v2752
        %3872 = vmatpush2.bf16.msra.mxu0 %v2751
        %3873 = vmatprep.subr.bf16.mxu0 %v2744
        %3874 = vmatpush2.bf16.msra.mxu0 %v2743
        %3875 = vmatprep.subr.bf16.mxu0 %v2736
        %3876 = vmatpush2.bf16.msra.mxu0 %v2735
        %3877 = vmatprep.mubr.bf16.mxu0 %v352
        %3878 = vmatmul.mubr.bf16.gmra.mxu0 %v351
        %v3879 = vpop.f32.mrf.mxu0
        %v3880 = vadd.f32 %v3839, %v3879
        %v3881 = vpop.f32.mrf.mxu0
        %v3882 = vadd.f32 %v3841, %v3881
        %v3883 = vpop.f32.mrf.mxu0
        %v3884 = vpop.f32.mrf.mxu0
        %3885 = vdwg.mxu0
        %3886 = vmatprep.subr.bf16.mxu0 %v2856
        %3887 = vmatpush1.bf16.msra.mxu0 %v2855
        %3888 = vmatprep.subr.bf16.mxu0 %v2848
        %3889 = vmatpush1.bf16.msra.mxu0 %v2847
        %3890 = vmatprep.subr.bf16.mxu0 %v2840
        %3891 = vmatpush1.bf16.msra.mxu0 %v2839
        %3892 = vmatprep.subr.bf16.mxu0 %v2832
        %3893 = vmatpush1.bf16.msra.mxu0 %v2831
        %3894 = vmatprep.subr.bf16.mxu0 %v2824
        %3895 = vmatpush1.bf16.msra.mxu0 %v2823
        %3896 = vmatprep.subr.bf16.mxu0 %v2816
        %3897 = vmatpush1.bf16.msra.mxu0 %v2815
        %3898 = vmatprep.subr.bf16.mxu0 %v2808
        %3899 = vmatpush1.bf16.msra.mxu0 %v2807
        %3900 = vmatprep.subr.bf16.mxu0 %v2800
        %3901 = vmatpush1.bf16.msra.mxu0 %v2799
        %3902 = vmatprep.subr.bf16.mxu0 %v2920
        %3903 = vmatpush2.bf16.msra.mxu0 %v2919
        %3904 = vmatprep.subr.bf16.mxu0 %v2912
        %3905 = vmatpush2.bf16.msra.mxu0 %v2911
        %3906 = vmatprep.subr.bf16.mxu0 %v2904
        %3907 = vmatpush2.bf16.msra.mxu0 %v2903
        %3908 = vmatprep.subr.bf16.mxu0 %v2896
        %3909 = vmatpush2.bf16.msra.mxu0 %v2895
        %3910 = vmatprep.subr.bf16.mxu0 %v2888
        %3911 = vmatpush2.bf16.msra.mxu0 %v2887
        %3912 = vmatprep.subr.bf16.mxu0 %v2880
        %3913 = vmatpush2.bf16.msra.mxu0 %v2879
        %3914 = vmatprep.subr.bf16.mxu0 %v2872
        %3915 = vmatpush2.bf16.msra.mxu0 %v2871
        %3916 = vmatprep.subr.bf16.mxu0 %v2864
        %3917 = vmatpush2.bf16.msra.mxu0 %v2863
        %3918 = vmatprep.mubr.bf16.mxu0 %v354
        %3919 = vmatmul.mubr.bf16.gmra.mxu0 %v353
        %v3920 = vpop.f32.mrf.mxu0
        %v3921 = vadd.f32 %v3880, %v3920
        %v3922 = vpop.f32.mrf.mxu0
        %v3923 = vadd.f32 %v3882, %v3922
        %v3924 = vpop.f32.mrf.mxu0
        %v3925 = vpop.f32.mrf.mxu0
        %3926 = vdwg.mxu0
        %3927 = vmatprep.subr.bf16.mxu0 %v2474
        %3928 = vmatpush1.bf16.msra.mxu0 %v2473
        %3929 = vmatprep.subr.bf16.mxu0 %v2466
        %3930 = vmatpush1.bf16.msra.mxu0 %v2465
        %3931 = vmatprep.subr.bf16.mxu0 %v2458
        %3932 = vmatpush1.bf16.msra.mxu0 %v2457
        %3933 = vmatprep.subr.bf16.mxu0 %v2450
        %3934 = vmatpush1.bf16.msra.mxu0 %v2449
        %3935 = vmatprep.subr.bf16.mxu0 %v2442
        %3936 = vmatpush1.bf16.msra.mxu0 %v2441
        %3937 = vmatprep.subr.bf16.mxu0 %v2434
        %3938 = vmatpush1.bf16.msra.mxu0 %v2433
        %3939 = vmatprep.subr.bf16.mxu0 %v2426
        %3940 = vmatpush1.bf16.msra.mxu0 %v2425
        %3941 = vmatprep.subr.bf16.mxu0 %v2418
        %3942 = vmatpush1.bf16.msra.mxu0 %v2417
        %3943 = vmatprep.subr.bf16.mxu0 %v2538
        %3944 = vmatpush2.bf16.msra.mxu0 %v2537
        %3945 = vmatprep.subr.bf16.mxu0 %v2530
        %3946 = vmatpush2.bf16.msra.mxu0 %v2529
        %3947 = vmatprep.subr.bf16.mxu0 %v2522
        %3948 = vmatpush2.bf16.msra.mxu0 %v2521
        %3949 = vmatprep.subr.bf16.mxu0 %v2514
        %3950 = vmatpush2.bf16.msra.mxu0 %v2513
        %3951 = vmatprep.subr.bf16.mxu0 %v2506
        %3952 = vmatpush2.bf16.msra.mxu0 %v2505
        %3953 = vmatprep.subr.bf16.mxu0 %v2498
        %3954 = vmatpush2.bf16.msra.mxu0 %v2497
        %3955 = vmatprep.subr.bf16.mxu0 %v2490
        %3956 = vmatpush2.bf16.msra.mxu0 %v2489
        %3957 = vmatprep.subr.bf16.mxu0 %v2482
        %3958 = vmatpush2.bf16.msra.mxu0 %v2481
        %3959 = vmatprep.mubr.bf16.mxu0 %v348
        %3960 = vmatmul.mubr.bf16.gmra.mxu0 %v347
        %v3961 = vpop.f32.mrf.mxu0
        %v3962 = vadd.f32 0.0, %v3961
        %v3963 = vpop.f32.mrf.mxu0
        %v3964 = vadd.f32 0.0, %v3963
        %v3965 = vpop.f32.mrf.mxu0
        %v3966 = vpop.f32.mrf.mxu0
        %3967 = vdwg.mxu0
        %3968 = vmatprep.subr.bf16.mxu0 %v2602
        %3969 = vmatpush1.bf16.msra.mxu0 %v2601
        %3970 = vmatprep.subr.bf16.mxu0 %v2594
        %3971 = vmatpush1.bf16.msra.mxu0 %v2593
        %3972 = vmatprep.subr.bf16.mxu0 %v2586
        %3973 = vmatpush1.bf16.msra.mxu0 %v2585
        %3974 = vmatprep.subr.bf16.mxu0 %v2578
        %3975 = vmatpush1.bf16.msra.mxu0 %v2577
        %3976 = vmatprep.subr.bf16.mxu0 %v2570
        %3977 = vmatpush1.bf16.msra.mxu0 %v2569
        %3978 = vmatprep.subr.bf16.mxu0 %v2562
        %3979 = vmatpush1.bf16.msra.mxu0 %v2561
        %3980 = vmatprep.subr.bf16.mxu0 %v2554
        %3981 = vmatpush1.bf16.msra.mxu0 %v2553
        %3982 = vmatprep.subr.bf16.mxu0 %v2546
        %3983 = vmatpush1.bf16.msra.mxu0 %v2545
        %3984 = vmatprep.subr.bf16.mxu0 %v2666
        %3985 = vmatpush2.bf16.msra.mxu0 %v2665
        %3986 = vmatprep.subr.bf16.mxu0 %v2658
        %3987 = vmatpush2.bf16.msra.mxu0 %v2657
        %3988 = vmatprep.subr.bf16.mxu0 %v2650
        %3989 = vmatpush2.bf16.msra.mxu0 %v2649
        %3990 = vmatprep.subr.bf16.mxu0 %v2642
        %3991 = vmatpush2.bf16.msra.mxu0 %v2641
        %3992 = vmatprep.subr.bf16.mxu0 %v2634
        %3993 = vmatpush2.bf16.msra.mxu0 %v2633
        %3994 = vmatprep.subr.bf16.mxu0 %v2626
        %3995 = vmatpush2.bf16.msra.mxu0 %v2625
        %3996 = vmatprep.subr.bf16.mxu0 %v2618
        %3997 = vmatpush2.bf16.msra.mxu0 %v2617
        %3998 = vmatprep.subr.bf16.mxu0 %v2610
        %3999 = vmatpush2.bf16.msra.mxu0 %v2609
        %4000 = vmatprep.mubr.bf16.mxu0 %v350
        %4001 = vmatmul.mubr.bf16.gmra.mxu0 %v349
        %v4002 = vpop.f32.mrf.mxu0
        %v4003 = vadd.f32 %v3962, %v4002
        %v4004 = vpop.f32.mrf.mxu0
        %v4005 = vadd.f32 %v3964, %v4004
        %v4006 = vpop.f32.mrf.mxu0
        %v4007 = vpop.f32.mrf.mxu0
        %4008 = vdwg.mxu0
        %4009 = vmatprep.subr.bf16.mxu0 %v2730
        %4010 = vmatpush1.bf16.msra.mxu0 %v2729
        %4011 = vmatprep.subr.bf16.mxu0 %v2722
        %4012 = vmatpush1.bf16.msra.mxu0 %v2721
        %4013 = vmatprep.subr.bf16.mxu0 %v2714
        %4014 = vmatpush1.bf16.msra.mxu0 %v2713
        %4015 = vmatprep.subr.bf16.mxu0 %v2706
        %4016 = vmatpush1.bf16.msra.mxu0 %v2705
        %4017 = vmatprep.subr.bf16.mxu0 %v2698
        %4018 = vmatpush1.bf16.msra.mxu0 %v2697
        %4019 = vmatprep.subr.bf16.mxu0 %v2690
        %4020 = vmatpush1.bf16.msra.mxu0 %v2689
        %4021 = vmatprep.subr.bf16.mxu0 %v2682
        %4022 = vmatpush1.bf16.msra.mxu0 %v2681
        %4023 = vmatprep.subr.bf16.mxu0 %v2674
        %4024 = vmatpush1.bf16.msra.mxu0 %v2673
        %4025 = vmatprep.subr.bf16.mxu0 %v2794
        %4026 = vmatpush2.bf16.msra.mxu0 %v2793
        %4027 = vmatprep.subr.bf16.mxu0 %v2786
        %4028 = vmatpush2.bf16.msra.mxu0 %v2785
        %4029 = vmatprep.subr.bf16.mxu0 %v2778
        %4030 = vmatpush2.bf16.msra.mxu0 %v2777
        %4031 = vmatprep.subr.bf16.mxu0 %v2770
        %4032 = vmatpush2.bf16.msra.mxu0 %v2769
        %4033 = vmatprep.subr.bf16.mxu0 %v2762
        %4034 = vmatpush2.bf16.msra.mxu0 %v2761
        %4035 = vmatprep.subr.bf16.mxu0 %v2754
        %4036 = vmatpush2.bf16.msra.mxu0 %v2753
        %4037 = vmatprep.subr.bf16.mxu0 %v2746
        %4038 = vmatpush2.bf16.msra.mxu0 %v2745
        %4039 = vmatprep.subr.bf16.mxu0 %v2738
        %4040 = vmatpush2.bf16.msra.mxu0 %v2737
        %4041 = vmatprep.mubr.bf16.mxu0 %v352
        %4042 = vmatmul.mubr.bf16.gmra.mxu0 %v351
        %v4043 = vpop.f32.mrf.mxu0
        %v4044 = vadd.f32 %v4003, %v4043
        %v4045 = vpop.f32.mrf.mxu0
        %v4046 = vadd.f32 %v4005, %v4045
        %v4047 = vpop.f32.mrf.mxu0
        %v4048 = vpop.f32.mrf.mxu0
        %4049 = vdwg.mxu0
        %4050 = vmatprep.subr.bf16.mxu0 %v2858
        %4051 = vmatpush1.bf16.msra.mxu0 %v2857
        %4052 = vmatprep.subr.bf16.mxu0 %v2850
        %4053 = vmatpush1.bf16.msra.mxu0 %v2849
        %4054 = vmatprep.subr.bf16.mxu0 %v2842
        %4055 = vmatpush1.bf16.msra.mxu0 %v2841
        %4056 = vmatprep.subr.bf16.mxu0 %v2834
        %4057 = vmatpush1.bf16.msra.mxu0 %v2833
        %4058 = vmatprep.subr.bf16.mxu0 %v2826
        %4059 = vmatpush1.bf16.msra.mxu0 %v2825
        %4060 = vmatprep.subr.bf16.mxu0 %v2818
        %4061 = vmatpush1.bf16.msra.mxu0 %v2817
        %4062 = vmatprep.subr.bf16.mxu0 %v2810
        %4063 = vmatpush1.bf16.msra.mxu0 %v2809
        %4064 = vmatprep.subr.bf16.mxu0 %v2802
        %4065 = vmatpush1.bf16.msra.mxu0 %v2801
        %4066 = vmatprep.subr.bf16.mxu0 %v2922
        %4067 = vmatpush2.bf16.msra.mxu0 %v2921
        %4068 = vmatprep.subr.bf16.mxu0 %v2914
        %4069 = vmatpush2.bf16.msra.mxu0 %v2913
        %4070 = vmatprep.subr.bf16.mxu0 %v2906
        %4071 = vmatpush2.bf16.msra.mxu0 %v2905
        %4072 = vmatprep.subr.bf16.mxu0 %v2898
        %4073 = vmatpush2.bf16.msra.mxu0 %v2897
        %4074 = vmatprep.subr.bf16.mxu0 %v2890
        %4075 = vmatpush2.bf16.msra.mxu0 %v2889
        %4076 = vmatprep.subr.bf16.mxu0 %v2882
        %4077 = vmatpush2.bf16.msra.mxu0 %v2881
        %4078 = vmatprep.subr.bf16.mxu0 %v2874
        %4079 = vmatpush2.bf16.msra.mxu0 %v2873
        %4080 = vmatprep.subr.bf16.mxu0 %v2866
        %4081 = vmatpush2.bf16.msra.mxu0 %v2865
        %4082 = vmatprep.mubr.bf16.mxu0 %v354
        %4083 = vmatmul.mubr.bf16.gmra.mxu0 %v353
        %v4084 = vpop.f32.mrf.mxu0
        %v4085 = vadd.f32 %v4044, %v4084
        %v4086 = vpop.f32.mrf.mxu0
        %v4087 = vadd.f32 %v4046, %v4086
        %v4088 = vpop.f32.mrf.mxu0
        %v4089 = vpop.f32.mrf.mxu0
        %4090 = vdwg.mxu0
        %v4091 = vadd.f32 %v355, %v3593
        %v4092 = vadd.f32 %v356, %v3595
        %v4093 = vadd.f32 %v357, %v3757
        %v4094 = vadd.f32 %v358, %v3759
        %v4095 = vadd.f32 %v359, %v3921
        %v4096 = vadd.f32 %v360, %v3923
        %v4097 = vadd.f32 %v361, %v4085
        %v4098 = vadd.f32 %v362, %v4087
        %4099 = vst [vmem:[%s318] sm:$0xff] %v4091
        %4100 = vst [vmem:[%s318 + $0x8] sm:$0xff] %v4092
        %4101 = vst [vmem:[%s318 + $0x10] sm:$0xff] %v4093
        %4102 = vst [vmem:[%s318 + $0x18] sm:$0xff] %v4094
        %4103 = vst [vmem:[%s318 + $0x20] sm:$0xff] %v4095
        %4104 = vst [vmem:[%s318 + $0x28] sm:$0xff] %v4096
        %4105 = vst [vmem:[%s318 + $0x30] sm:$0xff] %v4097
        %4106 = vst [vmem:[%s318 + $0x38] sm:$0xff] %v4098
        // Predicated region
        $region57: #{tpu_custom_call.1} parent=35 // pred_check
          %p4107 = pneg %p324
        $region58: #{tpu_custom_call.1} parent=35 // pred_check_branch
          %4109 = sbr.rel (%p4107) target = $region60
        $region59: #{tpu_custom_call.1} parent=35 // pred_region
          %v4110 = vld [vmem:[%s318] sm:$0xff]
          %v4111 = vld [vmem:[%s318 + $0x8] sm:$0xff]
          %v4112 = vld [vmem:[%s318 + $0x10] sm:$0xff]
          %v4113 = vld [vmem:[%s318 + $0x18] sm:$0xff]
          %v4114 = vld [vmem:[%s318 + $0x20] sm:$0xff]
          %v4115 = vld [vmem:[%s318 + $0x28] sm:$0xff]
          %v4116 = vld [vmem:[%s318 + $0x30] sm:$0xff]
          %v4117 = vld [vmem:[%s318 + $0x38] sm:$0xff]
          %v4118 = vld [vmem:[%s275] sm:$0xff]
          %v4120 = vlaneseq
          %v4121 = vshrl.u32 %v4120, 7
          %v4122 = vsub.s32 0, %v4121
          %v4123 = vrot.slane %v4118, %v4122
          %v4124 = vlaneseq
          %v4125 = vshrl.u32 %v4124, 7
          %v4126 = vsub.s32 1, %v4125
          %v4127 = vrot.slane %v4118, %v4126
          %v4128 = vlaneseq
          %v4129 = vshrl.u32 %v4128, 7
          %v4130 = vsub.s32 2, %v4129
          %v4131 = vrot.slane %v4118, %v4130
          %v4132 = vlaneseq
          %v4133 = vshrl.u32 %v4132, 7
          %v4134 = vsub.s32 3, %v4133
          %v4135 = vrot.slane %v4118, %v4134
          %v4136 = vlaneseq
          %v4137 = vshrl.u32 %v4136, 7
          %v4138 = vsub.s32 4, %v4137
          %v4139 = vrot.slane %v4118, %v4138
          %v4140 = vlaneseq
          %v4141 = vshrl.u32 %v4140, 7
          %v4142 = vsub.s32 5, %v4141
          %v4143 = vrot.slane %v4118, %v4142
          %v4144 = vlaneseq
          %v4145 = vshrl.u32 %v4144, 7
          %v4146 = vsub.s32 6, %v4145
          %v4147 = vrot.slane %v4118, %v4146
          %v4148 = vlaneseq
          %v4149 = vshrl.u32 %v4148, 7
          %v4150 = vsub.s32 7, %v4149
          %v4151 = vrot.slane %v4118, %v4150
          %v4160 = vmul.f32 %v4110, %v4123
          %v4161 = vmul.f32 %v4111, %v4127
          %v4162 = vmul.f32 %v4112, %v4131
          %v4163 = vmul.f32 %v4113, %v4135
          %v4164 = vmul.f32 %v4114, %v4139
          %v4165 = vmul.f32 %v4115, %v4143
          %v4166 = vmul.f32 %v4116, %v4147
          %v4167 = vmul.f32 %v4117, %v4151
          %v4168 = vld [vmem:[%s284] sm:$0xff]
          %v4170 = vlaneseq
          %v4171 = vshrl.u32 %v4170, 7
          %v4172 = vsub.s32 0, %v4171
          %v4173 = vrot.slane %v4168, %v4172
          %v4174 = vlaneseq
          %v4175 = vshrl.u32 %v4174, 7
          %v4176 = vsub.s32 1, %v4175
          %v4177 = vrot.slane %v4168, %v4176
          %v4178 = vlaneseq
          %v4179 = vshrl.u32 %v4178, 7
          %v4180 = vsub.s32 2, %v4179
          %v4181 = vrot.slane %v4168, %v4180
          %v4182 = vlaneseq
          %v4183 = vshrl.u32 %v4182, 7
          %v4184 = vsub.s32 3, %v4183
          %v4185 = vrot.slane %v4168, %v4184
          %v4186 = vlaneseq
          %v4187 = vshrl.u32 %v4186, 7
          %v4188 = vsub.s32 4, %v4187
          %v4189 = vrot.slane %v4168, %v4188
          %v4190 = vlaneseq
          %v4191 = vshrl.u32 %v4190, 7
          %v4192 = vsub.s32 5, %v4191
          %v4193 = vrot.slane %v4168, %v4192
          %v4194 = vlaneseq
          %v4195 = vshrl.u32 %v4194, 7
          %v4196 = vsub.s32 6, %v4195
          %v4197 = vrot.slane %v4168, %v4196
          %v4198 = vlaneseq
          %v4199 = vshrl.u32 %v4198, 7
          %v4200 = vsub.s32 7, %v4199
          %v4201 = vrot.slane %v4168, %v4200
          %v4210 = vadd.f32 %v4160, %v4173
          %v4211 = vadd.f32 %v4161, %v4177
          %v4212 = vadd.f32 %v4162, %v4181
          %v4213 = vadd.f32 %v4163, %v4185
          %v4214 = vadd.f32 %v4164, %v4189
          %v4215 = vadd.f32 %v4165, %v4193
          %v4216 = vadd.f32 %v4166, %v4197
          %v4217 = vadd.f32 %v4167, %v4201
          %v4218 = vmax.f32 %v4210, 0.0
          %v4219 = vmax.f32 %v4211, 0.0
          %v4220 = vmax.f32 %v4212, 0.0
          %v4221 = vmax.f32 %v4213, 0.0
          %v4222 = vmax.f32 %v4214, 0.0
          %v4223 = vmax.f32 %v4215, 0.0
          %v4224 = vmax.f32 %v4216, 0.0
          %v4225 = vmax.f32 %v4217, 0.0
          %4226 = vst [vmem:[%s318] sm:$0xff] %v4218
          %4227 = vst [vmem:[%s318 + $0x8] sm:$0xff] %v4219
          %4228 = vst [vmem:[%s318 + $0x10] sm:$0xff] %v4220
          %4229 = vst [vmem:[%s318 + $0x18] sm:$0xff] %v4221
          %4230 = vst [vmem:[%s318 + $0x20] sm:$0xff] %v4222
          %4231 = vst [vmem:[%s318 + $0x28] sm:$0xff] %v4223
          %4232 = vst [vmem:[%s318 + $0x30] sm:$0xff] %v4224
          %4233 = vst [vmem:[%s318 + $0x38] sm:$0xff] %v4225
        $region60: #{tpu_custom_call.1} parent=35 // pred_fallthru
          _
        %s4234 = sand.u32 %s146, 1
        %s4235 = scalar_lea.sflag [#allocation4], %s4234
        %s4236 = sand.u32 %s146, 1
        %s4237 = smul.addr %s4236, 64
        %s4238 = scalar_lea.vmem [#allocation10], %s4237
        // Predicated region
        $region61: #{tpu_custom_call.1} parent=35 // pred_check
          %p4239 = pneg %p156
        $region62: #{tpu_custom_call.1} parent=35 // pred_check_branch
          %4241 = sbr.rel (%p4239) target = $region64
        $region63: #{tpu_custom_call.1} parent=35 // pred_region
          %s4242 = smul.u32 8, %s29
          %s4244 = ssub.s32 1024, 1024
          %4245 = vsyncadd %s4235, %s4244
          %s4246 = smul.addr %s4242, 128
          %s4247 = scalar_lea.hbm %s4, %s4246
          %s4249 = sshll.u32 %s4238, 4
          %s4250 = int_to_ptr.vmem [resolvable:$true] %s4249
          %4252 = dma.vmem_to_hbm [thread:$0]  %s4250, 1024, %s4247, %s4235
        $region64: #{tpu_custom_call.1} parent=35 // pred_fallthru
          _
      $region36: #{tpu_custom_call.1} parent=5 // pred_fallthru
        _
      %p4253 = scmp.le.s32.totalorder 2, %s20
      // Predicated region
      $region65: #{tpu_custom_call.1} parent=5 // pred_check
        %p4254 = pneg %p4253
      $region66: #{tpu_custom_call.1} parent=5 // pred_check_branch
        %4256 = sbr.rel (%p4254) target = $region68
      $region67: #{tpu_custom_call.1} parent=5 // pred_region
        %s4257 = ssub.s32 %s20, 2
        // Predicated region
        $region69: #{tpu_custom_call.1} parent=67 // pred_check
          %p4258 = pneg %p162
        $region70: #{tpu_custom_call.1} parent=67 // pred_check_branch
          %4260 = sbr.rel (%p4258) target = $region72
        $region71: #{tpu_custom_call.1} parent=67 // pred_region
          %s4261 = sand.u32 %s147, 1
          %s4262 = scalar_lea.sflag [#allocation4], %s4261
          %s4263 = sand.u32 %s147, 1
          %s4264 = smul.addr %s4263, 64
          %s4265 = scalar_lea.vmem [#allocation10], %s4264
          %4266 = dma.done %s4262, 1024
        $region72: #{tpu_custom_call.1} parent=67 // pred_fallthru
          _
      $region68: #{tpu_custom_call.1} parent=5 // pred_fallthru
        _
    $region6: #{tpu_custom_call.1} parent=1 // loop_footer
      %s24 = sadd.s32 1, %s20
    $region7: #{tpu_custom_call.1} parent=1 // loop_footer_branch
      %19 = sbr.rel target = $region3
    $region8: #{tpu_custom_call.1} parent=1 // loop_exit
      _
    %4267 = vsyncpa [#allocation3], 1
    %s4268 = scalar_lea.sflag [#allocation3], 1
    %4269 = vsyncpa %s4268, 1
    %4270 = vsyncpa [#allocation6], 1
    %s4271 = scalar_lea.sflag [#allocation6], 1
    %4272 = vsyncpa %s4271, 1
    %4273 = vsyncpa [#allocation9], 1
    %s4274 = scalar_lea.sflag [#allocation9], 1
    %4275 = vsyncpa %s4274, 1
    %4276 = vsyncpa [#allocation4], 1
    %s4277 = scalar_lea.sflag [#allocation4], 1
    %4278 = vsyncpa %s4277, 1

</llo_original>
